<compile_context>
chip_gen: v7x
topology: tpu7x:2x2x1
jax: 0.10.0
libtpu: 0.0.40
codegen_flags: <defaults>
</compile_context>

<pallas_src>
import functools

import jax
import jax.numpy as jnp
import numpy as np
from jax.experimental import pallas as pl
from jax.experimental.pallas import tpu as pltpu


# -----------------------------------------------------------------------------
# Pallas kernels
# -----------------------------------------------------------------------------

def _gemm_bias_act_kernel(w_ref, x_ref, b_ref, a_ref, o_ref, *, apply_prelu):
    # o = prelu?(w @ x + b); w:(Cout,K), x:(K,N), b:(Cout,1|N), a:(1,1) in SMEM.
    acc = jnp.dot(w_ref[...], x_ref[...], preferred_element_type=jnp.float32)
    acc = acc + b_ref[...]
    if apply_prelu:
        alpha = a_ref[0, 0]
        acc = jnp.where(acc >= 0.0, acc, alpha * acc)
    o_ref[...] = acc


def _attention_kernel(q_ref, k_ref, v_ref, a_ref, o_ref):
    # Per (batch*channel) matrix: o = (prelu(q) @ k^T) @ v, all in one grid step.
    # k^T is expressed via contraction dims so no transpose is materialized.
    alpha = a_ref[0, 0]
    q = q_ref[...]
    q = jnp.where(q >= 0.0, q, alpha * q)              # PReLU on q fused here
    qk = jnp.einsum("nij,nkj->nik", q, k_ref[...],
                    preferred_element_type=jnp.float32)
    o_ref[...] = jnp.einsum("nik,nkl->nil", qk, v_ref[...],
                            preferred_element_type=jnp.float32)


# -----------------------------------------------------------------------------
# Pallas wrappers (single grid step, full-array blocks, lane-dense outputs)
# -----------------------------------------------------------------------------

def gemm_bias_act(w, x, bias, alpha, *, apply_prelu):
    """(Cout,K)@(K,N) + bias (+ PReLU) fused in one single-step kernel."""
    cout, k = w.shape
    n = x.shape[1]
    nb = bias.shape[1]
    kern = functools.partial(_gemm_bias_act_kernel, apply_prelu=apply_prelu)
    return pl.pallas_call(
        kern,
        out_shape=jax.ShapeDtypeStruct((cout, n), jnp.float32),
        grid=(1,),
        in_specs=[
            pl.BlockSpec((cout, k), lambda i: (0, 0)),
            pl.BlockSpec((k, n), lambda i: (0, 0)),
            pl.BlockSpec((cout, nb), lambda i: (0, 0)),
            pl.BlockSpec(memory_space=pltpu.MemorySpace.SMEM),
        ],
        out_specs=pl.BlockSpec((cout, n), lambda i: (0, 0)),
        compiler_params=pltpu.CompilerParams(dimension_semantics=("arbitrary",)),
    )(w, x, bias, alpha)


def lp_attention_matmul(q, k, v, alpha):
    """(prelu(q) @ k^T) @ v batched over all (B, C) pairs in one grid step."""
    B, C, H, W = q.shape
    n = B * C
    out = pl.pallas_call(
        _attention_kernel,
        out_shape=jax.ShapeDtypeStruct((n, H, W), jnp.float32),
        grid=(1,),
        in_specs=[
            pl.BlockSpec((n, H, W), lambda i: (0, 0, 0)),
            pl.BlockSpec((n, H, W), lambda i: (0, 0, 0)),
            pl.BlockSpec((n, H, W), lambda i: (0, 0, 0)),
            pl.BlockSpec(memory_space=pltpu.MemorySpace.SMEM),
        ],
        out_specs=pl.BlockSpec((n, H, W), lambda i: (0, 0, 0)),
        compiler_params=pltpu.CompilerParams(dimension_semantics=("arbitrary",)),
    )(q.reshape(n, H, W), k.reshape(n, H, W), v.reshape(n, H, W), alpha)
    return out.reshape(B, C, H, W)


# -----------------------------------------------------------------------------
# Precomputed Laplacian-pyramid operator (numpy, trace time -> constant)
# -----------------------------------------------------------------------------

def _pyramid_operator(H, W):
    """Depth-2 Laplacian pyramid as one (H*W, H*W + H*W/4 + H*W/16) matrix.

    conv_gauss (5x5, reflect pad) is separable; downsample keeps even pixels;
    upsample is zero-interleave + 4*kernel.  All are linear, so every pyramid
    level equals M_h @ X @ M_w^T for small constant band matrices; flattened
    row-major that is a Kronecker-product matrix (polyphase savings for free).
    """
    g = np.array([1.0, 4.0, 6.0, 4.0, 1.0], np.float64) / 16.0

    def refl(n, j):                          # PyTorch 'reflect' pad indexing
        if j < 0:
            return -j
        if j >= n:
            return 2 * n - 2 - j
        return j

    def gauss_mat(n):                        # 1-D reflect-padded Gaussian conv
        m = np.zeros((n, n), np.float64)
        for i in range(n):
            for t in range(-2, 3):
                m[i, refl(n, i + t)] += g[t + 2]
        return m

    def down_up(n):
        a = gauss_mat(n)
        ad = a[::2]                          # gauss + stride-2 down   (n/2, n)
        bu = 2.0 * a[:, ::2]                 # zero-interleave up + 4*gauss
        return ad, bu

    ops = []
    for n in (H, W):
        ad1, bu1 = down_up(n)
        ad2, bu2 = down_up(n // 2)
        m1 = bu1 @ ad1                       # up(down(gauss(.)))  (n, n)
        d1 = ad1                             # first downsample    (n/2, n)
        m2 = bu2 @ ad2 @ ad1                 # (n/2, n)
        d2 = ad2 @ ad1                       # (n/4, n)
        ops.append((m1, d1, m2, d2))
    (m1h, d1h, m2h, d2h), (m1w, d1w, m2w, d2w) = ops
    p0 = np.eye(H * W) - np.kron(m1h, m1w)               # diff at full res
    p1 = np.kron(d1h, d1w) - np.kron(m2h, m2w)           # diff at half res
    p2 = np.kron(d2h, d2w)                               # low-pass residual
    return jnp.asarray(np.concatenate([p0, p1, p2], axis=0).T, jnp.float32)


# -----------------------------------------------------------------------------
# Layout glue (plain JAX)
# -----------------------------------------------------------------------------

def im2col3(x):
    """(B, C, H, W) -> (C*9, B*H*W); zero pad=1, rows in PyTorch weight order."""
    B, C, H, W = x.shape
    xp = jnp.pad(x, ((0, 0), (0, 0), (1, 1), (1, 1)))
    cols = [xp[:, :, dy:dy + H, dx:dx + W] for dy in range(3) for dx in range(3)]
    p = jnp.stack(cols, axis=2)                          # (B, C, 9, H, W)
    return p.transpose(1, 2, 0, 3, 4).reshape(C * 9, B * H * W)


def block_diag2(a, b):
    za = jnp.zeros((a.shape[0], b.shape[1]), a.dtype)
    zb = jnp.zeros((b.shape[0], a.shape[1]), b.dtype)
    return jnp.concatenate(
        [jnp.concatenate([a, za], axis=1), jnp.concatenate([zb, b], axis=1)], axis=0)


def upsample_nearest_2x(x):
    return jnp.repeat(jnp.repeat(x, 2, axis=2), 2, axis=3)


# -----------------------------------------------------------------------------
# LPAttention forward (6 pallas_call dispatches)
# -----------------------------------------------------------------------------

def lp_attention_forward(x, p):
    B, C, H, W = x.shape
    assert H % 4 == 0 and W % 4 == 0
    nd3 = 3 * C                      # channels after conv1/conv2 (num_dims*3)
    a = p["alpha"]

    def unflat(block, h, w):         # (nd3, B*h*w) -> (B, nd3, h, w)
        return block.reshape(nd3, B, h, w).transpose(1, 0, 2, 3)

    # -- 1. Laplacian pyramid: one GEMM against the precomputed operator -----
    pyr_op_t = _pyramid_operator(H, W)
    n0, n1, n2 = H * W, (H // 2) * (W // 2), (H // 4) * (W // 4)
    pyr_flat = gemm_bias_act(x.reshape(B * C, H * W), pyr_op_t,
                             jnp.zeros((B * C, 1), jnp.float32), a,
                             apply_prelu=False)          # (B*C, n0+n1+n2)
    pyr0 = pyr_flat[:, :n0].reshape(B, C, H, W)
    pyr1 = pyr_flat[:, n0:n0 + n1].reshape(B, C, H // 2, W // 2)
    pyr2 = pyr_flat[:, n0 + n1:].reshape(B, C, H // 4, W // 4)

    # -- 2. all projections (conv1->conv2 / conv1_->conv2_) as ONE GEMM ------
    # conv2(conv1(.)) folded exactly into a dense 3x3 conv + per-pixel bias map.
    w2k = p["conv2_w"].reshape(nd3, 9)
    w2v = p["conv2__w"].reshape(nd3, 9)

    def fold_weight(w1, w2m):
        w1m = w1.reshape(nd3, C)
        return (w1m[:, :, None] * w2m[:, None, :]).reshape(nd3, C * 9)

    def fold_bias(b1, b2, w2m, h, w):
        ones = jnp.pad(jnp.ones((h, w), jnp.float32), ((1, 1), (1, 1)))
        taps = jnp.stack([ones[dy:dy + h, dx:dx + w]
                          for dy in range(3) for dx in range(3)],
                         0).reshape(9, h * w)
        bm = b2[:, None] + b1[:, None] * jnp.dot(w2m, taps)
        return jnp.tile(bm, (1, B))                      # (nd3, B*h*w)

    w_proj = jnp.concatenate([fold_weight(p["conv1_w"], w2k),
                              fold_weight(p["conv1__w"], w2v)], axis=0)
    x_proj = jnp.concatenate([im2col3(x), im2col3(pyr2),
                              im2col3(pyr1), im2col3(pyr0)], axis=1)
    sizes = [(H, W), (H // 4, W // 4), (H // 2, W // 2), (H, W)]
    bias_k = jnp.concatenate(
        [fold_bias(p["conv1_b"], p["conv2_b"], w2k, h, w) for h, w in sizes], axis=1)
    bias_v = jnp.concatenate(
        [fold_bias(p["conv1__b"], p["conv2__b"], w2v, h, w) for h, w in sizes], axis=1)
    o_proj = gemm_bias_act(w_proj, x_proj,
                           jnp.concatenate([bias_k, bias_v], axis=0), a,
                           apply_prelu=False)

    c0 = B * n0
    q_pre = unflat(o_proj[:nd3, :c0], H, W)              # PReLU fused in attn
    k1 = unflat(o_proj[:nd3, c0:c0 + B * n2], H // 4, W // 4)
    v1 = unflat(o_proj[nd3:, c0:c0 + B * n2], H // 4, W // 4)
    c0 += B * n2
    k2 = unflat(o_proj[:nd3, c0:c0 + B * n1], H // 2, W // 2)
    v2 = unflat(o_proj[nd3:, c0:c0 + B * n1], H // 2, W // 2)
    c0 += B * n1
    k3 = unflat(o_proj[:nd3, c0:], H, W)
    v3 = unflat(o_proj[nd3:, c0:], H, W)

    # -- 3. conv3 / conv3_ : both branches in one block-diagonal GEMM --------
    kcat = jnp.concatenate([upsample_nearest_2x(k1), k2], axis=1)
    vcat = jnp.concatenate([upsample_nearest_2x(v1), v2], axis=1)
    w_c = block_diag2(p["conv3_w"].reshape(nd3, -1), p["conv3__w"].reshape(nd3, -1))
    x_c = jnp.concatenate([im2col3(kcat), im2col3(vcat)], axis=0)
    b_c = jnp.concatenate([p["conv3_b"], p["conv3__b"]]).reshape(2 * nd3, 1)
    o_c = gemm_bias_act(w_c, x_c, b_c, a, apply_prelu=False)
    k12 = unflat(o_c[:nd3], H // 2, W // 2)
    v12 = unflat(o_c[nd3:], H // 2, W // 2)

    # -- 4. conv4 / conv4_ + PReLU : one block-diagonal GEMM -----------------
    kcat4 = jnp.concatenate([upsample_nearest_2x(k12), k3], axis=1)
    vcat4 = jnp.concatenate([upsample_nearest_2x(v12), v3], axis=1)
    w_d = block_diag2(p["conv4_w"].reshape(nd3, -1), p["conv4__w"].reshape(nd3, -1))
    x_d = jnp.concatenate([im2col3(kcat4), im2col3(vcat4)], axis=0)
    b_d = jnp.concatenate([p["conv4_b"], p["conv4__b"]]).reshape(2 * nd3, 1)
    o_d = gemm_bias_act(w_d, x_d, b_d, a, apply_prelu=True)
    kk = unflat(o_d[:nd3], H, W)
    vv = unflat(o_d[nd3:], H, W)

    # -- 5. attention: (PReLU(q) @ k^T) @ v, one batched-dot kernel ----------
    qkv = lp_attention_matmul(q_pre, kk, vv, a)

    # -- 6. conv5 + PReLU ------------------------------------------------------
    o_f = gemm_bias_act(p["conv5_w"].reshape(C, nd3 * 9), im2col3(qkv),
                        p["conv5_b"].reshape(C, 1), a, apply_prelu=True)
    return o_f.reshape(C, B, H, W).transpose(1, 0, 2, 3)


# -----------------------------------------------------------------------------
# Pure-JAX reference (mirrors the PyTorch module, no Pallas) for self-check
# -----------------------------------------------------------------------------

_G1 = jnp.array([1.0, 4.0, 6.0, 4.0, 1.0], jnp.float32) / 16.0
GAUSS_2D = jnp.outer(_G1, _G1)           # == gauss_kernel() / 256


def reference_forward(x, p):
    prec = jax.lax.Precision.HIGHEST
    alpha = p["alpha"][0, 0]

    def prelu_(t):
        return jnp.where(t >= 0, t, alpha * t)

    def conv2d(inp, w, b, pad, groups=1):
        out = jax.lax.conv_general_dilated(
            inp, w, window_strides=(1, 1), padding=((pad, pad), (pad, pad)),
            dimension_numbers=("NCHW", "OIHW", "NCHW"),
            feature_group_count=groups, precision=prec)
        return out + b.reshape(1, -1, 1, 1)

    def conv_gauss(img, k2d):
        cc = img.shape[1]
        imgp = jnp.pad(img, ((0, 0), (0, 0), (2, 2), (2, 2)), mode="reflect")
        w = jnp.broadcast_to(k2d, (cc, 1, 5, 5))
        return jax.lax.conv_general_dilated(
            imgp, w, (1, 1), "VALID",
            dimension_numbers=("NCHW", "OIHW", "NCHW"),
            feature_group_count=cc, precision=prec)

    def up_lap(d):
        bb, cc, hh, ww = d.shape
        z = jnp.zeros((bb, cc, 2 * hh, 2 * ww), d.dtype).at[:, :, ::2, ::2].set(d)
        return conv_gauss(z, 4.0 * GAUSS_2D)

    current, pyr = x, []
    for _ in range(2):
        filt = conv_gauss(current, GAUSS_2D)
        down = filt[:, :, ::2, ::2]
        pyr.append(current - up_lap(down))
        current = down
    pyr.append(current)

    def proj(inp, w1, b1, wd, bd):
        return conv2d(conv2d(inp, w1, b1, 0), wd, bd, 1, groups=wd.shape[0])

    def up2(t):
        return jnp.repeat(jnp.repeat(t, 2, axis=2), 2, axis=3)

    q = prelu_(proj(x, p["conv1_w"], p["conv1_b"], p["conv2_w"], p["conv2_b"]))

    def branch(w1, b1, wd, bd, w3, b3, w4, b4):
        t1 = proj(pyr[2], w1, b1, wd, bd)
        t2 = proj(pyr[1], w1, b1, wd, bd)
        t3 = proj(pyr[0], w1, b1, wd, bd)
        t12 = conv2d(jnp.concatenate([up2(t1), t2], axis=1), w3, b3, 1)
        t = conv2d(jnp.concatenate([up2(t12), t3], axis=1), w4, b4, 1)
        return prelu_(t)

    k = branch(p["conv1_w"], p["conv1_b"], p["conv2_w"], p["conv2_b"],
               p["conv3_w"], p["conv3_b"], p["conv4_w"], p["conv4_b"])
    v = branch(p["conv1__w"], p["conv1__b"], p["conv2__w"], p["conv2__b"],
               p["conv3__w"], p["conv3__b"], p["conv4__w"], p["conv4__b"])
    qk = jnp.einsum("bchw,bckw->bchk", q, k, precision=prec)
    qkv = jnp.einsum("bchk,bckw->bchw", qk, v, precision=prec)
    return prelu_(conv2d(qkv, p["conv5_w"], p["conv5_b"], 1))


# -----------------------------------------------------------------------------
# Parameters (deterministic synthetic init, PyTorch-shaped)
# -----------------------------------------------------------------------------

def init_params(key, num_dims=3):
    nd = num_dims
    shapes = {
        "conv1": (nd * 3, nd, 1),
        "conv2": (nd * 3, 1, 3),        # depthwise, groups = nd*3
        "conv3": (nd * 3, nd * 6, 3),
        "conv4": (nd * 3, nd * 6, 3),
        "conv1_": (nd * 3, nd, 1),
        "conv2_": (nd * 3, 1, 3),       # depthwise
        "conv3_": (nd * 3, nd * 6, 3),
        "conv4_": (nd * 3, nd * 6, 3),
        "conv5": (nd, nd * 3, 3),
    }
    p = {}
    keys = jax.random.split(key, 2 * len(shapes))
    for i, (name, (cout, cin, k)) in enumerate(shapes.items()):
        p[name + "_w"] = jax.random.normal(keys[2 * i], (cout, cin, k, k),
                                           jnp.float32) * 0.1
        p[name + "_b"] = jax.random.normal(keys[2 * i + 1], (cout,),
                                           jnp.float32) * 0.1
    # nn.PReLU() default: single shared slope initialized to 0.25
    p["alpha"] = jnp.full((1, 1), 0.25, jnp.float32)
    return p


# -----------------------------------------------------------------------------
# Main
# -----------------------------------------------------------------------------

if __name__ == "__main__":
    key = jax.random.PRNGKey(0)
    kx, kp = jax.random.split(key)
    x = jax.random.normal(kx, (2, 3, 16, 16), jnp.float32)   # (B, C, H, W)
    params = init_params(kp)

    fwd = jax.jit(lp_attention_forward)
    out = fwd(x, params)
    jax.block_until_ready(out)

    assert out.shape == (2, 3, 16, 16), out.shape
    assert bool(jnp.all(jnp.isfinite(out)))

    # self-check against a pure-JAX mirror of the PyTorch module
    ref = reference_forward(x, params)
    scale = float(jnp.max(jnp.abs(ref))) + 1e-6
    err = float(jnp.max(jnp.abs(out - ref))) / scale
    assert err < 3e-2, f"numerical mismatch vs reference: {err}"

    print("KERNEL_OK")
</pallas_src>

<mosaic_0001>
module attributes {stable_mosaic.version = 11 : i64} {
  func.func @_gemm_bias_act_kernel(%arg0: i32, %arg1: memref<6x256xf32, #tpu.memory_space<vmem>>, %arg2: memref<256x336xf32, #tpu.memory_space<vmem>>, %arg3: memref<6x1xf32, #tpu.memory_space<vmem>>, %arg4: memref<1x1xf32, #tpu.memory_space<smem>>, %arg5: memref<6x336xf32, #tpu.memory_space<vmem>>) attributes {dimension_semantics = [#tpu.dimension_semantics<arbitrary>], iteration_bounds = array<i64: 1>, scalar_prefetch = 0 : i64, scratch_operands = 0 : i64, tpu.core_type = #tpu.core_type<tc>, window_params = [{pipeline_mode = #tpu.pipeline_mode<synchronous>, transform_indices = @transform_0, window_bounds = array<i64: 6, 256>}, {pipeline_mode = #tpu.pipeline_mode<synchronous>, transform_indices = @transform_1, window_bounds = array<i64: 256, 336>}, {pipeline_mode = #tpu.pipeline_mode<synchronous>, transform_indices = @transform_2, window_bounds = array<i64: 6, 1>}, {transform_indices = @transform_3, window_bounds = array<i64: 1, 1>}, {pipeline_mode = #tpu.pipeline_mode<synchronous>, transform_indices = @transform_4, window_bounds = array<i64: 6, 336>}]} {
    %c0 = arith.constant 0 : index
    %c0_0 = arith.constant 0 : index
    %0 = vector.load %arg1[%c0, %c0_0] : memref<6x256xf32, #tpu.memory_space<vmem>>, vector<6x256xf32>
    %c0_1 = arith.constant 0 : index
    %c0_2 = arith.constant 0 : index
    %1 = vector.load %arg2[%c0_1, %c0_2] : memref<256x336xf32, #tpu.memory_space<vmem>>, vector<256x336xf32>
    %cst = arith.constant dense<0.000000e+00> : vector<6x336xf32>
    %2 = tpu.matmul %0, %1, %cst {dimension_numbers = #tpu.dot_dimension_numbers<[1], [0], [0], [1], [0, 0, 1, 1], [], []>} : vector<6x256xf32>, vector<256x336xf32>, vector<6x336xf32> -> vector<6x336xf32>
    %c0_3 = arith.constant 0 : index
    %c0_4 = arith.constant 0 : index
    %3 = vector.load %arg3[%c0_3, %c0_4] : memref<6x1xf32, #tpu.memory_space<vmem>>, vector<6x1xf32>
    %4 = vector.broadcast %3 : vector<6x1xf32> to vector<6x336xf32>
    %5 = arith.addf %2, %4 : vector<6x336xf32>
    %c0_5 = arith.constant 0 : index
    %c0_6 = arith.constant 0 : index
    %6 = vector.load %arg5[%c0_5, %c0_6] : memref<6x336xf32, #tpu.memory_space<vmem>>, vector<6x336xf32>
    tpu.vector_store %arg5[%c0_5, %c0_6], %5 {strides = array<i32>} : memref<6x336xf32, #tpu.memory_space<vmem>>, vector<6x336xf32>,
    return
  }
  func.func @transform_0(%arg0: i32) -> (i32, i32) {
    %c0_i32 = arith.constant 0 : i32
    %c0_i32_0 = arith.constant 0 : i32
    %c0_i32_1 = arith.constant 0 : i32
    return %c0_i32, %c0_i32_0 : i32, i32
  }
  func.func @transform_1(%arg0: i32) -> (i32, i32) {
    %c0_i32 = arith.constant 0 : i32
    %c0_i32_0 = arith.constant 0 : i32
    %c0_i32_1 = arith.constant 0 : i32
    return %c0_i32, %c0_i32_0 : i32, i32
  }
  func.func @transform_2(%arg0: i32) -> (i32, i32) {
    %c0_i32 = arith.constant 0 : i32
    %c0_i32_0 = arith.constant 0 : i32
    %c0_i32_1 = arith.constant 0 : i32
    return %c0_i32, %c0_i32_0 : i32, i32
  }
  func.func @transform_3(%arg0: i32) -> (i32, i32) {
    %c0_i32 = arith.constant 0 : i32
    %c0_i32_0 = arith.constant 0 : i32
    %c0_i32_1 = arith.constant 0 : i32
    return %c0_i32, %c0_i32_0 : i32, i32
  }
  func.func @transform_4(%arg0: i32) -> (i32, i32) {
    %c0_i32 = arith.constant 0 : i32
    %c0_i32_0 = arith.constant 0 : i32
    %c0_i32_1 = arith.constant 0 : i32
    return %c0_i32, %c0_i32_0 : i32, i32
  }
}

module attributes {stable_mosaic.version = 11 : i64} {
  func.func @_gemm_bias_act_kernel(%arg0: i32, %arg1: memref<18x27xf32, #tpu.memory_space<vmem>>, %arg2: memref<27x1184xf32, #tpu.memory_space<vmem>>, %arg3: memref<18x1184xf32, #tpu.memory_space<vmem>>, %arg4: memref<1x1xf32, #tpu.memory_space<smem>>, %arg5: memref<18x1184xf32, #tpu.memory_space<vmem>>) attributes {dimension_semantics = [#tpu.dimension_semantics<arbitrary>], iteration_bounds = array<i64: 1>, scalar_prefetch = 0 : i64, scratch_operands = 0 : i64, tpu.core_type = #tpu.core_type<tc>, window_params = [{pipeline_mode = #tpu.pipeline_mode<synchronous>, transform_indices = @transform_0, window_bounds = array<i64: 18, 27>}, {pipeline_mode = #tpu.pipeline_mode<synchronous>, transform_indices = @transform_1, window_bounds = array<i64: 27, 1184>}, {pipeline_mode = #tpu.pipeline_mode<synchronous>, transform_indices = @transform_2, window_bounds = array<i64: 18, 1184>}, {transform_indices = @transform_3, window_bounds = array<i64: 1, 1>}, {pipeline_mode = #tpu.pipeline_mode<synchronous>, transform_indices = @transform_4, window_bounds = array<i64: 18, 1184>}]} {
    %c0 = arith.constant 0 : index
    %c0_0 = arith.constant 0 : index
    %0 = vector.load %arg1[%c0, %c0_0] : memref<18x27xf32, #tpu.memory_space<vmem>>, vector<18x27xf32>
    %c0_1 = arith.constant 0 : index
    %c0_2 = arith.constant 0 : index
    %1 = vector.load %arg2[%c0_1, %c0_2] : memref<27x1184xf32, #tpu.memory_space<vmem>>, vector<27x1184xf32>
    %cst = arith.constant dense<0.000000e+00> : vector<18x1184xf32>
    %2 = tpu.matmul %0, %1, %cst {dimension_numbers = #tpu.dot_dimension_numbers<[1], [0], [0], [1], [0, 0, 1, 1], [], []>} : vector<18x27xf32>, vector<27x1184xf32>, vector<18x1184xf32> -> vector<18x1184xf32>
    %c0_3 = arith.constant 0 : index
    %c0_4 = arith.constant 0 : index
    %3 = vector.load %arg3[%c0_3, %c0_4] : memref<18x1184xf32, #tpu.memory_space<vmem>>, vector<18x1184xf32>
    %4 = arith.addf %2, %3 : vector<18x1184xf32>
    %c0_5 = arith.constant 0 : index
    %c0_6 = arith.constant 0 : index
    %5 = vector.load %arg5[%c0_5, %c0_6] : memref<18x1184xf32, #tpu.memory_space<vmem>>, vector<18x1184xf32>
    tpu.vector_store %arg5[%c0_5, %c0_6], %4 {strides = array<i32>} : memref<18x1184xf32, #tpu.memory_space<vmem>>, vector<18x1184xf32>,
    return
  }
  func.func @transform_0(%arg0: i32) -> (i32, i32) {
    %c0_i32 = arith.constant 0 : i32
    %c0_i32_0 = arith.constant 0 : i32
    %c0_i32_1 = arith.constant 0 : i32
    return %c0_i32, %c0_i32_0 : i32, i32
  }
  func.func @transform_1(%arg0: i32) -> (i32, i32) {
    %c0_i32 = arith.constant 0 : i32
    %c0_i32_0 = arith.constant 0 : i32
    %c0_i32_1 = arith.constant 0 : i32
    return %c0_i32, %c0_i32_0 : i32, i32
  }
  func.func @transform_2(%arg0: i32) -> (i32, i32) {
    %c0_i32 = arith.constant 0 : i32
    %c0_i32_0 = arith.constant 0 : i32
    %c0_i32_1 = arith.constant 0 : i32
    return %c0_i32, %c0_i32_0 : i32, i32
  }
  func.func @transform_3(%arg0: i32) -> (i32, i32) {
    %c0_i32 = arith.constant 0 : i32
    %c0_i32_0 = arith.constant 0 : i32
    %c0_i32_1 = arith.constant 0 : i32
    return %c0_i32, %c0_i32_0 : i32, i32
  }
  func.func @transform_4(%arg0: i32) -> (i32, i32) {
    %c0_i32 = arith.constant 0 : i32
    %c0_i32_0 = arith.constant 0 : i32
    %c0_i32_1 = arith.constant 0 : i32
    return %c0_i32, %c0_i32_0 : i32, i32
  }
}

module attributes {stable_mosaic.version = 11 : i64} {
  func.func @_gemm_bias_act_kernel(%arg0: i32, %arg1: memref<18x324xf32, #tpu.memory_space<vmem>>, %arg2: memref<324x128xf32, #tpu.memory_space<vmem>>, %arg3: memref<18x1xf32, #tpu.memory_space<vmem>>, %arg4: memref<1x1xf32, #tpu.memory_space<smem>>, %arg5: memref<18x128xf32, #tpu.memory_space<vmem>>) attributes {dimension_semantics = [#tpu.dimension_semantics<arbitrary>], iteration_bounds = array<i64: 1>, scalar_prefetch = 0 : i64, scratch_operands = 0 : i64, tpu.core_type = #tpu.core_type<tc>, window_params = [{pipeline_mode = #tpu.pipeline_mode<synchronous>, transform_indices = @transform_0, window_bounds = array<i64: 18, 324>}, {pipeline_mode = #tpu.pipeline_mode<synchronous>, transform_indices = @transform_1, window_bounds = array<i64: 324, 128>}, {pipeline_mode = #tpu.pipeline_mode<synchronous>, transform_indices = @transform_2, window_bounds = array<i64: 18, 1>}, {transform_indices = @transform_3, window_bounds = array<i64: 1, 1>}, {pipeline_mode = #tpu.pipeline_mode<synchronous>, transform_indices = @transform_4, window_bounds = array<i64: 18, 128>}]} {
    %c0 = arith.constant 0 : index
    %c0_0 = arith.constant 0 : index
    %0 = vector.load %arg1[%c0, %c0_0] : memref<18x324xf32, #tpu.memory_space<vmem>>, vector<18x324xf32>
    %c0_1 = arith.constant 0 : index
    %c0_2 = arith.constant 0 : index
    %1 = vector.load %arg2[%c0_1, %c0_2] : memref<324x128xf32, #tpu.memory_space<vmem>>, vector<324x128xf32>
    %cst = arith.constant dense<0.000000e+00> : vector<18x128xf32>
    %2 = tpu.matmul %0, %1, %cst {dimension_numbers = #tpu.dot_dimension_numbers<[1], [0], [0], [1], [0, 0, 1, 1], [], []>} : vector<18x324xf32>, vector<324x128xf32>, vector<18x128xf32> -> vector<18x128xf32>
    %c0_3 = arith.constant 0 : index
    %c0_4 = arith.constant 0 : index
    %3 = vector.load %arg3[%c0_3, %c0_4] : memref<18x1xf32, #tpu.memory_space<vmem>>, vector<18x1xf32>
    %4 = vector.broadcast %3 : vector<18x1xf32> to vector<18x128xf32>
    %5 = arith.addf %2, %4 : vector<18x128xf32>
    %c0_5 = arith.constant 0 : index
    %c0_6 = arith.constant 0 : index
    %6 = vector.load %arg5[%c0_5, %c0_6] : memref<18x128xf32, #tpu.memory_space<vmem>>, vector<18x128xf32>
    tpu.vector_store %arg5[%c0_5, %c0_6], %5 {strides = array<i32>} : memref<18x128xf32, #tpu.memory_space<vmem>>, vector<18x128xf32>,
    return
  }
  func.func @transform_0(%arg0: i32) -> (i32, i32) {
    %c0_i32 = arith.constant 0 : i32
    %c0_i32_0 = arith.constant 0 : i32
    %c0_i32_1 = arith.constant 0 : i32
    return %c0_i32, %c0_i32_0 : i32, i32
  }
  func.func @transform_1(%arg0: i32) -> (i32, i32) {
    %c0_i32 = arith.constant 0 : i32
    %c0_i32_0 = arith.constant 0 : i32
    %c0_i32_1 = arith.constant 0 : i32
    return %c0_i32, %c0_i32_0 : i32, i32
  }
  func.func @transform_2(%arg0: i32) -> (i32, i32) {
    %c0_i32 = arith.constant 0 : i32
    %c0_i32_0 = arith.constant 0 : i32
    %c0_i32_1 = arith.constant 0 : i32
    return %c0_i32, %c0_i32_0 : i32, i32
  }
  func.func @transform_3(%arg0: i32) -> (i32, i32) {
    %c0_i32 = arith.constant 0 : i32
    %c0_i32_0 = arith.constant 0 : i32
    %c0_i32_1 = arith.constant 0 : i32
    return %c0_i32, %c0_i32_0 : i32, i32
  }
  func.func @transform_4(%arg0: i32) -> (i32, i32) {
    %c0_i32 = arith.constant 0 : i32
    %c0_i32_0 = arith.constant 0 : i32
    %c0_i32_1 = arith.constant 0 : i32
    return %c0_i32, %c0_i32_0 : i32, i32
  }
}

module attributes {stable_mosaic.version = 11 : i64} {
  func.func @_gemm_bias_act_kernel(%arg0: i32, %arg1: memref<18x324xf32, #tpu.memory_space<vmem>>, %arg2: memref<324x512xf32, #tpu.memory_space<vmem>>, %arg3: memref<18x1xf32, #tpu.memory_space<vmem>>, %arg4: memref<1x1xf32, #tpu.memory_space<smem>>, %arg5: memref<18x512xf32, #tpu.memory_space<vmem>>) attributes {dimension_semantics = [#tpu.dimension_semantics<arbitrary>], iteration_bounds = array<i64: 1>, scalar_prefetch = 0 : i64, scratch_operands = 0 : i64, tpu.core_type = #tpu.core_type<tc>, window_params = [{pipeline_mode = #tpu.pipeline_mode<synchronous>, transform_indices = @transform_0, window_bounds = array<i64: 18, 324>}, {pipeline_mode = #tpu.pipeline_mode<synchronous>, transform_indices = @transform_1, window_bounds = array<i64: 324, 512>}, {pipeline_mode = #tpu.pipeline_mode<synchronous>, transform_indices = @transform_2, window_bounds = array<i64: 18, 1>}, {transform_indices = @transform_3, window_bounds = array<i64: 1, 1>}, {pipeline_mode = #tpu.pipeline_mode<synchronous>, transform_indices = @transform_4, window_bounds = array<i64: 18, 512>}]} {
    %c0 = arith.constant 0 : index
    %c0_0 = arith.constant 0 : index
    %0 = vector.load %arg1[%c0, %c0_0] : memref<18x324xf32, #tpu.memory_space<vmem>>, vector<18x324xf32>
    %c0_1 = arith.constant 0 : index
    %c0_2 = arith.constant 0 : index
    %1 = vector.load %arg2[%c0_1, %c0_2] : memref<324x512xf32, #tpu.memory_space<vmem>>, vector<324x512xf32>
    %cst = arith.constant dense<0.000000e+00> : vector<18x512xf32>
    %2 = tpu.matmul %0, %1, %cst {dimension_numbers = #tpu.dot_dimension_numbers<[1], [0], [0], [1], [0, 0, 1, 1], [], []>} : vector<18x324xf32>, vector<324x512xf32>, vector<18x512xf32> -> vector<18x512xf32>
    %c0_3 = arith.constant 0 : index
    %c0_4 = arith.constant 0 : index
    %3 = vector.load %arg3[%c0_3, %c0_4] : memref<18x1xf32, #tpu.memory_space<vmem>>, vector<18x1xf32>
    %4 = vector.broadcast %3 : vector<18x1xf32> to vector<18x512xf32>
    %5 = arith.addf %2, %4 : vector<18x512xf32>
    %c0_5 = arith.constant 0 : index
    %c0_6 = arith.constant 0 : index
    %6 = memref.load %arg4[%c0_5, %c0_6] : memref<1x1xf32, #tpu.memory_space<smem>>
    %cst_7 = arith.constant 0.000000e+00 : f32
    %7 = vector.broadcast %cst_7 : f32 to vector<18x512xf32>
    %8 = arith.cmpf oge, %5, %7 : vector<18x512xf32>
    %9 = vector.broadcast %6 : f32 to vector<18x512xf32>
    %10 = arith.mulf %9, %5 : vector<18x512xf32>
    %11 = arith.select %8, %5, %10 : vector<18x512xi1>, vector<18x512xf32>
    %c0_8 = arith.constant 0 : index
    %c0_9 = arith.constant 0 : index
    %12 = vector.load %arg5[%c0_8, %c0_9] : memref<18x512xf32, #tpu.memory_space<vmem>>, vector<18x512xf32>
    tpu.vector_store %arg5[%c0_8, %c0_9], %11 {strides = array<i32>} : memref<18x512xf32, #tpu.memory_space<vmem>>, vector<18x512xf32>,
    return
  }
  func.func @transform_0(%arg0: i32) -> (i32, i32) {
    %c0_i32 = arith.constant 0 : i32
    %c0_i32_0 = arith.constant 0 : i32
    %c0_i32_1 = arith.constant 0 : i32
    return %c0_i32, %c0_i32_0 : i32, i32
  }
  func.func @transform_1(%arg0: i32) -> (i32, i32) {
    %c0_i32 = arith.constant 0 : i32
    %c0_i32_0 = arith.constant 0 : i32
    %c0_i32_1 = arith.constant 0 : i32
    return %c0_i32, %c0_i32_0 : i32, i32
  }
  func.func @transform_2(%arg0: i32) -> (i32, i32) {
    %c0_i32 = arith.constant 0 : i32
    %c0_i32_0 = arith.constant 0 : i32
    %c0_i32_1 = arith.constant 0 : i32
    return %c0_i32, %c0_i32_0 : i32, i32
  }
  func.func @transform_3(%arg0: i32) -> (i32, i32) {
    %c0_i32 = arith.constant 0 : i32
    %c0_i32_0 = arith.constant 0 : i32
    %c0_i32_1 = arith.constant 0 : i32
    return %c0_i32, %c0_i32_0 : i32, i32
  }
  func.func @transform_4(%arg0: i32) -> (i32, i32) {
    %c0_i32 = arith.constant 0 : i32
    %c0_i32_0 = arith.constant 0 : i32
    %c0_i32_1 = arith.constant 0 : i32
    return %c0_i32, %c0_i32_0 : i32, i32
  }
}

module attributes {stable_mosaic.version = 11 : i64} {
  func.func @_attention_kernel(%arg0: i32, %arg1: memref<18x16x16xf32, #tpu.memory_space<vmem>>, %arg2: memref<18x16x16xf32, #tpu.memory_space<vmem>>, %arg3: memref<18x16x16xf32, #tpu.memory_space<vmem>>, %arg4: memref<1x1xf32, #tpu.memory_space<smem>>, %arg5: memref<18x16x16xf32, #tpu.memory_space<vmem>>) attributes {dimension_semantics = [#tpu.dimension_semantics<arbitrary>], iteration_bounds = array<i64: 1>, scalar_prefetch = 0 : i64, scratch_operands = 0 : i64, tpu.core_type = #tpu.core_type<tc>, window_params = [{pipeline_mode = #tpu.pipeline_mode<synchronous>, transform_indices = @transform_0, window_bounds = array<i64: 18, 16, 16>}, {pipeline_mode = #tpu.pipeline_mode<synchronous>, transform_indices = @transform_1, window_bounds = array<i64: 18, 16, 16>}, {pipeline_mode = #tpu.pipeline_mode<synchronous>, transform_indices = @transform_2, window_bounds = array<i64: 18, 16, 16>}, {transform_indices = @transform_3, window_bounds = array<i64: 1, 1>}, {pipeline_mode = #tpu.pipeline_mode<synchronous>, transform_indices = @transform_4, window_bounds = array<i64: 18, 16, 16>}]} {
    %c0 = arith.constant 0 : index
    %c0_0 = arith.constant 0 : index
    %0 = memref.load %arg4[%c0, %c0_0] : memref<1x1xf32, #tpu.memory_space<smem>>
    %c0_1 = arith.constant 0 : index
    %c0_2 = arith.constant 0 : index
    %c0_3 = arith.constant 0 : index
    %1 = vector.load %arg1[%c0_1, %c0_2, %c0_3] : memref<18x16x16xf32, #tpu.memory_space<vmem>>, vector<18x16x16xf32>
    %cst = arith.constant 0.000000e+00 : f32
    %2 = vector.broadcast %cst : f32 to vector<18x16x16xf32>
    %3 = arith.cmpf oge, %1, %2 : vector<18x16x16xf32>
    %4 = vector.broadcast %0 : f32 to vector<18x16x16xf32>
    %5 = arith.mulf %4, %1 : vector<18x16x16xf32>
    %6 = arith.select %3, %1, %5 : vector<18x16x16xi1>, vector<18x16x16xf32>
    %c0_4 = arith.constant 0 : index
    %c0_5 = arith.constant 0 : index
    %c0_6 = arith.constant 0 : index
    %7 = vector.load %arg2[%c0_4, %c0_5, %c0_6] : memref<18x16x16xf32, #tpu.memory_space<vmem>>, vector<18x16x16xf32>
    "tpu.trace_start"() <{level = 10 : i32, message = "nij,nkj->nik"}> : () -> ()
    %cst_7 = arith.constant dense<0.000000e+00> : vector<18x16x16xf32>
    %8 = tpu.matmul %6, %7, %cst_7 {dimension_numbers = #tpu.dot_dimension_numbers<[2], [2], [1], [1], [0, 0, 0, 1, 1, 1], [0], [0]>} : vector<18x16x16xf32>, vector<18x16x16xf32>, vector<18x16x16xf32> -> vector<18x16x16xf32>
    "tpu.trace_stop"() : () -> ()
    %c0_8 = arith.constant 0 : index
    %c0_9 = arith.constant 0 : index
    %c0_10 = arith.constant 0 : index
    %9 = vector.load %arg3[%c0_8, %c0_9, %c0_10] : memref<18x16x16xf32, #tpu.memory_space<vmem>>, vector<18x16x16xf32>
    "tpu.trace_start"() <{level = 10 : i32, message = "nik,nkl->nil"}> : () -> ()
    %cst_11 = arith.constant dense<0.000000e+00> : vector<18x16x16xf32>
    %10 = tpu.matmul %8, %9, %cst_11 {dimension_numbers = #tpu.dot_dimension_numbers<[2], [1], [1], [2], [0, 0, 0, 1, 1, 2], [0], [0]>} : vector<18x16x16xf32>, vector<18x16x16xf32>, vector<18x16x16xf32> -> vector<18x16x16xf32>
    "tpu.trace_stop"() : () -> ()
    %c0_12 = arith.constant 0 : index
    %c0_13 = arith.constant 0 : index
    %c0_14 = arith.constant 0 : index
    %11 = vector.load %arg5[%c0_12, %c0_13, %c0_14] : memref<18x16x16xf32, #tpu.memory_space<vmem>>, vector<18x16x16xf32>
    tpu.vector_store %arg5[%c0_12, %c0_13, %c0_14], %10 {strides = array<i32>} : memref<18x16x16xf32, #tpu.memory_space<vmem>>, vector<18x16x16xf32>,
    return
  }
  func.func @transform_0(%arg0: i32) -> (i32, i32, i32) {
    %c0_i32 = arith.constant 0 : i32
    %c0_i32_0 = arith.constant 0 : i32
    %c0_i32_1 = arith.constant 0 : i32
    %c0_i32_2 = arith.constant 0 : i32
    return %c0_i32, %c0_i32_0, %c0_i32_1 : i32, i32, i32
  }
  func.func @transform_1(%arg0: i32) -> (i32, i32, i32) {
    %c0_i32 = arith.constant 0 : i32
    %c0_i32_0 = arith.constant 0 : i32
    %c0_i32_1 = arith.constant 0 : i32
    %c0_i32_2 = arith.constant 0 : i32
    return %c0_i32, %c0_i32_0, %c0_i32_1 : i32, i32, i32
  }
  func.func @transform_2(%arg0: i32) -> (i32, i32, i32) {
    %c0_i32 = arith.constant 0 : i32
    %c0_i32_0 = arith.constant 0 : i32
    %c0_i32_1 = arith.constant 0 : i32
    %c0_i32_2 = arith.constant 0 : i32
    return %c0_i32, %c0_i32_0, %c0_i32_1 : i32, i32, i32
  }
  func.func @transform_3(%arg0: i32) -> (i32, i32) {
    %c0_i32 = arith.constant 0 : i32
    %c0_i32_0 = arith.constant 0 : i32
    %c0_i32_1 = arith.constant 0 : i32
    return %c0_i32, %c0_i32_0 : i32, i32
  }
  func.func @transform_4(%arg0: i32) -> (i32, i32, i32) {
    %c0_i32 = arith.constant 0 : i32
    %c0_i32_0 = arith.constant 0 : i32
    %c0_i32_1 = arith.constant 0 : i32
    %c0_i32_2 = arith.constant 0 : i32
    return %c0_i32, %c0_i32_0, %c0_i32_1 : i32, i32, i32
  }
}

module attributes {stable_mosaic.version = 11 : i64} {
  func.func @_gemm_bias_act_kernel(%arg0: i32, %arg1: memref<3x81xf32, #tpu.memory_space<vmem>>, %arg2: memref<81x512xf32, #tpu.memory_space<vmem>>, %arg3: memref<3x1xf32, #tpu.memory_space<vmem>>, %arg4: memref<1x1xf32, #tpu.memory_space<smem>>, %arg5: memref<3x512xf32, #tpu.memory_space<vmem>>) attributes {dimension_semantics = [#tpu.dimension_semantics<arbitrary>], iteration_bounds = array<i64: 1>, scalar_prefetch = 0 : i64, scratch_operands = 0 : i64, tpu.core_type = #tpu.core_type<tc>, window_params = [{pipeline_mode = #tpu.pipeline_mode<synchronous>, transform_indices = @transform_0, window_bounds = array<i64: 3, 81>}, {pipeline_mode = #tpu.pipeline_mode<synchronous>, transform_indices = @transform_1, window_bounds = array<i64: 81, 512>}, {pipeline_mode = #tpu.pipeline_mode<synchronous>, transform_indices = @transform_2, window_bounds = array<i64: 3, 1>}, {transform_indices = @transform_3, window_bounds = array<i64: 1, 1>}, {pipeline_mode = #tpu.pipeline_mode<synchronous>, transform_indices = @transform_4, window_bounds = array<i64: 3, 512>}]} {
    %c0 = arith.constant 0 : index
    %c0_0 = arith.constant 0 : index
    %0 = vector.load %arg1[%c0, %c0_0] : memref<3x81xf32, #tpu.memory_space<vmem>>, vector<3x81xf32>
    %c0_1 = arith.constant 0 : index
    %c0_2 = arith.constant 0 : index
    %1 = vector.load %arg2[%c0_1, %c0_2] : memref<81x512xf32, #tpu.memory_space<vmem>>, vector<81x512xf32>
    %cst = arith.constant dense<0.000000e+00> : vector<3x512xf32>
    %2 = tpu.matmul %0, %1, %cst {dimension_numbers = #tpu.dot_dimension_numbers<[1], [0], [0], [1], [0, 0, 1, 1], [], []>} : vector<3x81xf32>, vector<81x512xf32>, vector<3x512xf32> -> vector<3x512xf32>
    %c0_3 = arith.constant 0 : index
    %c0_4 = arith.constant 0 : index
    %3 = vector.load %arg3[%c0_3, %c0_4] : memref<3x1xf32, #tpu.memory_space<vmem>>, vector<3x1xf32>
    %4 = vector.broadcast %3 : vector<3x1xf32> to vector<3x512xf32>
    %5 = arith.addf %2, %4 : vector<3x512xf32>
    %c0_5 = arith.constant 0 : index
    %c0_6 = arith.constant 0 : index
    %6 = memref.load %arg4[%c0_5, %c0_6] : memref<1x1xf32, #tpu.memory_space<smem>>
    %cst_7 = arith.constant 0.000000e+00 : f32
    %7 = vector.broadcast %cst_7 : f32 to vector<3x512xf32>
    %8 = arith.cmpf oge, %5, %7 : vector<3x512xf32>
    %9 = vector.broadcast %6 : f32 to vector<3x512xf32>
    %10 = arith.mulf %9, %5 : vector<3x512xf32>
    %11 = arith.select %8, %5, %10 : vector<3x512xi1>, vector<3x512xf32>
    %c0_8 = arith.constant 0 : index
    %c0_9 = arith.constant 0 : index
    %12 = vector.load %arg5[%c0_8, %c0_9] : memref<3x512xf32, #tpu.memory_space<vmem>>, vector<3x512xf32>
    tpu.vector_store %arg5[%c0_8, %c0_9], %11 {strides = array<i32>} : memref<3x512xf32, #tpu.memory_space<vmem>>, vector<3x512xf32>,
    return
  }
  func.func @transform_0(%arg0: i32) -> (i32, i32) {
    %c0_i32 = arith.constant 0 : i32
    %c0_i32_0 = arith.constant 0 : i32
    %c0_i32_1 = arith.constant 0 : i32
    return %c0_i32, %c0_i32_0 : i32, i32
  }
  func.func @transform_1(%arg0: i32) -> (i32, i32) {
    %c0_i32 = arith.constant 0 : i32
    %c0_i32_0 = arith.constant 0 : i32
    %c0_i32_1 = arith.constant 0 : i32
    return %c0_i32, %c0_i32_0 : i32, i32
  }
  func.func @transform_2(%arg0: i32) -> (i32, i32) {
    %c0_i32 = arith.constant 0 : i32
    %c0_i32_0 = arith.constant 0 : i32
    %c0_i32_1 = arith.constant 0 : i32
    return %c0_i32, %c0_i32_0 : i32, i32
  }
  func.func @transform_3(%arg0: i32) -> (i32, i32) {
    %c0_i32 = arith.constant 0 : i32
    %c0_i32_0 = arith.constant 0 : i32
    %c0_i32_1 = arith.constant 0 : i32
    return %c0_i32, %c0_i32_0 : i32, i32
  }
  func.func @transform_4(%arg0: i32) -> (i32, i32) {
    %c0_i32 = arith.constant 0 : i32
    %c0_i32_0 = arith.constant 0 : i32
    %c0_i32_1 = arith.constant 0 : i32
    return %c0_i32, %c0_i32_0 : i32, i32
  }
}

</mosaic_0001>

<llo_original>
// kernel: lp_attention_forward.6
$region0: #{lp_attention_forward.6}
  #allocation0 [shape = 'u32[]', space=smem, size = 0x4, offset = 0x4, fixed_abs, tag = 'smem constant byte address 0x4 - core index']
  #allocation1 [shape = 'u32[144,128]{1,0:T(1,128)}', space=vmem, size = 0x12000, scoped, tag = 'internal scratch']
  #allocation2 [shape = 'f32[1,1]{1,0:T(1,128)S(6)}', space=smem, size = 0x200, scoped, tag = 'scoped memory for lp_attention_forward.6']
  %s0 = inlined_call_operand.vmem [shape: f32[6,256], index: 0, kind: input, shape index: {}]
  %s1 = inlined_call_operand.hbm [shape: f32[256,336], index: 1, kind: input, shape index: {}]
  %s2 = inlined_call_operand.vmem [shape: f32[6,1], index: 2, kind: input, shape index: {}]
  %s3 = inlined_call_operand.<no memory space> [shape: f32[1,1], index: 3, kind: input, shape index: {}]
  %s4 = inlined_call_operand.vmem [shape: f32[6,336], index: 4, kind: output, shape index: {}]
  %s5 = sld [smem:[#allocation0]]
  $region30: #{lp_attention_forward.6} parent=0
    _
  %s7 = ssub.s32 1, %s5
  %s8 = scalar_select 0, %s7, %s5
  %9 = sst [smem:[#allocation2]] %s3
  $region1: #{lp_attention_forward.6} parent=0
    #allocation3 [shape = 'u8[393216]{0}', space=vmem, size = 0x60000, scoped, tag = 'input window, operand 1, single buffered']
    #allocation4 [shape = 's32[1]{0}', space=sflag, size = 0x4, scoped, tag = 'scoped memory for lp_attention_forward.6']
    %10 = vsyncpa [#allocation4], 0
    // Predicated region
    $region2: #{lp_attention_forward.6} parent=1 // pred_check
      _
    $region3: #{lp_attention_forward.6} parent=1 // pred_check_branch
      %12 = sbr.rel (0) target = $region5
    $region4: #{lp_attention_forward.6} parent=1 // pred_region
      _
    $region5: #{lp_attention_forward.6} parent=1 // pred_fallthru
      _
    // Predicated region
    $region6: #{lp_attention_forward.6} parent=1 // pred_check
      _
    $region7: #{lp_attention_forward.6} parent=1 // pred_check_branch
      %14 = sbr.rel (0) target = $region9
    $region8: #{lp_attention_forward.6} parent=1 // pred_region
      %s16 = ssub.s32 12288, 12288
      %17 = vsyncadd [#allocation4], %s16
      %s18 = sshll.u32 [#allocation3], 4
      %s19 = int_to_ptr.vmem [resolvable:$true] %s18
      %24 = dma.hbm_to_vmem [thread:$0]  %s1, 12288, %s19, [#allocation4], 384, 384, 24
    $region9: #{lp_attention_forward.6} parent=1 // pred_fallthru
      _
    // Predicated region
    $region10: #{lp_attention_forward.6} parent=1 // pred_check
      _
    $region11: #{lp_attention_forward.6} parent=1 // pred_check_branch
      %26 = sbr.rel (0) target = $region13
    $region12: #{lp_attention_forward.6} parent=1 // pred_region
      _
    $region13: #{lp_attention_forward.6} parent=1 // pred_fallthru
      _
    // Predicated region
    $region14: #{lp_attention_forward.6} parent=1 // pred_check
      _
    $region15: #{lp_attention_forward.6} parent=1 // pred_check_branch
      %28 = sbr.rel (0) target = $region17
    $region16: #{lp_attention_forward.6} parent=1 // pred_region
      _
    $region17: #{lp_attention_forward.6} parent=1 // pred_fallthru
      _
    // Predicated region
    $region18: #{lp_attention_forward.6} parent=1 // pred_check
      _
    $region19: #{lp_attention_forward.6} parent=1 // pred_check_branch
      %30 = sbr.rel (0) target = $region21
    $region20: #{lp_attention_forward.6} parent=1 // pred_region
      %31 = dma.done [#allocation4], 12288
    $region21: #{lp_attention_forward.6} parent=1 // pred_fallthru
      _
    %v32 = vld [vmem:[%s0] sm:$0x3f]
    %v33 = vld [vmem:[%s0 + $0x8] sm:$0x3f]
    %v34 = vld [vmem:[#allocation3] sm:$0xff]
    %v35 = vld [vmem:[#allocation3 + $0x8] sm:$0xff]
    %v36 = vld [vmem:[#allocation3 + $0x10] sm:$0xff]
    %v37 = vld [vmem:[#allocation3 + $0x18] sm:$0xff]
    %v38 = vld [vmem:[#allocation3 + $0x20] sm:$0xff]
    %v39 = vld [vmem:[#allocation3 + $0x28] sm:$0xff]
    %v40 = vld [vmem:[#allocation3 + $0x30] sm:$0xff]
    %v41 = vld [vmem:[#allocation3 + $0x38] sm:$0xff]
    %v42 = vld [vmem:[#allocation3 + $0x40] sm:$0xff]
    %v43 = vld [vmem:[#allocation3 + $0x48] sm:$0xff]
    %v44 = vld [vmem:[#allocation3 + $0x50] sm:$0xff]
    %v45 = vld [vmem:[#allocation3 + $0x58] sm:$0xff]
    %v46 = vld [vmem:[#allocation3 + $0x60] sm:$0xff]
    %v47 = vld [vmem:[#allocation3 + $0x68] sm:$0xff]
    %v48 = vld [vmem:[#allocation3 + $0x70] sm:$0xff]
    %v49 = vld [vmem:[#allocation3 + $0x78] sm:$0xff]
    %v50 = vld [vmem:[#allocation3 + $0x80] sm:$0xff]
    %v51 = vld [vmem:[#allocation3 + $0x88] sm:$0xff]
    %v52 = vld [vmem:[#allocation3 + $0x90] sm:$0xff]
    %v53 = vld [vmem:[#allocation3 + $0x98] sm:$0xff]
    %v54 = vld [vmem:[#allocation3 + $0xa0] sm:$0xff]
    %v55 = vld [vmem:[#allocation3 + $0xa8] sm:$0xff]
    %v56 = vld [vmem:[#allocation3 + $0xb0] sm:$0xff]
    %v57 = vld [vmem:[#allocation3 + $0xb8] sm:$0xff]
    %v58 = vld [vmem:[#allocation3 + $0xc0] sm:$0xff]
    %v59 = vld [vmem:[#allocation3 + $0xc8] sm:$0xff]
    %v60 = vld [vmem:[#allocation3 + $0xd0] sm:$0xff]
    %v61 = vld [vmem:[#allocation3 + $0xd8] sm:$0xff]
    %v62 = vld [vmem:[#allocation3 + $0xe0] sm:$0xff]
    %v63 = vld [vmem:[#allocation3 + $0xe8] sm:$0xff]
    %v64 = vld [vmem:[#allocation3 + $0xf0] sm:$0xff]
    %v65 = vld [vmem:[#allocation3 + $0xf8] sm:$0xff]
    %v66 = vld [vmem:[#allocation3 + $0x100] sm:$0xff]
    %v67 = vld [vmem:[#allocation3 + $0x108] sm:$0xff]
    %v68 = vld [vmem:[#allocation3 + $0x110] sm:$0xff]
    %v69 = vld [vmem:[#allocation3 + $0x118] sm:$0xff]
    %v70 = vld [vmem:[#allocation3 + $0x120] sm:$0xff]
    %v71 = vld [vmem:[#allocation3 + $0x128] sm:$0xff]
    %v72 = vld [vmem:[#allocation3 + $0x130] sm:$0xff]
    %v73 = vld [vmem:[#allocation3 + $0x138] sm:$0xff]
    %v74 = vld [vmem:[#allocation3 + $0x140] sm:$0xff]
    %v75 = vld [vmem:[#allocation3 + $0x148] sm:$0xff]
    %v76 = vld [vmem:[#allocation3 + $0x150] sm:$0xff]
    %v77 = vld [vmem:[#allocation3 + $0x158] sm:$0xff]
    %v78 = vld [vmem:[#allocation3 + $0x160] sm:$0xff]
    %v79 = vld [vmem:[#allocation3 + $0x168] sm:$0xff]
    %v80 = vld [vmem:[#allocation3 + $0x170] sm:$0xff]
    %v81 = vld [vmem:[#allocation3 + $0x178] sm:$0xff]
    %v82 = vld [vmem:[#allocation3 + $0x180] sm:$0xff]
    %v83 = vld [vmem:[#allocation3 + $0x188] sm:$0xff]
    %v84 = vld [vmem:[#allocation3 + $0x190] sm:$0xff]
    %v85 = vld [vmem:[#allocation3 + $0x198] sm:$0xff]
    %v86 = vld [vmem:[#allocation3 + $0x1a0] sm:$0xff]
    %v87 = vld [vmem:[#allocation3 + $0x1a8] sm:$0xff]
    %v88 = vld [vmem:[#allocation3 + $0x1b0] sm:$0xff]
    %v89 = vld [vmem:[#allocation3 + $0x1b8] sm:$0xff]
    %v90 = vld [vmem:[#allocation3 + $0x1c0] sm:$0xff]
    %v91 = vld [vmem:[#allocation3 + $0x1c8] sm:$0xff]
    %v92 = vld [vmem:[#allocation3 + $0x1d0] sm:$0xff]
    %v93 = vld [vmem:[#allocation3 + $0x1d8] sm:$0xff]
    %v94 = vld [vmem:[#allocation3 + $0x1e0] sm:$0xff]
    %v95 = vld [vmem:[#allocation3 + $0x1e8] sm:$0xff]
    %v96 = vld [vmem:[#allocation3 + $0x1f0] sm:$0xff]
    %v97 = vld [vmem:[#allocation3 + $0x1f8] sm:$0xff]
    %v98 = vld [vmem:[#allocation3 + $0x200] sm:$0xff]
    %v99 = vld [vmem:[#allocation3 + $0x208] sm:$0xff]
    %v100 = vld [vmem:[#allocation3 + $0x210] sm:$0xff]
    %v101 = vld [vmem:[#allocation3 + $0x218] sm:$0xff]
    %v102 = vld [vmem:[#allocation3 + $0x220] sm:$0xff]
    %v103 = vld [vmem:[#allocation3 + $0x228] sm:$0xff]
    %v104 = vld [vmem:[#allocation3 + $0x230] sm:$0xff]
    %v105 = vld [vmem:[#allocation3 + $0x238] sm:$0xff]
    %v106 = vld [vmem:[#allocation3 + $0x240] sm:$0xff]
    %v107 = vld [vmem:[#allocation3 + $0x248] sm:$0xff]
    %v108 = vld [vmem:[#allocation3 + $0x250] sm:$0xff]
    %v109 = vld [vmem:[#allocation3 + $0x258] sm:$0xff]
    %v110 = vld [vmem:[#allocation3 + $0x260] sm:$0xff]
    %v111 = vld [vmem:[#allocation3 + $0x268] sm:$0xff]
    %v112 = vld [vmem:[#allocation3 + $0x270] sm:$0xff]
    %v113 = vld [vmem:[#allocation3 + $0x278] sm:$0xff]
    %v114 = vld [vmem:[#allocation3 + $0x280] sm:$0xff]
    %v115 = vld [vmem:[#allocation3 + $0x288] sm:$0xff]
    %v116 = vld [vmem:[#allocation3 + $0x290] sm:$0xff]
    %v117 = vld [vmem:[#allocation3 + $0x298] sm:$0xff]
    %v118 = vld [vmem:[#allocation3 + $0x2a0] sm:$0xff]
    %v119 = vld [vmem:[#allocation3 + $0x2a8] sm:$0xff]
    %v120 = vld [vmem:[#allocation3 + $0x2b0] sm:$0xff]
    %v121 = vld [vmem:[#allocation3 + $0x2b8] sm:$0xff]
    %v122 = vld [vmem:[#allocation3 + $0x2c0] sm:$0xff]
    %v123 = vld [vmem:[#allocation3 + $0x2c8] sm:$0xff]
    %v124 = vld [vmem:[#allocation3 + $0x2d0] sm:$0xff]
    %v125 = vld [vmem:[#allocation3 + $0x2d8] sm:$0xff]
    %v126 = vld [vmem:[#allocation3 + $0x2e0] sm:$0xff]
    %v127 = vld [vmem:[#allocation3 + $0x2e8] sm:$0xff]
    %v128 = vld [vmem:[#allocation3 + $0x2f0] sm:$0xff]
    %v129 = vld [vmem:[#allocation3 + $0x2f8] sm:$0xff]
    %v130 = vld [vmem:[%s2] sm:$0x3f]
    %132 = vset.pattern.permute.xlu0 0
    %133 = vperm.xlu0 %132, %v130
    %v134 = vpop.permute.xlu0 %133
    %136 = vmatprep.subr.mxu0 %v35
    %137 = vmatpush1.msra.mxu0 %v34
    %138 = vmatprep.subr.mxu0 %v38
    %139 = vmatpush1.msra.mxu0 %v37
    %140 = vmatprep.subr.mxu0 %v41
    %141 = vmatpush1.msra.mxu0 %v40
    %142 = vmatprep.subr.mxu0 %v44
    %143 = vmatpush1.msra.mxu0 %v43
    %144 = vmatprep.subr.mxu0 %v47
    %145 = vmatpush1.msra.mxu0 %v46
    %146 = vmatprep.subr.mxu0 %v50
    %147 = vmatpush1.msra.mxu0 %v49
    %148 = vmatprep.subr.mxu0 %v53
    %149 = vmatpush1.msra.mxu0 %v52
    %150 = vmatprep.subr.mxu0 %v56
    %151 = vmatpush1.msra.mxu0 %v55
    %152 = vmatprep.subr.mxu0 %v59
    %153 = vmatpush1.msra.mxu0 %v58
    %154 = vmatprep.subr.mxu0 %v62
    %155 = vmatpush1.msra.mxu0 %v61
    %156 = vmatprep.subr.mxu0 %v65
    %157 = vmatpush1.msra.mxu0 %v64
    %158 = vmatprep.subr.mxu0 %v68
    %159 = vmatpush1.msra.mxu0 %v67
    %160 = vmatprep.subr.mxu0 %v71
    %161 = vmatpush1.msra.mxu0 %v70
    %162 = vmatprep.subr.mxu0 %v74
    %163 = vmatpush1.msra.mxu0 %v73
    %164 = vmatprep.subr.mxu0 %v77
    %165 = vmatpush1.msra.mxu0 %v76
    %166 = vmatprep.subr.mxu0 %v80
    %167 = vmatpush1.msra.mxu0 %v79
    %168 = vmatprep.subr.mxu0 %v83
    %169 = vmatpush1.msra.mxu0 %v82
    %170 = vmatprep.subr.mxu0 %v86
    %171 = vmatpush1.msra.mxu0 %v85
    %172 = vmatprep.subr.mxu0 %v89
    %173 = vmatpush1.msra.mxu0 %v88
    %174 = vmatprep.subr.mxu0 %v92
    %175 = vmatpush1.msra.mxu0 %v91
    %176 = vmatprep.subr.mxu0 %v95
    %177 = vmatpush1.msra.mxu0 %v94
    %178 = vmatprep.subr.mxu0 %v98
    %179 = vmatpush1.msra.mxu0 %v97
    %180 = vmatprep.subr.mxu0 %v101
    %181 = vmatpush1.msra.mxu0 %v100
    %182 = vmatprep.subr.mxu0 %v104
    %183 = vmatpush1.msra.mxu0 %v103
    %184 = vmatprep.subr.mxu0 %v107
    %185 = vmatpush1.msra.mxu0 %v106
    %186 = vmatprep.subr.mxu0 %v110
    %187 = vmatpush1.msra.mxu0 %v109
    %188 = vmatprep.subr.mxu0 %v113
    %189 = vmatpush1.msra.mxu0 %v112
    %190 = vmatprep.subr.mxu0 %v116
    %191 = vmatpush1.msra.mxu0 %v115
    %192 = vmatprep.subr.mxu0 %v119
    %193 = vmatpush1.msra.mxu0 %v118
    %194 = vmatprep.subr.mxu0 %v122
    %195 = vmatpush1.msra.mxu0 %v121
    %196 = vmatprep.subr.mxu0 %v125
    %197 = vmatpush1.msra.mxu0 %v124
    %198 = vmatprep.subr.mxu0 %v128
    %199 = vmatpush1.msra.mxu0 %v127
    %200 = vmatprep.mubr.f32.mxu0 %v33
    %201 = vmatmul.mubr.f32.gmra.mrb[0].mxu0 %v32
    %v202 = vpop.f32.mrb[0].mxu0
    %v203 = vadd.f32 %v134, %v202
    %v204 = vpop.f32.mrb[0].mxu0
    %v205 = vadd.f32 %v134, %v204
    %206 = vdwg.mxu0
    %207 = vmatprep.subr.mxu0 0.0
    %208 = vmatpush1.msra.mxu0 %v36
    %209 = vmatprep.subr.mxu0 0.0
    %210 = vmatpush1.msra.mxu0 %v39
    %211 = vmatprep.subr.mxu0 0.0
    %212 = vmatpush1.msra.mxu0 %v42
    %213 = vmatprep.subr.mxu0 0.0
    %214 = vmatpush1.msra.mxu0 %v45
    %215 = vmatprep.subr.mxu0 0.0
    %216 = vmatpush1.msra.mxu0 %v48
    %217 = vmatprep.subr.mxu0 0.0
    %218 = vmatpush1.msra.mxu0 %v51
    %219 = vmatprep.subr.mxu0 0.0
    %220 = vmatpush1.msra.mxu0 %v54
    %221 = vmatprep.subr.mxu0 0.0
    %222 = vmatpush1.msra.mxu0 %v57
    %223 = vmatprep.subr.mxu0 0.0
    %224 = vmatpush1.msra.mxu0 %v60
    %225 = vmatprep.subr.mxu0 0.0
    %226 = vmatpush1.msra.mxu0 %v63
    %227 = vmatprep.subr.mxu0 0.0
    %228 = vmatpush1.msra.mxu0 %v66
    %229 = vmatprep.subr.mxu0 0.0
    %230 = vmatpush1.msra.mxu0 %v69
    %231 = vmatprep.subr.mxu0 0.0
    %232 = vmatpush1.msra.mxu0 %v72
    %233 = vmatprep.subr.mxu0 0.0
    %234 = vmatpush1.msra.mxu0 %v75
    %235 = vmatprep.subr.mxu0 0.0
    %236 = vmatpush1.msra.mxu0 %v78
    %237 = vmatprep.subr.mxu0 0.0
    %238 = vmatpush1.msra.mxu0 %v81
    %239 = vmatprep.subr.mxu0 0.0
    %240 = vmatpush1.msra.mxu0 %v84
    %241 = vmatprep.subr.mxu0 0.0
    %242 = vmatpush1.msra.mxu0 %v87
    %243 = vmatprep.subr.mxu0 0.0
    %244 = vmatpush1.msra.mxu0 %v90
    %245 = vmatprep.subr.mxu0 0.0
    %246 = vmatpush1.msra.mxu0 %v93
    %247 = vmatprep.subr.mxu0 0.0
    %248 = vmatpush1.msra.mxu0 %v96
    %249 = vmatprep.subr.mxu0 0.0
    %250 = vmatpush1.msra.mxu0 %v99
    %251 = vmatprep.subr.mxu0 0.0
    %252 = vmatpush1.msra.mxu0 %v102
    %253 = vmatprep.subr.mxu0 0.0
    %254 = vmatpush1.msra.mxu0 %v105
    %255 = vmatprep.subr.mxu0 0.0
    %256 = vmatpush1.msra.mxu0 %v108
    %257 = vmatprep.subr.mxu0 0.0
    %258 = vmatpush1.msra.mxu0 %v111
    %259 = vmatprep.subr.mxu0 0.0
    %260 = vmatpush1.msra.mxu0 %v114
    %261 = vmatprep.subr.mxu0 0.0
    %262 = vmatpush1.msra.mxu0 %v117
    %263 = vmatprep.subr.mxu0 0.0
    %264 = vmatpush1.msra.mxu0 %v120
    %265 = vmatprep.subr.mxu0 0.0
    %266 = vmatpush1.msra.mxu0 %v123
    %267 = vmatprep.subr.mxu0 0.0
    %268 = vmatpush1.msra.mxu0 %v126
    %269 = vmatprep.subr.mxu0 0.0
    %270 = vmatpush1.msra.mxu0 %v129
    %271 = vmatprep.mubr.f32.mxu0 %v33
    %272 = vmatmul.mubr.f32.gmra.mrb[0].mxu0 %v32
    %v273 = vpop.f32.mrb[0].mxu0
    %v274 = vadd.f32 %v134, %v273
    %v275 = vpop.f32.mrb[0].mxu0
    %276 = vdwg.mxu0
    %277 = vst [vmem:[%s4] sm:$0x3f] %v203
    %278 = vst [vmem:[%s4 + $0x8] sm:$0x3f] %v205
    %vm279 = vcmask 652288
    %280 = vst.msk [vmem:[%s4 + $0x10] sm:$0x3f] %vm279, %v274
    // Predicated region
    $region22: #{lp_attention_forward.6} parent=1 // pred_check
      _
    $region23: #{lp_attention_forward.6} parent=1 // pred_check_branch
      %282 = sbr.rel (0) target = $region25
    $region24: #{lp_attention_forward.6} parent=1 // pred_region
      _
    $region25: #{lp_attention_forward.6} parent=1 // pred_fallthru
      _
    // Predicated region
    $region26: #{lp_attention_forward.6} parent=1 // pred_check
      _
    $region27: #{lp_attention_forward.6} parent=1 // pred_check_branch
      %284 = sbr.rel (0) target = $region29
    $region28: #{lp_attention_forward.6} parent=1 // pred_region
      _
    $region29: #{lp_attention_forward.6} parent=1 // pred_fallthru
      _
    %285 = vsyncpa [#allocation4], 1

// kernel: mul.50
$region0: #{mul.50}
  %s0 = inlined_call_operand.vmem [shape: f32[9,3,3], index: 0, kind: input, shape index: {}]
  %s1 = inlined_call_operand.vmem [shape: f32[9,9], index: 1, kind: output, shape index: {}]
  $region1: #{mul.50} parent=0
    #allocation0 [shape = 'u8[12288]{0}', space=vmem, size = 0x3000, scoped, tag = 'scoped mem for input reshape']
    %s3 = sshllo.u32 0, 4
    %s4 = smul.addr 4, 2
    %s5 = scalar_lea.vmem %s0, %s4
    %v6 = vld [vmem:[%s5] sm:%s3]
    %s7 = scalar_lea.vmem [#allocation0], 16
    %8 = vst [vmem:[%s7] sm:%s3] %v6
    %s9 = scalar_lea.vmem %s0, 4
    %v10 = vld [vmem:[%s9] sm:%s3]
    %s11 = scalar_lea.vmem [#allocation0], 8
    %12 = vst [vmem:[%s11] sm:%s3] %v10
    %v13 = vld [vmem:[%s0] sm:%s3]
    %14 = vst [vmem:[#allocation0] sm:%s3] %v13
    %v15 = vld [vmem:[#allocation0] sm:$0x7]
    %vm16 = vcmask 72704
    %17 = vst.msk [vmem:[%s1] sm:$0x7] %vm16, %v15
    %s18 = scalar_lea.vmem [#allocation0], 8
    %v19 = vld [vmem:[%s18] sm:$0x7]
    %vm20 = vcmask 72704
    %s21 = scalar_lea.vmem %s1, 3
    %22 = vst.msk [vmem:[%s21] sm:$0x7] %vm20, %v19
    %s23 = scalar_lea.vmem [#allocation0], 16
    %v24 = vld [vmem:[%s23] sm:$0x7]
    %vm25 = vcmask 72704
    %s26 = scalar_lea.vmem %s1, 6
    %27 = vst.msk [vmem:[%s26] sm:$0x7] %vm25, %v24

// kernel: tile.54
$region0: #{tile.54}
  %s0 = inlined_call_operand.vmem [shape: f32[9,2,64], index: 0, kind: input, shape index: {}]
  %s1 = inlined_call_operand.vmem [shape: f32[9,128], index: 1, kind: output, shape index: {}]
  $region1: #{tile.54} parent=0
    #allocation0 [shape = 'u8[36864]{0}', space=vmem, size = 0x9000, scoped, tag = 'scoped mem for input reshape']
    %s3 = sshllo.u32 0, 2
    %s4 = smul.addr 2, 8
    %s5 = scalar_lea.vmem %s0, %s4
    %v6 = vld [vmem:[%s5] sm:%s3]
    %s7 = scalar_lea.vmem [#allocation0], 64
    %8 = vst [vmem:[%s7] sm:%s3] %v6
    %s9 = smul.addr 2, 7
    %s10 = scalar_lea.vmem %s0, %s9
    %v11 = vld [vmem:[%s10] sm:%s3]
    %s12 = scalar_lea.vmem [#allocation0], 56
    %13 = vst [vmem:[%s12] sm:%s3] %v11
    %s14 = smul.addr 2, 6
    %s15 = scalar_lea.vmem %s0, %s14
    %v16 = vld [vmem:[%s15] sm:%s3]
    %s17 = scalar_lea.vmem [#allocation0], 48
    %18 = vst [vmem:[%s17] sm:%s3] %v16
    %s19 = smul.addr 2, 5
    %s20 = scalar_lea.vmem %s0, %s19
    %v21 = vld [vmem:[%s20] sm:%s3]
    %s22 = scalar_lea.vmem [#allocation0], 40
    %23 = vst [vmem:[%s22] sm:%s3] %v21
    %s24 = smul.addr 2, 4
    %s25 = scalar_lea.vmem %s0, %s24
    %v26 = vld [vmem:[%s25] sm:%s3]
    %s27 = scalar_lea.vmem [#allocation0], 32
    %28 = vst [vmem:[%s27] sm:%s3] %v26
    %s29 = smul.addr 2, 3
    %s30 = scalar_lea.vmem %s0, %s29
    %v31 = vld [vmem:[%s30] sm:%s3]
    %s32 = scalar_lea.vmem [#allocation0], 24
    %33 = vst [vmem:[%s32] sm:%s3] %v31
    %s34 = smul.addr 2, 2
    %s35 = scalar_lea.vmem %s0, %s34
    %v36 = vld [vmem:[%s35] sm:%s3]
    %s37 = scalar_lea.vmem [#allocation0], 16
    %38 = vst [vmem:[%s37] sm:%s3] %v36
    %s39 = scalar_lea.vmem %s0, 2
    %v40 = vld [vmem:[%s39] sm:%s3]
    %s41 = scalar_lea.vmem [#allocation0], 8
    %42 = vst [vmem:[%s41] sm:%s3] %v40
    %v43 = vld [vmem:[%s0] sm:%s3]
    %44 = vst [vmem:[#allocation0] sm:%s3] %v43
    %v45 = vld [vmem:[#allocation0] ss:$8 sm:$0xf]
    %v46 = vld [vmem:[#allocation0] ss:$8 sm:$0xf0]
    %vm47 = vcmask 1047556
    %v48 = vsel %vm47, %v46, %v45
    %vm49 = vcmask 523264
    %50 = vst.msk [vmem:[%s1] sm:$0xff] %vm49, %v48
    %s51 = scalar_lea.vmem [#allocation0], 64
    %v52 = vld [vmem:[%s51] sm:$0x1]
    %vm53 = vcmask 523264
    %s54 = scalar_lea.vmem %s1, 8
    %55 = vst.msk [vmem:[%s54] sm:$0x1] %vm53, %v52
    %s56 = scalar_lea.vmem [#allocation0], 1
    %v57 = vld [vmem:[%s56] ss:$8 sm:$0xf]
    %s58 = scalar_lea.vmem [#allocation0], 1
    %v59 = vld [vmem:[%s58] ss:$8 sm:$0xf0]
    %vm60 = vcmask 1047556
    %v61 = vsel %vm60, %v59, %v57
    %62 = vrot.lane.b32.xlu0 %v61, 64
    %v63 = vpop.permute.xlu0 %62
    %vm64 = vcmask 1048064
    %65 = vst.msk [vmem:[%s1] sm:$0xff] %vm64, %v63
    %s66 = scalar_lea.vmem [#allocation0], 65
    %v67 = vld [vmem:[%s66] sm:$0x1]
    %68 = vrot.lane.b32.xlu0 %v67, 64
    %v69 = vpop.permute.xlu0 %68
    %vm70 = vcmask 1048064
    %s71 = scalar_lea.vmem %s1, 8
    %72 = vst.msk [vmem:[%s71] sm:$0x1] %vm70, %v69

// kernel: tile.49
$region0: #{tile.49}
  %s0 = inlined_call_operand.vmem [shape: f32[9,2,16], index: 0, kind: input, shape index: {}]
  %s1 = inlined_call_operand.vmem [shape: f32[9,32], index: 1, kind: output, shape index: {}]
  $region1: #{tile.49} parent=0
    #allocation0 [shape = 'u8[36864]{0}', space=vmem, size = 0x9000, scoped, tag = 'scoped mem for input reshape']
    %s3 = sshllo.u32 0, 2
    %s4 = smul.addr 2, 8
    %s5 = scalar_lea.vmem %s0, %s4
    %v6 = vld [vmem:[%s5] sm:%s3]
    %s7 = scalar_lea.vmem [#allocation0], 64
    %8 = vst [vmem:[%s7] sm:%s3] %v6
    %s9 = smul.addr 2, 7
    %s10 = scalar_lea.vmem %s0, %s9
    %v11 = vld [vmem:[%s10] sm:%s3]
    %s12 = scalar_lea.vmem [#allocation0], 56
    %13 = vst [vmem:[%s12] sm:%s3] %v11
    %s14 = smul.addr 2, 6
    %s15 = scalar_lea.vmem %s0, %s14
    %v16 = vld [vmem:[%s15] sm:%s3]
    %s17 = scalar_lea.vmem [#allocation0], 48
    %18 = vst [vmem:[%s17] sm:%s3] %v16
    %s19 = smul.addr 2, 5
    %s20 = scalar_lea.vmem %s0, %s19
    %v21 = vld [vmem:[%s20] sm:%s3]
    %s22 = scalar_lea.vmem [#allocation0], 40
    %23 = vst [vmem:[%s22] sm:%s3] %v21
    %s24 = smul.addr 2, 4
    %s25 = scalar_lea.vmem %s0, %s24
    %v26 = vld [vmem:[%s25] sm:%s3]
    %s27 = scalar_lea.vmem [#allocation0], 32
    %28 = vst [vmem:[%s27] sm:%s3] %v26
    %s29 = smul.addr 2, 3
    %s30 = scalar_lea.vmem %s0, %s29
    %v31 = vld [vmem:[%s30] sm:%s3]
    %s32 = scalar_lea.vmem [#allocation0], 24
    %33 = vst [vmem:[%s32] sm:%s3] %v31
    %s34 = smul.addr 2, 2
    %s35 = scalar_lea.vmem %s0, %s34
    %v36 = vld [vmem:[%s35] sm:%s3]
    %s37 = scalar_lea.vmem [#allocation0], 16
    %38 = vst [vmem:[%s37] sm:%s3] %v36
    %s39 = scalar_lea.vmem %s0, 2
    %v40 = vld [vmem:[%s39] sm:%s3]
    %s41 = scalar_lea.vmem [#allocation0], 8
    %42 = vst [vmem:[%s41] sm:%s3] %v40
    %v43 = vld [vmem:[%s0] sm:%s3]
    %44 = vst [vmem:[#allocation0] sm:%s3] %v43
    %v45 = vld [vmem:[#allocation0] ss:$8 sm:$0xf]
    %v46 = vld [vmem:[#allocation0] ss:$8 sm:$0xf0]
    %vm47 = vcmask 1047556
    %v48 = vsel %vm47, %v46, %v45
    %vm49 = vcmask 130048
    %50 = vst.msk [vmem:[%s1] sm:$0xff] %vm49, %v48
    %s51 = scalar_lea.vmem [#allocation0], 64
    %v52 = vld [vmem:[%s51] sm:$0x1]
    %vm53 = vcmask 130048
    %s54 = scalar_lea.vmem %s1, 8
    %55 = vst.msk [vmem:[%s54] sm:$0x1] %vm53, %v52
    %s56 = scalar_lea.vmem [#allocation0], 1
    %v57 = vld [vmem:[%s56] ss:$8 sm:$0xf]
    %s58 = scalar_lea.vmem [#allocation0], 1
    %v59 = vld [vmem:[%s58] ss:$8 sm:$0xf0]
    %vm60 = vcmask 1047556
    %v61 = vsel %vm60, %v59, %v57
    %62 = vrot.lane.b32.xlu0 %v61, 16
    %v63 = vpop.permute.xlu0 %62
    %vm64 = vcmask 261248
    %65 = vst.msk [vmem:[%s1] sm:$0xff] %vm64, %v63
    %s66 = scalar_lea.vmem [#allocation0], 65
    %v67 = vld [vmem:[%s66] sm:$0x1]
    %68 = vrot.lane.b32.xlu0 %v67, 16
    %v69 = vpop.permute.xlu0 %68
    %vm70 = vcmask 261248
    %s71 = scalar_lea.vmem %s1, 8
    %72 = vst.msk [vmem:[%s71] sm:$0x1] %vm70, %v69

// kernel: lp_attention_forward.7
$region0: #{lp_attention_forward.7}
  #allocation0 [shape = 'u32[]', space=smem, size = 0x4, offset = 0x4, fixed_abs, tag = 'smem constant byte address 0x4 - core index']
  #allocation1 [shape = 'u32[144,128]{1,0:T(1,128)}', space=vmem, size = 0x12000, scoped, tag = 'internal scratch']
  #allocation2 [shape = 'f32[1,1]{1,0:T(1,128)S(6)}', space=smem, size = 0x200, scoped, tag = 'scoped memory for lp_attention_forward.7']
  %s0 = inlined_call_operand.vmem [shape: f32[18,27], index: 0, kind: input, shape index: {}]
  %s1 = inlined_call_operand.vmem [shape: f32[27,1184], index: 1, kind: input, shape index: {}]
  %s2 = inlined_call_operand.vmem [shape: f32[18,1184], index: 2, kind: input, shape index: {}]
  %s3 = inlined_call_operand.<no memory space> [shape: f32[1,1], index: 3, kind: input, shape index: {}]
  %s4 = inlined_call_operand.vmem [shape: f32[18,1184], index: 4, kind: output, shape index: {}]
  %s5 = sld [smem:[#allocation0]]
  $region26: #{lp_attention_forward.7} parent=0
    _
  %s7 = ssub.s32 1, %s5
  %s8 = scalar_select 0, %s7, %s5
  %9 = sst [smem:[#allocation2]] %s3
  // Predicated region
  $region2: #{lp_attention_forward.7} parent=0 // pred_check
    _
  $region3: #{lp_attention_forward.7} parent=0 // pred_check_branch
    %11 = sbr.rel (0) target = $region5
  $region4: #{lp_attention_forward.7} parent=0 // pred_region
    _
  $region5: #{lp_attention_forward.7} parent=0 // pred_fallthru
    _
  // Predicated region
  $region6: #{lp_attention_forward.7} parent=0 // pred_check
    _
  $region7: #{lp_attention_forward.7} parent=0 // pred_check_branch
    %13 = sbr.rel (0) target = $region9
  $region8: #{lp_attention_forward.7} parent=0 // pred_region
    _
  $region9: #{lp_attention_forward.7} parent=0 // pred_fallthru
    _
  // Predicated region
  $region10: #{lp_attention_forward.7} parent=0 // pred_check
    _
  $region11: #{lp_attention_forward.7} parent=0 // pred_check_branch
    %15 = sbr.rel (0) target = $region13
  $region12: #{lp_attention_forward.7} parent=0 // pred_region
    _
  $region13: #{lp_attention_forward.7} parent=0 // pred_fallthru
    _
  // Predicated region
  $region14: #{lp_attention_forward.7} parent=0 // pred_check
    _
  $region15: #{lp_attention_forward.7} parent=0 // pred_check_branch
    %17 = sbr.rel (0) target = $region17
  $region16: #{lp_attention_forward.7} parent=0 // pred_region
    _
  $region17: #{lp_attention_forward.7} parent=0 // pred_fallthru
    _
  %v18 = vld [vmem:[%s0] sm:$0xff]
  %v19 = vld [vmem:[%s0 + $0x8] sm:$0xff]
  %v20 = vld [vmem:[%s0 + $0x10] sm:$0x3]
  %v21 = vld [vmem:[%s1] sm:$0xff]
  %v22 = vld [vmem:[%s1 + $0x8] sm:$0xff]
  %v23 = vld [vmem:[%s1 + $0x10] sm:$0xff]
  %v24 = vld [vmem:[%s1 + $0x18] sm:$0xff]
  %v25 = vld [vmem:[%s1 + $0x20] sm:$0xff]
  %v26 = vld [vmem:[%s1 + $0x28] sm:$0xff]
  %v27 = vld [vmem:[%s1 + $0x30] sm:$0xff]
  %v28 = vld [vmem:[%s1 + $0x38] sm:$0xff]
  %v29 = vld [vmem:[%s1 + $0x40] sm:$0xff]
  %v30 = vld [vmem:[%s1 + $0x48] sm:$0xff]
  %v31 = vld [vmem:[%s1 + $0x50] sm:$0xff]
  %v32 = vld [vmem:[%s1 + $0x58] sm:$0xff]
  %v33 = vld [vmem:[%s1 + $0x60] sm:$0xff]
  %v34 = vld [vmem:[%s1 + $0x68] sm:$0xff]
  %v35 = vld [vmem:[%s1 + $0x70] sm:$0xff]
  %v36 = vld [vmem:[%s1 + $0x78] sm:$0xff]
  %v37 = vld [vmem:[%s1 + $0x80] sm:$0xff]
  %v38 = vld [vmem:[%s1 + $0x88] sm:$0xff]
  %v39 = vld [vmem:[%s1 + $0x90] sm:$0xff]
  %v40 = vld [vmem:[%s1 + $0x98] sm:$0xff]
  %v41 = vld [vmem:[%s1 + $0xa0] sm:$0xff]
  %v42 = vld [vmem:[%s1 + $0xa8] sm:$0xff]
  %v43 = vld [vmem:[%s1 + $0xb0] sm:$0xff]
  %v44 = vld [vmem:[%s1 + $0xb8] sm:$0xff]
  %v45 = vld [vmem:[%s1 + $0xc0] sm:$0xff]
  %v46 = vld [vmem:[%s1 + $0xc8] sm:$0xff]
  %v47 = vld [vmem:[%s1 + $0xd0] sm:$0xff]
  %v48 = vld [vmem:[%s1 + $0xd8] sm:$0xff]
  %v49 = vld [vmem:[%s1 + $0xe0] sm:$0xff]
  %v50 = vld [vmem:[%s1 + $0xe8] sm:$0xff]
  %v51 = vld [vmem:[%s1 + $0xf0] sm:$0x7]
  %v52 = vld [vmem:[%s1 + $0xf8] sm:$0x7]
  %v53 = vld [vmem:[%s1 + $0x100] sm:$0x7]
  %v54 = vld [vmem:[%s1 + $0x108] sm:$0x7]
  %v55 = vld [vmem:[%s1 + $0x110] sm:$0x7]
  %v56 = vld [vmem:[%s1 + $0x118] sm:$0x7]
  %v57 = vld [vmem:[%s1 + $0x120] sm:$0x7]
  %v58 = vld [vmem:[%s1 + $0x128] sm:$0x7]
  %v59 = vld [vmem:[%s1 + $0x130] sm:$0x7]
  %v60 = vld [vmem:[%s1 + $0x138] sm:$0x7]
  %v61 = vld [vmem:[%s2] sm:$0xff]
  %v62 = vld [vmem:[%s2 + $0x8] sm:$0xff]
  %v63 = vld [vmem:[%s2 + $0x10] sm:$0xff]
  %v64 = vld [vmem:[%s2 + $0x18] sm:$0xff]
  %v65 = vld [vmem:[%s2 + $0x20] sm:$0xff]
  %v66 = vld [vmem:[%s2 + $0x28] sm:$0xff]
  %v67 = vld [vmem:[%s2 + $0x30] sm:$0xff]
  %v68 = vld [vmem:[%s2 + $0x38] sm:$0xff]
  %v69 = vld [vmem:[%s2 + $0x40] sm:$0xff]
  %v70 = vld [vmem:[%s2 + $0x48] sm:$0xff]
  %v71 = vld [vmem:[%s2 + $0x50] sm:$0xff]
  %v72 = vld [vmem:[%s2 + $0x58] sm:$0xff]
  %v73 = vld [vmem:[%s2 + $0x60] sm:$0xff]
  %v74 = vld [vmem:[%s2 + $0x68] sm:$0xff]
  %v75 = vld [vmem:[%s2 + $0x70] sm:$0xff]
  %v76 = vld [vmem:[%s2 + $0x78] sm:$0xff]
  %v77 = vld [vmem:[%s2 + $0x80] sm:$0xff]
  %v78 = vld [vmem:[%s2 + $0x88] sm:$0xff]
  %v79 = vld [vmem:[%s2 + $0x90] sm:$0xff]
  %v80 = vld [vmem:[%s2 + $0x98] sm:$0xff]
  %v81 = vld [vmem:[%s2 + $0xa0] sm:$0x3]
  %v82 = vld [vmem:[%s2 + $0xa8] sm:$0x3]
  %v83 = vld [vmem:[%s2 + $0xb0] sm:$0x3]
  %v84 = vld [vmem:[%s2 + $0xb8] sm:$0x3]
  %v85 = vld [vmem:[%s2 + $0xc0] sm:$0x3]
  %v86 = vld [vmem:[%s2 + $0xc8] sm:$0x3]
  %v87 = vld [vmem:[%s2 + $0xd0] sm:$0x3]
  %v88 = vld [vmem:[%s2 + $0xd8] sm:$0x3]
  %v89 = vld [vmem:[%s2 + $0xe0] sm:$0x3]
  %v90 = vld [vmem:[%s2 + $0xe8] sm:$0x3]
  %vm91 = vcmask 220160
  %v93 = vsel %vm91, %v18, 0
  %v96 = vsel %vm91, %v19, 0
  %v99 = vsel %vm91, %v20, 0
  %vm101 = vcmask 1042432
  %v103 = vsel %vm101, %v51, 0
  %v106 = vsel %vm101, %v52, 0
  %v109 = vsel %vm101, %v53, 0
  %v112 = vsel %vm101, %v54, 0
  %v115 = vsel %vm101, %v55, 0
  %v118 = vsel %vm101, %v56, 0
  %v121 = vsel %vm101, %v57, 0
  %v124 = vsel %vm101, %v58, 0
  %v127 = vsel %vm101, %v59, 0
  %v130 = vsel %vm101, %v60, 0
  %132 = vmatprep.subr.mxu0 %v22
  %133 = vmatpush1.msra.mxu0 %v21
  %134 = vmatprep.subr.mxu0 %v32
  %135 = vmatpush1.msra.mxu0 %v31
  %136 = vmatprep.subr.mxu0 %v42
  %137 = vmatpush1.msra.mxu0 %v41
  %138 = vmatprep.subr.mxu0 %v106
  %139 = vmatpush1.msra.mxu0 %v103
  %140 = vmatprep.subr.mxu0 0.0
  %141 = vmatpush1.msra.mxu0 0.0
  %142 = vmatprep.subr.mxu0 0.0
  %143 = vmatpush1.msra.mxu0 0.0
  %144 = vmatprep.subr.mxu0 0.0
  %145 = vmatpush1.msra.mxu0 0.0
  %146 = vmatprep.subr.mxu0 0.0
  %147 = vmatpush1.msra.mxu0 0.0
  %148 = vmatprep.subr.mxu0 0.0
  %149 = vmatpush1.msra.mxu0 0.0
  %150 = vmatprep.subr.mxu0 0.0
  %151 = vmatpush1.msra.mxu0 0.0
  %152 = vmatprep.subr.mxu0 0.0
  %153 = vmatpush1.msra.mxu0 0.0
  %154 = vmatprep.subr.mxu0 0.0
  %155 = vmatpush1.msra.mxu0 0.0
  %156 = vmatprep.subr.mxu0 0.0
  %157 = vmatpush1.msra.mxu0 0.0
  %158 = vmatprep.subr.mxu0 0.0
  %159 = vmatpush1.msra.mxu0 0.0
  %160 = vmatprep.subr.mxu0 0.0
  %161 = vmatpush1.msra.mxu0 0.0
  %162 = vmatprep.subr.mxu0 0.0
  %163 = vmatpush1.msra.mxu0 0.0
  %164 = vmatprep.subr.mxu0 0.0
  %165 = vmatpush1.msra.mxu0 0.0
  %166 = vmatprep.subr.mxu0 0.0
  %167 = vmatpush1.msra.mxu0 0.0
  %168 = vmatprep.subr.mxu0 0.0
  %169 = vmatpush1.msra.mxu0 0.0
  %170 = vmatprep.subr.mxu0 0.0
  %171 = vmatpush1.msra.mxu0 0.0
  %172 = vmatprep.subr.mxu0 0.0
  %173 = vmatpush1.msra.mxu0 0.0
  %174 = vmatprep.subr.mxu0 0.0
  %175 = vmatpush1.msra.mxu0 0.0
  %176 = vmatprep.subr.mxu0 0.0
  %177 = vmatpush1.msra.mxu0 0.0
  %178 = vmatprep.subr.mxu0 0.0
  %179 = vmatpush1.msra.mxu0 0.0
  %180 = vmatprep.subr.mxu0 0.0
  %181 = vmatpush1.msra.mxu0 0.0
  %182 = vmatprep.subr.mxu0 0.0
  %183 = vmatpush1.msra.mxu0 0.0
  %184 = vmatprep.subr.mxu0 0.0
  %185 = vmatpush1.msra.mxu0 0.0
  %186 = vmatprep.subr.mxu0 0.0
  %187 = vmatpush1.msra.mxu0 0.0
  %188 = vmatprep.subr.mxu0 0.0
  %189 = vmatpush1.msra.mxu0 0.0
  %190 = vmatprep.subr.mxu0 0.0
  %191 = vmatpush1.msra.mxu0 0.0
  %192 = vmatprep.subr.mxu0 0.0
  %193 = vmatpush1.msra.mxu0 0.0
  %194 = vmatprep.subr.mxu0 0.0
  %195 = vmatpush1.msra.mxu0 0.0
  %196 = vmatprep.mubr.f32.mxu0 0.0
  %197 = vmatmul.mubr.f32.gmra.mrb[0].mxu0 %v93
  %v198 = vpop.f32.mrb[0].mxu0
  %v199 = vadd.f32 %v61, %v198
  %v200 = vpop.f32.mrb[0].mxu0
  %v201 = vadd.f32 %v62, %v200
  %202 = vmatprep.mubr.f32.mxu0 0.0
  %203 = vmatmul.mubr.f32.gmra.mrb[0].mxu0 %v96
  %v204 = vpop.f32.mrb[0].mxu0
  %v205 = vadd.f32 %v71, %v204
  %v206 = vpop.f32.mrb[0].mxu0
  %v207 = vadd.f32 %v72, %v206
  %208 = vmatprep.mubr.f32.mxu0 0.0
  %209 = vmatmul.mubr.f32.gmra.mrb[0].mxu0 %v99
  %v210 = vpop.f32.mrb[0].mxu0
  %v211 = vadd.f32 %v81, %v210
  %v212 = vpop.f32.mrb[0].mxu0
  %v213 = vadd.f32 %v82, %v212
  %214 = vdwg.mxu0
  %215 = vmatprep.subr.mxu0 %v24
  %216 = vmatpush1.msra.mxu0 %v23
  %217 = vmatprep.subr.mxu0 %v34
  %218 = vmatpush1.msra.mxu0 %v33
  %219 = vmatprep.subr.mxu0 %v44
  %220 = vmatpush1.msra.mxu0 %v43
  %221 = vmatprep.subr.mxu0 %v112
  %222 = vmatpush1.msra.mxu0 %v109
  %223 = vmatprep.subr.mxu0 0.0
  %224 = vmatpush1.msra.mxu0 0.0
  %225 = vmatprep.subr.mxu0 0.0
  %226 = vmatpush1.msra.mxu0 0.0
  %227 = vmatprep.subr.mxu0 0.0
  %228 = vmatpush1.msra.mxu0 0.0
  %229 = vmatprep.subr.mxu0 0.0
  %230 = vmatpush1.msra.mxu0 0.0
  %231 = vmatprep.subr.mxu0 0.0
  %232 = vmatpush1.msra.mxu0 0.0
  %233 = vmatprep.subr.mxu0 0.0
  %234 = vmatpush1.msra.mxu0 0.0
  %235 = vmatprep.subr.mxu0 0.0
  %236 = vmatpush1.msra.mxu0 0.0
  %237 = vmatprep.subr.mxu0 0.0
  %238 = vmatpush1.msra.mxu0 0.0
  %239 = vmatprep.subr.mxu0 0.0
  %240 = vmatpush1.msra.mxu0 0.0
  %241 = vmatprep.subr.mxu0 0.0
  %242 = vmatpush1.msra.mxu0 0.0
  %243 = vmatprep.subr.mxu0 0.0
  %244 = vmatpush1.msra.mxu0 0.0
  %245 = vmatprep.subr.mxu0 0.0
  %246 = vmatpush1.msra.mxu0 0.0
  %247 = vmatprep.subr.mxu0 0.0
  %248 = vmatpush1.msra.mxu0 0.0
  %249 = vmatprep.subr.mxu0 0.0
  %250 = vmatpush1.msra.mxu0 0.0
  %251 = vmatprep.subr.mxu0 0.0
  %252 = vmatpush1.msra.mxu0 0.0
  %253 = vmatprep.subr.mxu0 0.0
  %254 = vmatpush1.msra.mxu0 0.0
  %255 = vmatprep.subr.mxu0 0.0
  %256 = vmatpush1.msra.mxu0 0.0
  %257 = vmatprep.subr.mxu0 0.0
  %258 = vmatpush1.msra.mxu0 0.0
  %259 = vmatprep.subr.mxu0 0.0
  %260 = vmatpush1.msra.mxu0 0.0
  %261 = vmatprep.subr.mxu0 0.0
  %262 = vmatpush1.msra.mxu0 0.0
  %263 = vmatprep.subr.mxu0 0.0
  %264 = vmatpush1.msra.mxu0 0.0
  %265 = vmatprep.subr.mxu0 0.0
  %266 = vmatpush1.msra.mxu0 0.0
  %267 = vmatprep.subr.mxu0 0.0
  %268 = vmatpush1.msra.mxu0 0.0
  %269 = vmatprep.subr.mxu0 0.0
  %270 = vmatpush1.msra.mxu0 0.0
  %271 = vmatprep.subr.mxu0 0.0
  %272 = vmatpush1.msra.mxu0 0.0
  %273 = vmatprep.subr.mxu0 0.0
  %274 = vmatpush1.msra.mxu0 0.0
  %275 = vmatprep.subr.mxu0 0.0
  %276 = vmatpush1.msra.mxu0 0.0
  %277 = vmatprep.subr.mxu0 0.0
  %278 = vmatpush1.msra.mxu0 0.0
  %279 = vmatprep.mubr.f32.mxu0 0.0
  %280 = vmatmul.mubr.f32.gmra.mrb[0].mxu0 %v93
  %v281 = vpop.f32.mrb[0].mxu0
  %v282 = vadd.f32 %v63, %v281
  %v283 = vpop.f32.mrb[0].mxu0
  %v284 = vadd.f32 %v64, %v283
  %285 = vmatprep.mubr.f32.mxu0 0.0
  %286 = vmatmul.mubr.f32.gmra.mrb[0].mxu0 %v96
  %v287 = vpop.f32.mrb[0].mxu0
  %v288 = vadd.f32 %v73, %v287
  %v289 = vpop.f32.mrb[0].mxu0
  %v290 = vadd.f32 %v74, %v289
  %291 = vmatprep.mubr.f32.mxu0 0.0
  %292 = vmatmul.mubr.f32.gmra.mrb[0].mxu0 %v99
  %v293 = vpop.f32.mrb[0].mxu0
  %v294 = vadd.f32 %v83, %v293
  %v295 = vpop.f32.mrb[0].mxu0
  %v296 = vadd.f32 %v84, %v295
  %297 = vdwg.mxu0
  %298 = vmatprep.subr.mxu0 %v26
  %299 = vmatpush1.msra.mxu0 %v25
  %300 = vmatprep.subr.mxu0 %v36
  %301 = vmatpush1.msra.mxu0 %v35
  %302 = vmatprep.subr.mxu0 %v46
  %303 = vmatpush1.msra.mxu0 %v45
  %304 = vmatprep.subr.mxu0 %v118
  %305 = vmatpush1.msra.mxu0 %v115
  %306 = vmatprep.subr.mxu0 0.0
  %307 = vmatpush1.msra.mxu0 0.0
  %308 = vmatprep.subr.mxu0 0.0
  %309 = vmatpush1.msra.mxu0 0.0
  %310 = vmatprep.subr.mxu0 0.0
  %311 = vmatpush1.msra.mxu0 0.0
  %312 = vmatprep.subr.mxu0 0.0
  %313 = vmatpush1.msra.mxu0 0.0
  %314 = vmatprep.subr.mxu0 0.0
  %315 = vmatpush1.msra.mxu0 0.0
  %316 = vmatprep.subr.mxu0 0.0
  %317 = vmatpush1.msra.mxu0 0.0
  %318 = vmatprep.subr.mxu0 0.0
  %319 = vmatpush1.msra.mxu0 0.0
  %320 = vmatprep.subr.mxu0 0.0
  %321 = vmatpush1.msra.mxu0 0.0
  %322 = vmatprep.subr.mxu0 0.0
  %323 = vmatpush1.msra.mxu0 0.0
  %324 = vmatprep.subr.mxu0 0.0
  %325 = vmatpush1.msra.mxu0 0.0
  %326 = vmatprep.subr.mxu0 0.0
  %327 = vmatpush1.msra.mxu0 0.0
  %328 = vmatprep.subr.mxu0 0.0
  %329 = vmatpush1.msra.mxu0 0.0
  %330 = vmatprep.subr.mxu0 0.0
  %331 = vmatpush1.msra.mxu0 0.0
  %332 = vmatprep.subr.mxu0 0.0
  %333 = vmatpush1.msra.mxu0 0.0
  %334 = vmatprep.subr.mxu0 0.0
  %335 = vmatpush1.msra.mxu0 0.0
  %336 = vmatprep.subr.mxu0 0.0
  %337 = vmatpush1.msra.mxu0 0.0
  %338 = vmatprep.subr.mxu0 0.0
  %339 = vmatpush1.msra.mxu0 0.0
  %340 = vmatprep.subr.mxu0 0.0
  %341 = vmatpush1.msra.mxu0 0.0
  %342 = vmatprep.subr.mxu0 0.0
  %343 = vmatpush1.msra.mxu0 0.0
  %344 = vmatprep.subr.mxu0 0.0
  %345 = vmatpush1.msra.mxu0 0.0
  %346 = vmatprep.subr.mxu0 0.0
  %347 = vmatpush1.msra.mxu0 0.0
  %348 = vmatprep.subr.mxu0 0.0
  %349 = vmatpush1.msra.mxu0 0.0
  %350 = vmatprep.subr.mxu0 0.0
  %351 = vmatpush1.msra.mxu0 0.0
  %352 = vmatprep.subr.mxu0 0.0
  %353 = vmatpush1.msra.mxu0 0.0
  %354 = vmatprep.subr.mxu0 0.0
  %355 = vmatpush1.msra.mxu0 0.0
  %356 = vmatprep.subr.mxu0 0.0
  %357 = vmatpush1.msra.mxu0 0.0
  %358 = vmatprep.subr.mxu0 0.0
  %359 = vmatpush1.msra.mxu0 0.0
  %360 = vmatprep.subr.mxu0 0.0
  %361 = vmatpush1.msra.mxu0 0.0
  %362 = vmatprep.mubr.f32.mxu0 0.0
  %363 = vmatmul.mubr.f32.gmra.mrb[0].mxu0 %v93
  %v364 = vpop.f32.mrb[0].mxu0
  %v365 = vadd.f32 %v65, %v364
  %v366 = vpop.f32.mrb[0].mxu0
  %v367 = vadd.f32 %v66, %v366
  %368 = vmatprep.mubr.f32.mxu0 0.0
  %369 = vmatmul.mubr.f32.gmra.mrb[0].mxu0 %v96
  %v370 = vpop.f32.mrb[0].mxu0
  %v371 = vadd.f32 %v75, %v370
  %v372 = vpop.f32.mrb[0].mxu0
  %v373 = vadd.f32 %v76, %v372
  %374 = vmatprep.mubr.f32.mxu0 0.0
  %375 = vmatmul.mubr.f32.gmra.mrb[0].mxu0 %v99
  %v376 = vpop.f32.mrb[0].mxu0
  %v377 = vadd.f32 %v85, %v376
  %v378 = vpop.f32.mrb[0].mxu0
  %v379 = vadd.f32 %v86, %v378
  %380 = vdwg.mxu0
  %381 = vmatprep.subr.mxu0 %v28
  %382 = vmatpush1.msra.mxu0 %v27
  %383 = vmatprep.subr.mxu0 %v38
  %384 = vmatpush1.msra.mxu0 %v37
  %385 = vmatprep.subr.mxu0 %v48
  %386 = vmatpush1.msra.mxu0 %v47
  %387 = vmatprep.subr.mxu0 %v124
  %388 = vmatpush1.msra.mxu0 %v121
  %389 = vmatprep.subr.mxu0 0.0
  %390 = vmatpush1.msra.mxu0 0.0
  %391 = vmatprep.subr.mxu0 0.0
  %392 = vmatpush1.msra.mxu0 0.0
  %393 = vmatprep.subr.mxu0 0.0
  %394 = vmatpush1.msra.mxu0 0.0
  %395 = vmatprep.subr.mxu0 0.0
  %396 = vmatpush1.msra.mxu0 0.0
  %397 = vmatprep.subr.mxu0 0.0
  %398 = vmatpush1.msra.mxu0 0.0
  %399 = vmatprep.subr.mxu0 0.0
  %400 = vmatpush1.msra.mxu0 0.0
  %401 = vmatprep.subr.mxu0 0.0
  %402 = vmatpush1.msra.mxu0 0.0
  %403 = vmatprep.subr.mxu0 0.0
  %404 = vmatpush1.msra.mxu0 0.0
  %405 = vmatprep.subr.mxu0 0.0
  %406 = vmatpush1.msra.mxu0 0.0
  %407 = vmatprep.subr.mxu0 0.0
  %408 = vmatpush1.msra.mxu0 0.0
  %409 = vmatprep.subr.mxu0 0.0
  %410 = vmatpush1.msra.mxu0 0.0
  %411 = vmatprep.subr.mxu0 0.0
  %412 = vmatpush1.msra.mxu0 0.0
  %413 = vmatprep.subr.mxu0 0.0
  %414 = vmatpush1.msra.mxu0 0.0
  %415 = vmatprep.subr.mxu0 0.0
  %416 = vmatpush1.msra.mxu0 0.0
  %417 = vmatprep.subr.mxu0 0.0
  %418 = vmatpush1.msra.mxu0 0.0
  %419 = vmatprep.subr.mxu0 0.0
  %420 = vmatpush1.msra.mxu0 0.0
  %421 = vmatprep.subr.mxu0 0.0
  %422 = vmatpush1.msra.mxu0 0.0
  %423 = vmatprep.subr.mxu0 0.0
  %424 = vmatpush1.msra.mxu0 0.0
  %425 = vmatprep.subr.mxu0 0.0
  %426 = vmatpush1.msra.mxu0 0.0
  %427 = vmatprep.subr.mxu0 0.0
  %428 = vmatpush1.msra.mxu0 0.0
  %429 = vmatprep.subr.mxu0 0.0
  %430 = vmatpush1.msra.mxu0 0.0
  %431 = vmatprep.subr.mxu0 0.0
  %432 = vmatpush1.msra.mxu0 0.0
  %433 = vmatprep.subr.mxu0 0.0
  %434 = vmatpush1.msra.mxu0 0.0
  %435 = vmatprep.subr.mxu0 0.0
  %436 = vmatpush1.msra.mxu0 0.0
  %437 = vmatprep.subr.mxu0 0.0
  %438 = vmatpush1.msra.mxu0 0.0
  %439 = vmatprep.subr.mxu0 0.0
  %440 = vmatpush1.msra.mxu0 0.0
  %441 = vmatprep.subr.mxu0 0.0
  %442 = vmatpush1.msra.mxu0 0.0
  %443 = vmatprep.subr.mxu0 0.0
  %444 = vmatpush1.msra.mxu0 0.0
  %445 = vmatprep.mubr.f32.mxu0 0.0
  %446 = vmatmul.mubr.f32.gmra.mrb[0].mxu0 %v93
  %v447 = vpop.f32.mrb[0].mxu0
  %v448 = vadd.f32 %v67, %v447
  %v449 = vpop.f32.mrb[0].mxu0
  %v450 = vadd.f32 %v68, %v449
  %451 = vmatprep.mubr.f32.mxu0 0.0
  %452 = vmatmul.mubr.f32.gmra.mrb[0].mxu0 %v96
  %v453 = vpop.f32.mrb[0].mxu0
  %v454 = vadd.f32 %v77, %v453
  %v455 = vpop.f32.mrb[0].mxu0
  %v456 = vadd.f32 %v78, %v455
  %457 = vmatprep.mubr.f32.mxu0 0.0
  %458 = vmatmul.mubr.f32.gmra.mrb[0].mxu0 %v99
  %v459 = vpop.f32.mrb[0].mxu0
  %v460 = vadd.f32 %v87, %v459
  %v461 = vpop.f32.mrb[0].mxu0
  %v462 = vadd.f32 %v88, %v461
  %463 = vdwg.mxu0
  %464 = vmatprep.subr.mxu0 %v30
  %465 = vmatpush1.msra.mxu0 %v29
  %466 = vmatprep.subr.mxu0 %v40
  %467 = vmatpush1.msra.mxu0 %v39
  %468 = vmatprep.subr.mxu0 %v50
  %469 = vmatpush1.msra.mxu0 %v49
  %470 = vmatprep.subr.mxu0 %v130
  %471 = vmatpush1.msra.mxu0 %v127
  %472 = vmatprep.subr.mxu0 0.0
  %473 = vmatpush1.msra.mxu0 0.0
  %474 = vmatprep.subr.mxu0 0.0
  %475 = vmatpush1.msra.mxu0 0.0
  %476 = vmatprep.subr.mxu0 0.0
  %477 = vmatpush1.msra.mxu0 0.0
  %478 = vmatprep.subr.mxu0 0.0
  %479 = vmatpush1.msra.mxu0 0.0
  %480 = vmatprep.subr.mxu0 0.0
  %481 = vmatpush1.msra.mxu0 0.0
  %482 = vmatprep.subr.mxu0 0.0
  %483 = vmatpush1.msra.mxu0 0.0
  %484 = vmatprep.subr.mxu0 0.0
  %485 = vmatpush1.msra.mxu0 0.0
  %486 = vmatprep.subr.mxu0 0.0
  %487 = vmatpush1.msra.mxu0 0.0
  %488 = vmatprep.subr.mxu0 0.0
  %489 = vmatpush1.msra.mxu0 0.0
  %490 = vmatprep.subr.mxu0 0.0
  %491 = vmatpush1.msra.mxu0 0.0
  %492 = vmatprep.subr.mxu0 0.0
  %493 = vmatpush1.msra.mxu0 0.0
  %494 = vmatprep.subr.mxu0 0.0
  %495 = vmatpush1.msra.mxu0 0.0
  %496 = vmatprep.subr.mxu0 0.0
  %497 = vmatpush1.msra.mxu0 0.0
  %498 = vmatprep.subr.mxu0 0.0
  %499 = vmatpush1.msra.mxu0 0.0
  %500 = vmatprep.subr.mxu0 0.0
  %501 = vmatpush1.msra.mxu0 0.0
  %502 = vmatprep.subr.mxu0 0.0
  %503 = vmatpush1.msra.mxu0 0.0
  %504 = vmatprep.subr.mxu0 0.0
  %505 = vmatpush1.msra.mxu0 0.0
  %506 = vmatprep.subr.mxu0 0.0
  %507 = vmatpush1.msra.mxu0 0.0
  %508 = vmatprep.subr.mxu0 0.0
  %509 = vmatpush1.msra.mxu0 0.0
  %510 = vmatprep.subr.mxu0 0.0
  %511 = vmatpush1.msra.mxu0 0.0
  %512 = vmatprep.subr.mxu0 0.0
  %513 = vmatpush1.msra.mxu0 0.0
  %514 = vmatprep.subr.mxu0 0.0
  %515 = vmatpush1.msra.mxu0 0.0
  %516 = vmatprep.subr.mxu0 0.0
  %517 = vmatpush1.msra.mxu0 0.0
  %518 = vmatprep.subr.mxu0 0.0
  %519 = vmatpush1.msra.mxu0 0.0
  %520 = vmatprep.subr.mxu0 0.0
  %521 = vmatpush1.msra.mxu0 0.0
  %522 = vmatprep.subr.mxu0 0.0
  %523 = vmatpush1.msra.mxu0 0.0
  %524 = vmatprep.subr.mxu0 0.0
  %525 = vmatpush1.msra.mxu0 0.0
  %526 = vmatprep.subr.mxu0 0.0
  %527 = vmatpush1.msra.mxu0 0.0
  %528 = vmatprep.mubr.f32.mxu0 0.0
  %529 = vmatmul.mubr.f32.gmra.mrb[0].mxu0 %v93
  %v530 = vpop.f32.mrb[0].mxu0
  %v531 = vadd.f32 %v69, %v530
  %v532 = vpop.f32.mrb[0].mxu0
  %v533 = vadd.f32 %v70, %v532
  %534 = vmatprep.mubr.f32.mxu0 0.0
  %535 = vmatmul.mubr.f32.gmra.mrb[0].mxu0 %v96
  %v536 = vpop.f32.mrb[0].mxu0
  %v537 = vadd.f32 %v79, %v536
  %v538 = vpop.f32.mrb[0].mxu0
  %v539 = vadd.f32 %v80, %v538
  %540 = vmatprep.mubr.f32.mxu0 0.0
  %541 = vmatmul.mubr.f32.gmra.mrb[0].mxu0 %v99
  %v542 = vpop.f32.mrb[0].mxu0
  %v543 = vadd.f32 %v89, %v542
  %v544 = vpop.f32.mrb[0].mxu0
  %v545 = vadd.f32 %v90, %v544
  %546 = vdwg.mxu0
  %547 = vst [vmem:[%s4] sm:$0xff] %v199
  %548 = vst [vmem:[%s4 + $0x8] sm:$0xff] %v201
  %549 = vst [vmem:[%s4 + $0x10] sm:$0xff] %v282
  %550 = vst [vmem:[%s4 + $0x18] sm:$0xff] %v284
  %551 = vst [vmem:[%s4 + $0x20] sm:$0xff] %v365
  %552 = vst [vmem:[%s4 + $0x28] sm:$0xff] %v367
  %553 = vst [vmem:[%s4 + $0x30] sm:$0xff] %v448
  %554 = vst [vmem:[%s4 + $0x38] sm:$0xff] %v450
  %555 = vst [vmem:[%s4 + $0x40] sm:$0xff] %v531
  %vm556 = vcmask 261120
  %557 = vst.msk [vmem:[%s4 + $0x48] sm:$0xff] %vm556, %v533
  %558 = vst [vmem:[%s4 + $0x50] sm:$0xff] %v205
  %559 = vst [vmem:[%s4 + $0x58] sm:$0xff] %v207
  %560 = vst [vmem:[%s4 + $0x60] sm:$0xff] %v288
  %561 = vst [vmem:[%s4 + $0x68] sm:$0xff] %v290
  %562 = vst [vmem:[%s4 + $0x70] sm:$0xff] %v371
  %563 = vst [vmem:[%s4 + $0x78] sm:$0xff] %v373
  %564 = vst [vmem:[%s4 + $0x80] sm:$0xff] %v454
  %565 = vst [vmem:[%s4 + $0x88] sm:$0xff] %v456
  %566 = vst [vmem:[%s4 + $0x90] sm:$0xff] %v537
  %567 = vst.msk [vmem:[%s4 + $0x98] sm:$0xff] %vm556, %v539
  %568 = vst [vmem:[%s4 + $0xa0] sm:$0x3] %v211
  %569 = vst [vmem:[%s4 + $0xa8] sm:$0x3] %v213
  %570 = vst [vmem:[%s4 + $0xb0] sm:$0x3] %v294
  %571 = vst [vmem:[%s4 + $0xb8] sm:$0x3] %v296
  %572 = vst [vmem:[%s4 + $0xc0] sm:$0x3] %v377
  %573 = vst [vmem:[%s4 + $0xc8] sm:$0x3] %v379
  %574 = vst [vmem:[%s4 + $0xd0] sm:$0x3] %v460
  %575 = vst [vmem:[%s4 + $0xd8] sm:$0x3] %v462
  %576 = vst [vmem:[%s4 + $0xe0] sm:$0x3] %v543
  %vm577 = vcmask 254976
  %578 = vst.msk [vmem:[%s4 + $0xe8] sm:$0x3] %vm577, %v545
  // Predicated region
  $region18: #{lp_attention_forward.7} parent=0 // pred_check
    _
  $region19: #{lp_attention_forward.7} parent=0 // pred_check_branch
    %580 = sbr.rel (0) target = $region21
  $region20: #{lp_attention_forward.7} parent=0 // pred_region
    _
  $region21: #{lp_attention_forward.7} parent=0 // pred_fallthru
    _
  // Predicated region
  $region22: #{lp_attention_forward.7} parent=0 // pred_check
    _
  $region23: #{lp_attention_forward.7} parent=0 // pred_check_branch
    %582 = sbr.rel (0) target = $region25
  $region24: #{lp_attention_forward.7} parent=0 // pred_region
    _
  $region25: #{lp_attention_forward.7} parent=0 // pred_fallthru
    _

// kernel: lp_attention_forward.8
$region0: #{lp_attention_forward.8}
  #allocation0 [shape = 'u32[]', space=smem, size = 0x4, offset = 0x4, fixed_abs, tag = 'smem constant byte address 0x4 - core index']
  #allocation1 [shape = 'u32[144,128]{1,0:T(1,128)}', space=vmem, size = 0x12000, scoped, tag = 'internal scratch']
  #allocation2 [shape = 'f32[1,1]{1,0:T(1,128)S(6)}', space=smem, size = 0x200, scoped, tag = 'scoped memory for lp_attention_forward.8']
  %s0 = inlined_call_operand.vmem [shape: f32[18,324], index: 0, kind: input, shape index: {}]
  %s1 = inlined_call_operand.vmem [shape: f32[324,128], index: 1, kind: input, shape index: {}]
  %s2 = inlined_call_operand.vmem [shape: f32[18,1], index: 2, kind: input, shape index: {}]
  %s3 = inlined_call_operand.<no memory space> [shape: f32[1,1], index: 3, kind: input, shape index: {}]
  %s4 = inlined_call_operand.vmem [shape: f32[18,128], index: 4, kind: output, shape index: {}]
  %s5 = sld [smem:[#allocation0]]
  $region26: #{lp_attention_forward.8} parent=0
    _
  %s7 = ssub.s32 1, %s5
  %s8 = scalar_select 0, %s7, %s5
  %9 = sst [smem:[#allocation2]] %s3
  // Predicated region
  $region2: #{lp_attention_forward.8} parent=0 // pred_check
    _
  $region3: #{lp_attention_forward.8} parent=0 // pred_check_branch
    %11 = sbr.rel (0) target = $region5
  $region4: #{lp_attention_forward.8} parent=0 // pred_region
    _
  $region5: #{lp_attention_forward.8} parent=0 // pred_fallthru
    _
  // Predicated region
  $region6: #{lp_attention_forward.8} parent=0 // pred_check
    _
  $region7: #{lp_attention_forward.8} parent=0 // pred_check_branch
    %13 = sbr.rel (0) target = $region9
  $region8: #{lp_attention_forward.8} parent=0 // pred_region
    _
  $region9: #{lp_attention_forward.8} parent=0 // pred_fallthru
    _
  // Predicated region
  $region10: #{lp_attention_forward.8} parent=0 // pred_check
    _
  $region11: #{lp_attention_forward.8} parent=0 // pred_check_branch
    %15 = sbr.rel (0) target = $region13
  $region12: #{lp_attention_forward.8} parent=0 // pred_region
    _
  $region13: #{lp_attention_forward.8} parent=0 // pred_fallthru
    _
  // Predicated region
  $region14: #{lp_attention_forward.8} parent=0 // pred_check
    _
  $region15: #{lp_attention_forward.8} parent=0 // pred_check_branch
    %17 = sbr.rel (0) target = $region17
  $region16: #{lp_attention_forward.8} parent=0 // pred_region
    _
  $region17: #{lp_attention_forward.8} parent=0 // pred_fallthru
    _
  %v18 = vld [vmem:[%s0] sm:$0xff]
  %v19 = vld [vmem:[%s0 + $0x8] sm:$0xff]
  %v20 = vld [vmem:[%s0 + $0x10] sm:$0xff]
  %v21 = vld [vmem:[%s0 + $0x18] sm:$0xff]
  %v22 = vld [vmem:[%s0 + $0x20] sm:$0xff]
  %v23 = vld [vmem:[%s0 + $0x28] sm:$0xff]
  %v24 = vld [vmem:[%s0 + $0x30] sm:$0x3]
  %v25 = vld [vmem:[%s0 + $0x38] sm:$0x3]
  %v26 = vld [vmem:[%s0 + $0x40] sm:$0x3]
  %v27 = vld [vmem:[%s1] sm:$0xff]
  %v28 = vld [vmem:[%s1 + $0x8] sm:$0xff]
  %v29 = vld [vmem:[%s1 + $0x10] sm:$0xff]
  %v30 = vld [vmem:[%s1 + $0x18] sm:$0xff]
  %v31 = vld [vmem:[%s1 + $0x20] sm:$0xff]
  %v32 = vld [vmem:[%s1 + $0x28] sm:$0xff]
  %v33 = vld [vmem:[%s1 + $0x30] sm:$0xff]
  %v34 = vld [vmem:[%s1 + $0x38] sm:$0xff]
  %v35 = vld [vmem:[%s1 + $0x40] sm:$0xff]
  %v36 = vld [vmem:[%s1 + $0x48] sm:$0xff]
  %v37 = vld [vmem:[%s1 + $0x50] sm:$0xff]
  %v38 = vld [vmem:[%s1 + $0x58] sm:$0xff]
  %v39 = vld [vmem:[%s1 + $0x60] sm:$0xff]
  %v40 = vld [vmem:[%s1 + $0x68] sm:$0xff]
  %v41 = vld [vmem:[%s1 + $0x70] sm:$0xff]
  %v42 = vld [vmem:[%s1 + $0x78] sm:$0xff]
  %v43 = vld [vmem:[%s1 + $0x80] sm:$0xff]
  %v44 = vld [vmem:[%s1 + $0x88] sm:$0xff]
  %v45 = vld [vmem:[%s1 + $0x90] sm:$0xff]
  %v46 = vld [vmem:[%s1 + $0x98] sm:$0xff]
  %v47 = vld [vmem:[%s1 + $0xa0] sm:$0xff]
  %v48 = vld [vmem:[%s1 + $0xa8] sm:$0xff]
  %v49 = vld [vmem:[%s1 + $0xb0] sm:$0xff]
  %v50 = vld [vmem:[%s1 + $0xb8] sm:$0xff]
  %v51 = vld [vmem:[%s1 + $0xc0] sm:$0xff]
  %v52 = vld [vmem:[%s1 + $0xc8] sm:$0xff]
  %v53 = vld [vmem:[%s1 + $0xd0] sm:$0xff]
  %v54 = vld [vmem:[%s1 + $0xd8] sm:$0xff]
  %v55 = vld [vmem:[%s1 + $0xe0] sm:$0xff]
  %v56 = vld [vmem:[%s1 + $0xe8] sm:$0xff]
  %v57 = vld [vmem:[%s1 + $0xf0] sm:$0xff]
  %v58 = vld [vmem:[%s1 + $0xf8] sm:$0xff]
  %v59 = vld [vmem:[%s1 + $0x100] sm:$0xff]
  %v60 = vld [vmem:[%s1 + $0x108] sm:$0xff]
  %v61 = vld [vmem:[%s1 + $0x110] sm:$0xff]
  %v62 = vld [vmem:[%s1 + $0x118] sm:$0xff]
  %v63 = vld [vmem:[%s1 + $0x120] sm:$0xff]
  %v64 = vld [vmem:[%s1 + $0x128] sm:$0xff]
  %v65 = vld [vmem:[%s1 + $0x130] sm:$0xff]
  %v66 = vld [vmem:[%s1 + $0x138] sm:$0xff]
  %v67 = vld [vmem:[%s1 + $0x140] sm:$0xf]
  %v68 = vld [vmem:[%s2] sm:$0xff]
  %v69 = vld [vmem:[%s2 + $0x8] sm:$0xff]
  %v70 = vld [vmem:[%s2 + $0x10] sm:$0x3]
  %72 = vset.pattern.permute.xlu0 0
  %73 = vperm.xlu0 %72, %v68
  %v74 = vpop.permute.xlu0 %73
  %77 = vset.pattern.permute.xlu0 0
  %78 = vperm.xlu0 %77, %v69
  %v79 = vpop.permute.xlu0 %78
  %82 = vset.pattern.permute.xlu0 0
  %83 = vperm.xlu0 %82, %v70
  %v84 = vpop.permute.xlu0 %83
  %vm86 = vcmask 556032
  %v88 = vsel %vm86, %v20, 0
  %v91 = vsel %vm86, %v23, 0
  %v94 = vsel %vm86, %v26, 0
  %vm96 = vcmask 1043456
  %v98 = vsel %vm96, %v67, 0
  %100 = vmatprep.subr.mxu0 0.0
  %101 = vmatpush1.msra.mxu0 %v27
  %102 = vmatprep.subr.mxu0 0.0
  %103 = vmatpush1.msra.mxu0 %v28
  %104 = vmatprep.subr.mxu0 0.0
  %105 = vmatpush1.msra.mxu0 %v29
  %106 = vmatprep.subr.mxu0 0.0
  %107 = vmatpush1.msra.mxu0 %v30
  %108 = vmatprep.subr.mxu0 0.0
  %109 = vmatpush1.msra.mxu0 %v31
  %110 = vmatprep.subr.mxu0 0.0
  %111 = vmatpush1.msra.mxu0 %v32
  %112 = vmatprep.subr.mxu0 0.0
  %113 = vmatpush1.msra.mxu0 %v33
  %114 = vmatprep.subr.mxu0 0.0
  %115 = vmatpush1.msra.mxu0 %v34
  %116 = vmatprep.subr.mxu0 0.0
  %117 = vmatpush1.msra.mxu0 %v35
  %118 = vmatprep.subr.mxu0 0.0
  %119 = vmatpush1.msra.mxu0 %v36
  %120 = vmatprep.subr.mxu0 0.0
  %121 = vmatpush1.msra.mxu0 %v37
  %122 = vmatprep.subr.mxu0 0.0
  %123 = vmatpush1.msra.mxu0 %v38
  %124 = vmatprep.subr.mxu0 0.0
  %125 = vmatpush1.msra.mxu0 %v39
  %126 = vmatprep.subr.mxu0 0.0
  %127 = vmatpush1.msra.mxu0 %v40
  %128 = vmatprep.subr.mxu0 0.0
  %129 = vmatpush1.msra.mxu0 %v41
  %130 = vmatprep.subr.mxu0 0.0
  %131 = vmatpush1.msra.mxu0 %v42
  %132 = vmatprep.subr.mxu0 0.0
  %133 = vmatpush1.msra.mxu0 %v43
  %134 = vmatprep.subr.mxu0 0.0
  %135 = vmatpush1.msra.mxu0 %v44
  %136 = vmatprep.subr.mxu0 0.0
  %137 = vmatpush1.msra.mxu0 %v45
  %138 = vmatprep.subr.mxu0 0.0
  %139 = vmatpush1.msra.mxu0 %v46
  %140 = vmatprep.subr.mxu0 0.0
  %141 = vmatpush1.msra.mxu0 %v47
  %142 = vmatprep.subr.mxu0 0.0
  %143 = vmatpush1.msra.mxu0 %v48
  %144 = vmatprep.subr.mxu0 0.0
  %145 = vmatpush1.msra.mxu0 %v49
  %146 = vmatprep.subr.mxu0 0.0
  %147 = vmatpush1.msra.mxu0 %v50
  %148 = vmatprep.subr.mxu0 0.0
  %149 = vmatpush1.msra.mxu0 %v51
  %150 = vmatprep.subr.mxu0 0.0
  %151 = vmatpush1.msra.mxu0 %v52
  %152 = vmatprep.subr.mxu0 0.0
  %153 = vmatpush1.msra.mxu0 %v53
  %154 = vmatprep.subr.mxu0 0.0
  %155 = vmatpush1.msra.mxu0 %v54
  %156 = vmatprep.subr.mxu0 0.0
  %157 = vmatpush1.msra.mxu0 %v55
  %158 = vmatprep.subr.mxu0 0.0
  %159 = vmatpush1.msra.mxu0 %v56
  %160 = vmatprep.subr.mxu0 0.0
  %161 = vmatpush1.msra.mxu0 %v57
  %162 = vmatprep.subr.mxu0 0.0
  %163 = vmatpush1.msra.mxu0 %v58
  %164 = vmatprep.mubr.f32.mxu0 %v19
  %165 = vmatmul.mubr.f32.gmra.mrb[0].mxu0 %v18
  %v166 = vpop.f32.mrb[0].mxu0
  %v167 = vadd.f32 %v74, %v166
  %v168 = vpop.f32.mrb[0].mxu0
  %169 = vmatprep.mubr.f32.mxu0 %v22
  %170 = vmatmul.mubr.f32.gmra.mrb[0].mxu0 %v21
  %v171 = vpop.f32.mrb[0].mxu0
  %v172 = vadd.f32 %v79, %v171
  %v173 = vpop.f32.mrb[0].mxu0
  %174 = vmatprep.mubr.f32.mxu0 %v25
  %175 = vmatmul.mubr.f32.gmra.mrb[0].mxu0 %v24
  %v176 = vpop.f32.mrb[0].mxu0
  %v177 = vadd.f32 %v84, %v176
  %v178 = vpop.f32.mrb[0].mxu0
  %179 = vdwg.mxu0
  %180 = vmatprep.subr.mxu0 0.0
  %181 = vmatpush1.msra.mxu0 %v59
  %182 = vmatprep.subr.mxu0 0.0
  %183 = vmatpush1.msra.mxu0 %v60
  %184 = vmatprep.subr.mxu0 0.0
  %185 = vmatpush1.msra.mxu0 %v61
  %186 = vmatprep.subr.mxu0 0.0
  %187 = vmatpush1.msra.mxu0 %v62
  %188 = vmatprep.subr.mxu0 0.0
  %189 = vmatpush1.msra.mxu0 %v63
  %190 = vmatprep.subr.mxu0 0.0
  %191 = vmatpush1.msra.mxu0 %v64
  %192 = vmatprep.subr.mxu0 0.0
  %193 = vmatpush1.msra.mxu0 %v65
  %194 = vmatprep.subr.mxu0 0.0
  %195 = vmatpush1.msra.mxu0 %v66
  %196 = vmatprep.subr.mxu0 0.0
  %197 = vmatpush1.msra.mxu0 %v98
  %198 = vmatprep.subr.mxu0 0.0
  %199 = vmatpush1.msra.mxu0 0.0
  %200 = vmatprep.subr.mxu0 0.0
  %201 = vmatpush1.msra.mxu0 0.0
  %202 = vmatprep.subr.mxu0 0.0
  %203 = vmatpush1.msra.mxu0 0.0
  %204 = vmatprep.subr.mxu0 0.0
  %205 = vmatpush1.msra.mxu0 0.0
  %206 = vmatprep.subr.mxu0 0.0
  %207 = vmatpush1.msra.mxu0 0.0
  %208 = vmatprep.subr.mxu0 0.0
  %209 = vmatpush1.msra.mxu0 0.0
  %210 = vmatprep.subr.mxu0 0.0
  %211 = vmatpush1.msra.mxu0 0.0
  %212 = vmatprep.subr.mxu0 0.0
  %213 = vmatpush1.msra.mxu0 0.0
  %214 = vmatprep.subr.mxu0 0.0
  %215 = vmatpush1.msra.mxu0 0.0
  %216 = vmatprep.subr.mxu0 0.0
  %217 = vmatpush1.msra.mxu0 0.0
  %218 = vmatprep.subr.mxu0 0.0
  %219 = vmatpush1.msra.mxu0 0.0
  %220 = vmatprep.subr.mxu0 0.0
  %221 = vmatpush1.msra.mxu0 0.0
  %222 = vmatprep.subr.mxu0 0.0
  %223 = vmatpush1.msra.mxu0 0.0
  %224 = vmatprep.subr.mxu0 0.0
  %225 = vmatpush1.msra.mxu0 0.0
  %226 = vmatprep.subr.mxu0 0.0
  %227 = vmatpush1.msra.mxu0 0.0
  %228 = vmatprep.subr.mxu0 0.0
  %229 = vmatpush1.msra.mxu0 0.0
  %230 = vmatprep.subr.mxu0 0.0
  %231 = vmatpush1.msra.mxu0 0.0
  %232 = vmatprep.subr.mxu0 0.0
  %233 = vmatpush1.msra.mxu0 0.0
  %234 = vmatprep.subr.mxu0 0.0
  %235 = vmatpush1.msra.mxu0 0.0
  %236 = vmatprep.subr.mxu0 0.0
  %237 = vmatpush1.msra.mxu0 0.0
  %238 = vmatprep.subr.mxu0 0.0
  %239 = vmatpush1.msra.mxu0 0.0
  %240 = vmatprep.subr.mxu0 0.0
  %241 = vmatpush1.msra.mxu0 0.0
  %242 = vmatprep.subr.mxu0 0.0
  %243 = vmatpush1.msra.mxu0 0.0
  %244 = vmatprep.mubr.f32.mxu0 0.0
  %245 = vmatmul.mubr.f32.gmra.mrb[0].mxu0 %v88
  %v246 = vpop.f32.mrb[0].mxu0
  %v247 = vadd.f32 %v167, %v246
  %v248 = vpop.f32.mrb[0].mxu0
  %249 = vmatprep.mubr.f32.mxu0 0.0
  %250 = vmatmul.mubr.f32.gmra.mrb[0].mxu0 %v91
  %v251 = vpop.f32.mrb[0].mxu0
  %v252 = vadd.f32 %v172, %v251
  %v253 = vpop.f32.mrb[0].mxu0
  %254 = vmatprep.mubr.f32.mxu0 0.0
  %255 = vmatmul.mubr.f32.gmra.mrb[0].mxu0 %v94
  %v256 = vpop.f32.mrb[0].mxu0
  %v257 = vadd.f32 %v177, %v256
  %v258 = vpop.f32.mrb[0].mxu0
  %259 = vdwg.mxu0
  %260 = vst [vmem:[%s4] sm:$0xff] %v247
  %261 = vst [vmem:[%s4 + $0x8] sm:$0xff] %v252
  %262 = vst [vmem:[%s4 + $0x10] sm:$0x3] %v257
  // Predicated region
  $region18: #{lp_attention_forward.8} parent=0 // pred_check
    _
  $region19: #{lp_attention_forward.8} parent=0 // pred_check_branch
    %264 = sbr.rel (0) target = $region21
  $region20: #{lp_attention_forward.8} parent=0 // pred_region
    _
  $region21: #{lp_attention_forward.8} parent=0 // pred_fallthru
    _
  // Predicated region
  $region22: #{lp_attention_forward.8} parent=0 // pred_check
    _
  $region23: #{lp_attention_forward.8} parent=0 // pred_check_branch
    %266 = sbr.rel (0) target = $region25
  $region24: #{lp_attention_forward.8} parent=0 // pred_region
    _
  $region25: #{lp_attention_forward.8} parent=0 // pred_fallthru
    _

// kernel: lp_attention_forward.9
$region0: #{lp_attention_forward.9}
  #allocation0 [shape = 'u32[]', space=smem, size = 0x4, offset = 0x4, fixed_abs, tag = 'smem constant byte address 0x4 - core index']
  #allocation1 [shape = 'u32[144,128]{1,0:T(1,128)}', space=vmem, size = 0x12000, scoped, tag = 'internal scratch']
  #allocation2 [shape = 'f32[1,1]{1,0:T(1,128)S(6)}', space=smem, size = 0x200, scoped, tag = 'scoped memory for lp_attention_forward.9']
  %s0 = inlined_call_operand.vmem [shape: f32[18,324], index: 0, kind: input, shape index: {}]
  %s1 = inlined_call_operand.vmem [shape: f32[324,512], index: 1, kind: input, shape index: {}]
  %s2 = inlined_call_operand.vmem [shape: f32[18,1], index: 2, kind: input, shape index: {}]
  %s3 = inlined_call_operand.<no memory space> [shape: f32[1,1], index: 3, kind: input, shape index: {}]
  %s4 = inlined_call_operand.vmem [shape: f32[18,512], index: 4, kind: output, shape index: {}]
  %s5 = sld [smem:[#allocation0]]
  $region26: #{lp_attention_forward.9} parent=0
    _
  %s7 = ssub.s32 1, %s5
  %s8 = scalar_select 0, %s7, %s5
  %9 = sst [smem:[#allocation2]] %s3
  // Predicated region
  $region2: #{lp_attention_forward.9} parent=0 // pred_check
    _
  $region3: #{lp_attention_forward.9} parent=0 // pred_check_branch
    %11 = sbr.rel (0) target = $region5
  $region4: #{lp_attention_forward.9} parent=0 // pred_region
    _
  $region5: #{lp_attention_forward.9} parent=0 // pred_fallthru
    _
  // Predicated region
  $region6: #{lp_attention_forward.9} parent=0 // pred_check
    _
  $region7: #{lp_attention_forward.9} parent=0 // pred_check_branch
    %13 = sbr.rel (0) target = $region9
  $region8: #{lp_attention_forward.9} parent=0 // pred_region
    _
  $region9: #{lp_attention_forward.9} parent=0 // pred_fallthru
    _
  // Predicated region
  $region10: #{lp_attention_forward.9} parent=0 // pred_check
    _
  $region11: #{lp_attention_forward.9} parent=0 // pred_check_branch
    %15 = sbr.rel (0) target = $region13
  $region12: #{lp_attention_forward.9} parent=0 // pred_region
    _
  $region13: #{lp_attention_forward.9} parent=0 // pred_fallthru
    _
  // Predicated region
  $region14: #{lp_attention_forward.9} parent=0 // pred_check
    _
  $region15: #{lp_attention_forward.9} parent=0 // pred_check_branch
    %17 = sbr.rel (0) target = $region17
  $region16: #{lp_attention_forward.9} parent=0 // pred_region
    _
  $region17: #{lp_attention_forward.9} parent=0 // pred_fallthru
    _
  %v18 = vld [vmem:[%s0] sm:$0xff]
  %v19 = vld [vmem:[%s0 + $0x8] sm:$0xff]
  %v20 = vld [vmem:[%s0 + $0x10] sm:$0xff]
  %v21 = vld [vmem:[%s0 + $0x18] sm:$0xff]
  %v22 = vld [vmem:[%s0 + $0x20] sm:$0xff]
  %v23 = vld [vmem:[%s0 + $0x28] sm:$0xff]
  %v24 = vld [vmem:[%s0 + $0x30] sm:$0x3]
  %v25 = vld [vmem:[%s0 + $0x38] sm:$0x3]
  %v26 = vld [vmem:[%s0 + $0x40] sm:$0x3]
  %v27 = vld [vmem:[%s1] sm:$0xff]
  %v28 = vld [vmem:[%s1 + $0x8] sm:$0xff]
  %v29 = vld [vmem:[%s1 + $0x10] sm:$0xff]
  %v30 = vld [vmem:[%s1 + $0x18] sm:$0xff]
  %v31 = vld [vmem:[%s1 + $0x20] sm:$0xff]
  %v32 = vld [vmem:[%s1 + $0x28] sm:$0xff]
  %v33 = vld [vmem:[%s1 + $0x30] sm:$0xff]
  %v34 = vld [vmem:[%s1 + $0x38] sm:$0xff]
  %v35 = vld [vmem:[%s1 + $0x40] sm:$0xff]
  %v36 = vld [vmem:[%s1 + $0x48] sm:$0xff]
  %v37 = vld [vmem:[%s1 + $0x50] sm:$0xff]
  %v38 = vld [vmem:[%s1 + $0x58] sm:$0xff]
  %v39 = vld [vmem:[%s1 + $0x60] sm:$0xff]
  %v40 = vld [vmem:[%s1 + $0x68] sm:$0xff]
  %v41 = vld [vmem:[%s1 + $0x70] sm:$0xff]
  %v42 = vld [vmem:[%s1 + $0x78] sm:$0xff]
  %v43 = vld [vmem:[%s1 + $0x80] sm:$0xff]
  %v44 = vld [vmem:[%s1 + $0x88] sm:$0xff]
  %v45 = vld [vmem:[%s1 + $0x90] sm:$0xff]
  %v46 = vld [vmem:[%s1 + $0x98] sm:$0xff]
  %v47 = vld [vmem:[%s1 + $0xa0] sm:$0xff]
  %v48 = vld [vmem:[%s1 + $0xa8] sm:$0xff]
  %v49 = vld [vmem:[%s1 + $0xb0] sm:$0xff]
  %v50 = vld [vmem:[%s1 + $0xb8] sm:$0xff]
  %v51 = vld [vmem:[%s1 + $0xc0] sm:$0xff]
  %v52 = vld [vmem:[%s1 + $0xc8] sm:$0xff]
  %v53 = vld [vmem:[%s1 + $0xd0] sm:$0xff]
  %v54 = vld [vmem:[%s1 + $0xd8] sm:$0xff]
  %v55 = vld [vmem:[%s1 + $0xe0] sm:$0xff]
  %v56 = vld [vmem:[%s1 + $0xe8] sm:$0xff]
  %v57 = vld [vmem:[%s1 + $0xf0] sm:$0xff]
  %v58 = vld [vmem:[%s1 + $0xf8] sm:$0xff]
  %v59 = vld [vmem:[%s1 + $0x100] sm:$0xff]
  %v60 = vld [vmem:[%s1 + $0x108] sm:$0xff]
  %v61 = vld [vmem:[%s1 + $0x110] sm:$0xff]
  %v62 = vld [vmem:[%s1 + $0x118] sm:$0xff]
  %v63 = vld [vmem:[%s1 + $0x120] sm:$0xff]
  %v64 = vld [vmem:[%s1 + $0x128] sm:$0xff]
  %v65 = vld [vmem:[%s1 + $0x130] sm:$0xff]
  %v66 = vld [vmem:[%s1 + $0x138] sm:$0xff]
  %v67 = vld [vmem:[%s1 + $0x140] sm:$0xff]
  %v68 = vld [vmem:[%s1 + $0x148] sm:$0xff]
  %v69 = vld [vmem:[%s1 + $0x150] sm:$0xff]
  %v70 = vld [vmem:[%s1 + $0x158] sm:$0xff]
  %v71 = vld [vmem:[%s1 + $0x160] sm:$0xff]
  %v72 = vld [vmem:[%s1 + $0x168] sm:$0xff]
  %v73 = vld [vmem:[%s1 + $0x170] sm:$0xff]
  %v74 = vld [vmem:[%s1 + $0x178] sm:$0xff]
  %v75 = vld [vmem:[%s1 + $0x180] sm:$0xff]
  %v76 = vld [vmem:[%s1 + $0x188] sm:$0xff]
  %v77 = vld [vmem:[%s1 + $0x190] sm:$0xff]
  %v78 = vld [vmem:[%s1 + $0x198] sm:$0xff]
  %v79 = vld [vmem:[%s1 + $0x1a0] sm:$0xff]
  %v80 = vld [vmem:[%s1 + $0x1a8] sm:$0xff]
  %v81 = vld [vmem:[%s1 + $0x1b0] sm:$0xff]
  %v82 = vld [vmem:[%s1 + $0x1b8] sm:$0xff]
  %v83 = vld [vmem:[%s1 + $0x1c0] sm:$0xff]
  %v84 = vld [vmem:[%s1 + $0x1c8] sm:$0xff]
  %v85 = vld [vmem:[%s1 + $0x1d0] sm:$0xff]
  %v86 = vld [vmem:[%s1 + $0x1d8] sm:$0xff]
  %v87 = vld [vmem:[%s1 + $0x1e0] sm:$0xff]
  %v88 = vld [vmem:[%s1 + $0x1e8] sm:$0xff]
  %v89 = vld [vmem:[%s1 + $0x1f0] sm:$0xff]
  %v90 = vld [vmem:[%s1 + $0x1f8] sm:$0xff]
  %v91 = vld [vmem:[%s1 + $0x200] sm:$0xff]
  %v92 = vld [vmem:[%s1 + $0x208] sm:$0xff]
  %v93 = vld [vmem:[%s1 + $0x210] sm:$0xff]
  %v94 = vld [vmem:[%s1 + $0x218] sm:$0xff]
  %v95 = vld [vmem:[%s1 + $0x220] sm:$0xff]
  %v96 = vld [vmem:[%s1 + $0x228] sm:$0xff]
  %v97 = vld [vmem:[%s1 + $0x230] sm:$0xff]
  %v98 = vld [vmem:[%s1 + $0x238] sm:$0xff]
  %v99 = vld [vmem:[%s1 + $0x240] sm:$0xff]
  %v100 = vld [vmem:[%s1 + $0x248] sm:$0xff]
  %v101 = vld [vmem:[%s1 + $0x250] sm:$0xff]
  %v102 = vld [vmem:[%s1 + $0x258] sm:$0xff]
  %v103 = vld [vmem:[%s1 + $0x260] sm:$0xff]
  %v104 = vld [vmem:[%s1 + $0x268] sm:$0xff]
  %v105 = vld [vmem:[%s1 + $0x270] sm:$0xff]
  %v106 = vld [vmem:[%s1 + $0x278] sm:$0xff]
  %v107 = vld [vmem:[%s1 + $0x280] sm:$0xff]
  %v108 = vld [vmem:[%s1 + $0x288] sm:$0xff]
  %v109 = vld [vmem:[%s1 + $0x290] sm:$0xff]
  %v110 = vld [vmem:[%s1 + $0x298] sm:$0xff]
  %v111 = vld [vmem:[%s1 + $0x2a0] sm:$0xff]
  %v112 = vld [vmem:[%s1 + $0x2a8] sm:$0xff]
  %v113 = vld [vmem:[%s1 + $0x2b0] sm:$0xff]
  %v114 = vld [vmem:[%s1 + $0x2b8] sm:$0xff]
  %v115 = vld [vmem:[%s1 + $0x2c0] sm:$0xff]
  %v116 = vld [vmem:[%s1 + $0x2c8] sm:$0xff]
  %v117 = vld [vmem:[%s1 + $0x2d0] sm:$0xff]
  %v118 = vld [vmem:[%s1 + $0x2d8] sm:$0xff]
  %v119 = vld [vmem:[%s1 + $0x2e0] sm:$0xff]
  %v120 = vld [vmem:[%s1 + $0x2e8] sm:$0xff]
  %v121 = vld [vmem:[%s1 + $0x2f0] sm:$0xff]
  %v122 = vld [vmem:[%s1 + $0x2f8] sm:$0xff]
  %v123 = vld [vmem:[%s1 + $0x300] sm:$0xff]
  %v124 = vld [vmem:[%s1 + $0x308] sm:$0xff]
  %v125 = vld [vmem:[%s1 + $0x310] sm:$0xff]
  %v126 = vld [vmem:[%s1 + $0x318] sm:$0xff]
  %v127 = vld [vmem:[%s1 + $0x320] sm:$0xff]
  %v128 = vld [vmem:[%s1 + $0x328] sm:$0xff]
  %v129 = vld [vmem:[%s1 + $0x330] sm:$0xff]
  %v130 = vld [vmem:[%s1 + $0x338] sm:$0xff]
  %v131 = vld [vmem:[%s1 + $0x340] sm:$0xff]
  %v132 = vld [vmem:[%s1 + $0x348] sm:$0xff]
  %v133 = vld [vmem:[%s1 + $0x350] sm:$0xff]
  %v134 = vld [vmem:[%s1 + $0x358] sm:$0xff]
  %v135 = vld [vmem:[%s1 + $0x360] sm:$0xff]
  %v136 = vld [vmem:[%s1 + $0x368] sm:$0xff]
  %v137 = vld [vmem:[%s1 + $0x370] sm:$0xff]
  %v138 = vld [vmem:[%s1 + $0x378] sm:$0xff]
  %v139 = vld [vmem:[%s1 + $0x380] sm:$0xff]
  %v140 = vld [vmem:[%s1 + $0x388] sm:$0xff]
  %v141 = vld [vmem:[%s1 + $0x390] sm:$0xff]
  %v142 = vld [vmem:[%s1 + $0x398] sm:$0xff]
  %v143 = vld [vmem:[%s1 + $0x3a0] sm:$0xff]
  %v144 = vld [vmem:[%s1 + $0x3a8] sm:$0xff]
  %v145 = vld [vmem:[%s1 + $0x3b0] sm:$0xff]
  %v146 = vld [vmem:[%s1 + $0x3b8] sm:$0xff]
  %v147 = vld [vmem:[%s1 + $0x3c0] sm:$0xff]
  %v148 = vld [vmem:[%s1 + $0x3c8] sm:$0xff]
  %v149 = vld [vmem:[%s1 + $0x3d0] sm:$0xff]
  %v150 = vld [vmem:[%s1 + $0x3d8] sm:$0xff]
  %v151 = vld [vmem:[%s1 + $0x3e0] sm:$0xff]
  %v152 = vld [vmem:[%s1 + $0x3e8] sm:$0xff]
  %v153 = vld [vmem:[%s1 + $0x3f0] sm:$0xff]
  %v154 = vld [vmem:[%s1 + $0x3f8] sm:$0xff]
  %v155 = vld [vmem:[%s1 + $0x400] sm:$0xff]
  %v156 = vld [vmem:[%s1 + $0x408] sm:$0xff]
  %v157 = vld [vmem:[%s1 + $0x410] sm:$0xff]
  %v158 = vld [vmem:[%s1 + $0x418] sm:$0xff]
  %v159 = vld [vmem:[%s1 + $0x420] sm:$0xff]
  %v160 = vld [vmem:[%s1 + $0x428] sm:$0xff]
  %v161 = vld [vmem:[%s1 + $0x430] sm:$0xff]
  %v162 = vld [vmem:[%s1 + $0x438] sm:$0xff]
  %v163 = vld [vmem:[%s1 + $0x440] sm:$0xff]
  %v164 = vld [vmem:[%s1 + $0x448] sm:$0xff]
  %v165 = vld [vmem:[%s1 + $0x450] sm:$0xff]
  %v166 = vld [vmem:[%s1 + $0x458] sm:$0xff]
  %v167 = vld [vmem:[%s1 + $0x460] sm:$0xff]
  %v168 = vld [vmem:[%s1 + $0x468] sm:$0xff]
  %v169 = vld [vmem:[%s1 + $0x470] sm:$0xff]
  %v170 = vld [vmem:[%s1 + $0x478] sm:$0xff]
  %v171 = vld [vmem:[%s1 + $0x480] sm:$0xff]
  %v172 = vld [vmem:[%s1 + $0x488] sm:$0xff]
  %v173 = vld [vmem:[%s1 + $0x490] sm:$0xff]
  %v174 = vld [vmem:[%s1 + $0x498] sm:$0xff]
  %v175 = vld [vmem:[%s1 + $0x4a0] sm:$0xff]
  %v176 = vld [vmem:[%s1 + $0x4a8] sm:$0xff]
  %v177 = vld [vmem:[%s1 + $0x4b0] sm:$0xff]
  %v178 = vld [vmem:[%s1 + $0x4b8] sm:$0xff]
  %v179 = vld [vmem:[%s1 + $0x4c0] sm:$0xff]
  %v180 = vld [vmem:[%s1 + $0x4c8] sm:$0xff]
  %v181 = vld [vmem:[%s1 + $0x4d0] sm:$0xff]
  %v182 = vld [vmem:[%s1 + $0x4d8] sm:$0xff]
  %v183 = vld [vmem:[%s1 + $0x4e0] sm:$0xff]
  %v184 = vld [vmem:[%s1 + $0x4e8] sm:$0xff]
  %v185 = vld [vmem:[%s1 + $0x4f0] sm:$0xff]
  %v186 = vld [vmem:[%s1 + $0x4f8] sm:$0xff]
  %v187 = vld [vmem:[%s1 + $0x500] sm:$0xf]
  %v188 = vld [vmem:[%s1 + $0x508] sm:$0xf]
  %v189 = vld [vmem:[%s1 + $0x510] sm:$0xf]
  %v190 = vld [vmem:[%s1 + $0x518] sm:$0xf]
  %v191 = vld [vmem:[%s2] sm:$0xff]
  %v192 = vld [vmem:[%s2 + $0x8] sm:$0xff]
  %v193 = vld [vmem:[%s2 + $0x10] sm:$0x3]
  %195 = vset.pattern.permute.xlu0 0
  %196 = vperm.xlu0 %195, %v191
  %v197 = vpop.permute.xlu0 %196
  %200 = vset.pattern.permute.xlu0 0
  %201 = vperm.xlu0 %200, %v192
  %v202 = vpop.permute.xlu0 %201
  %205 = vset.pattern.permute.xlu0 0
  %206 = vperm.xlu0 %205, %v193
  %v207 = vpop.permute.xlu0 %206
  %vm209 = vcmask 556032
  %v211 = vsel %vm209, %v20, 0
  %v214 = vsel %vm209, %v23, 0
  %v217 = vsel %vm209, %v26, 0
  %vm219 = vcmask 1043456
  %v221 = vsel %vm219, %v187, 0
  %v224 = vsel %vm219, %v188, 0
  %v227 = vsel %vm219, %v189, 0
  %v230 = vsel %vm219, %v190, 0
  %232 = vmatprep.subr.mxu0 %v28
  %233 = vmatpush1.msra.mxu0 %v27
  %234 = vmatprep.subr.mxu0 %v32
  %235 = vmatpush1.msra.mxu0 %v31
  %236 = vmatprep.subr.mxu0 %v36
  %237 = vmatpush1.msra.mxu0 %v35
  %238 = vmatprep.subr.mxu0 %v40
  %239 = vmatpush1.msra.mxu0 %v39
  %240 = vmatprep.subr.mxu0 %v44
  %241 = vmatpush1.msra.mxu0 %v43
  %242 = vmatprep.subr.mxu0 %v48
  %243 = vmatpush1.msra.mxu0 %v47
  %244 = vmatprep.subr.mxu0 %v52
  %245 = vmatpush1.msra.mxu0 %v51
  %246 = vmatprep.subr.mxu0 %v56
  %247 = vmatpush1.msra.mxu0 %v55
  %248 = vmatprep.subr.mxu0 %v60
  %249 = vmatpush1.msra.mxu0 %v59
  %250 = vmatprep.subr.mxu0 %v64
  %251 = vmatpush1.msra.mxu0 %v63
  %252 = vmatprep.subr.mxu0 %v68
  %253 = vmatpush1.msra.mxu0 %v67
  %254 = vmatprep.subr.mxu0 %v72
  %255 = vmatpush1.msra.mxu0 %v71
  %256 = vmatprep.subr.mxu0 %v76
  %257 = vmatpush1.msra.mxu0 %v75
  %258 = vmatprep.subr.mxu0 %v80
  %259 = vmatpush1.msra.mxu0 %v79
  %260 = vmatprep.subr.mxu0 %v84
  %261 = vmatpush1.msra.mxu0 %v83
  %262 = vmatprep.subr.mxu0 %v88
  %263 = vmatpush1.msra.mxu0 %v87
  %264 = vmatprep.subr.mxu0 %v92
  %265 = vmatpush1.msra.mxu0 %v91
  %266 = vmatprep.subr.mxu0 %v96
  %267 = vmatpush1.msra.mxu0 %v95
  %268 = vmatprep.subr.mxu0 %v100
  %269 = vmatpush1.msra.mxu0 %v99
  %270 = vmatprep.subr.mxu0 %v104
  %271 = vmatpush1.msra.mxu0 %v103
  %272 = vmatprep.subr.mxu0 %v108
  %273 = vmatpush1.msra.mxu0 %v107
  %274 = vmatprep.subr.mxu0 %v112
  %275 = vmatpush1.msra.mxu0 %v111
  %276 = vmatprep.subr.mxu0 %v116
  %277 = vmatpush1.msra.mxu0 %v115
  %278 = vmatprep.subr.mxu0 %v120
  %279 = vmatpush1.msra.mxu0 %v119
  %280 = vmatprep.subr.mxu0 %v124
  %281 = vmatpush1.msra.mxu0 %v123
  %282 = vmatprep.subr.mxu0 %v128
  %283 = vmatpush1.msra.mxu0 %v127
  %284 = vmatprep.subr.mxu0 %v132
  %285 = vmatpush1.msra.mxu0 %v131
  %286 = vmatprep.subr.mxu0 %v136
  %287 = vmatpush1.msra.mxu0 %v135
  %288 = vmatprep.subr.mxu0 %v140
  %289 = vmatpush1.msra.mxu0 %v139
  %290 = vmatprep.subr.mxu0 %v144
  %291 = vmatpush1.msra.mxu0 %v143
  %292 = vmatprep.subr.mxu0 %v148
  %293 = vmatpush1.msra.mxu0 %v147
  %294 = vmatprep.subr.mxu0 %v152
  %295 = vmatpush1.msra.mxu0 %v151
  %296 = vmatprep.mubr.f32.mxu0 %v19
  %297 = vmatmul.mubr.f32.gmra.mrb[0].mxu0 %v18
  %v298 = vpop.f32.mrb[0].mxu0
  %v299 = vadd.f32 %v197, %v298
  %v300 = vpop.f32.mrb[0].mxu0
  %v301 = vadd.f32 %v197, %v300
  %302 = vmatprep.mubr.f32.mxu0 %v22
  %303 = vmatmul.mubr.f32.gmra.mrb[0].mxu0 %v21
  %v304 = vpop.f32.mrb[0].mxu0
  %v305 = vadd.f32 %v202, %v304
  %v306 = vpop.f32.mrb[0].mxu0
  %v307 = vadd.f32 %v202, %v306
  %308 = vmatprep.mubr.f32.mxu0 %v25
  %309 = vmatmul.mubr.f32.gmra.mrb[0].mxu0 %v24
  %v310 = vpop.f32.mrb[0].mxu0
  %v311 = vadd.f32 %v207, %v310
  %v312 = vpop.f32.mrb[0].mxu0
  %v313 = vadd.f32 %v207, %v312
  %314 = vdwg.mxu0
  %315 = vmatprep.subr.mxu0 %v156
  %316 = vmatpush1.msra.mxu0 %v155
  %317 = vmatprep.subr.mxu0 %v160
  %318 = vmatpush1.msra.mxu0 %v159
  %319 = vmatprep.subr.mxu0 %v164
  %320 = vmatpush1.msra.mxu0 %v163
  %321 = vmatprep.subr.mxu0 %v168
  %322 = vmatpush1.msra.mxu0 %v167
  %323 = vmatprep.subr.mxu0 %v172
  %324 = vmatpush1.msra.mxu0 %v171
  %325 = vmatprep.subr.mxu0 %v176
  %326 = vmatpush1.msra.mxu0 %v175
  %327 = vmatprep.subr.mxu0 %v180
  %328 = vmatpush1.msra.mxu0 %v179
  %329 = vmatprep.subr.mxu0 %v184
  %330 = vmatpush1.msra.mxu0 %v183
  %331 = vmatprep.subr.mxu0 %v224
  %332 = vmatpush1.msra.mxu0 %v221
  %333 = vmatprep.subr.mxu0 0.0
  %334 = vmatpush1.msra.mxu0 0.0
  %335 = vmatprep.subr.mxu0 0.0
  %336 = vmatpush1.msra.mxu0 0.0
  %337 = vmatprep.subr.mxu0 0.0
  %338 = vmatpush1.msra.mxu0 0.0
  %339 = vmatprep.subr.mxu0 0.0
  %340 = vmatpush1.msra.mxu0 0.0
  %341 = vmatprep.subr.mxu0 0.0
  %342 = vmatpush1.msra.mxu0 0.0
  %343 = vmatprep.subr.mxu0 0.0
  %344 = vmatpush1.msra.mxu0 0.0
  %345 = vmatprep.subr.mxu0 0.0
  %346 = vmatpush1.msra.mxu0 0.0
  %347 = vmatprep.subr.mxu0 0.0
  %348 = vmatpush1.msra.mxu0 0.0
  %349 = vmatprep.subr.mxu0 0.0
  %350 = vmatpush1.msra.mxu0 0.0
  %351 = vmatprep.subr.mxu0 0.0
  %352 = vmatpush1.msra.mxu0 0.0
  %353 = vmatprep.subr.mxu0 0.0
  %354 = vmatpush1.msra.mxu0 0.0
  %355 = vmatprep.subr.mxu0 0.0
  %356 = vmatpush1.msra.mxu0 0.0
  %357 = vmatprep.subr.mxu0 0.0
  %358 = vmatpush1.msra.mxu0 0.0
  %359 = vmatprep.subr.mxu0 0.0
  %360 = vmatpush1.msra.mxu0 0.0
  %361 = vmatprep.subr.mxu0 0.0
  %362 = vmatpush1.msra.mxu0 0.0
  %363 = vmatprep.subr.mxu0 0.0
  %364 = vmatpush1.msra.mxu0 0.0
  %365 = vmatprep.subr.mxu0 0.0
  %366 = vmatpush1.msra.mxu0 0.0
  %367 = vmatprep.subr.mxu0 0.0
  %368 = vmatpush1.msra.mxu0 0.0
  %369 = vmatprep.subr.mxu0 0.0
  %370 = vmatpush1.msra.mxu0 0.0
  %371 = vmatprep.subr.mxu0 0.0
  %372 = vmatpush1.msra.mxu0 0.0
  %373 = vmatprep.subr.mxu0 0.0
  %374 = vmatpush1.msra.mxu0 0.0
  %375 = vmatprep.subr.mxu0 0.0
  %376 = vmatpush1.msra.mxu0 0.0
  %377 = vmatprep.subr.mxu0 0.0
  %378 = vmatpush1.msra.mxu0 0.0
  %379 = vmatprep.mubr.f32.mxu0 0.0
  %380 = vmatmul.mubr.f32.gmra.mrb[0].mxu0 %v211
  %v381 = vpop.f32.mrb[0].mxu0
  %v382 = vadd.f32 %v299, %v381
  %v383 = vpop.f32.mrb[0].mxu0
  %v384 = vadd.f32 %v301, %v383
  %385 = vmatprep.mubr.f32.mxu0 0.0
  %386 = vmatmul.mubr.f32.gmra.mrb[0].mxu0 %v214
  %v387 = vpop.f32.mrb[0].mxu0
  %v388 = vadd.f32 %v305, %v387
  %v389 = vpop.f32.mrb[0].mxu0
  %v390 = vadd.f32 %v307, %v389
  %391 = vmatprep.mubr.f32.mxu0 0.0
  %392 = vmatmul.mubr.f32.gmra.mrb[0].mxu0 %v217
  %v393 = vpop.f32.mrb[0].mxu0
  %v394 = vadd.f32 %v311, %v393
  %v395 = vpop.f32.mrb[0].mxu0
  %v396 = vadd.f32 %v313, %v395
  %397 = vdwg.mxu0
  %398 = vmatprep.subr.mxu0 %v30
  %399 = vmatpush1.msra.mxu0 %v29
  %400 = vmatprep.subr.mxu0 %v34
  %401 = vmatpush1.msra.mxu0 %v33
  %402 = vmatprep.subr.mxu0 %v38
  %403 = vmatpush1.msra.mxu0 %v37
  %404 = vmatprep.subr.mxu0 %v42
  %405 = vmatpush1.msra.mxu0 %v41
  %406 = vmatprep.subr.mxu0 %v46
  %407 = vmatpush1.msra.mxu0 %v45
  %408 = vmatprep.subr.mxu0 %v50
  %409 = vmatpush1.msra.mxu0 %v49
  %410 = vmatprep.subr.mxu0 %v54
  %411 = vmatpush1.msra.mxu0 %v53
  %412 = vmatprep.subr.mxu0 %v58
  %413 = vmatpush1.msra.mxu0 %v57
  %414 = vmatprep.subr.mxu0 %v62
  %415 = vmatpush1.msra.mxu0 %v61
  %416 = vmatprep.subr.mxu0 %v66
  %417 = vmatpush1.msra.mxu0 %v65
  %418 = vmatprep.subr.mxu0 %v70
  %419 = vmatpush1.msra.mxu0 %v69
  %420 = vmatprep.subr.mxu0 %v74
  %421 = vmatpush1.msra.mxu0 %v73
  %422 = vmatprep.subr.mxu0 %v78
  %423 = vmatpush1.msra.mxu0 %v77
  %424 = vmatprep.subr.mxu0 %v82
  %425 = vmatpush1.msra.mxu0 %v81
  %426 = vmatprep.subr.mxu0 %v86
  %427 = vmatpush1.msra.mxu0 %v85
  %428 = vmatprep.subr.mxu0 %v90
  %429 = vmatpush1.msra.mxu0 %v89
  %430 = vmatprep.subr.mxu0 %v94
  %431 = vmatpush1.msra.mxu0 %v93
  %432 = vmatprep.subr.mxu0 %v98
  %433 = vmatpush1.msra.mxu0 %v97
  %434 = vmatprep.subr.mxu0 %v102
  %435 = vmatpush1.msra.mxu0 %v101
  %436 = vmatprep.subr.mxu0 %v106
  %437 = vmatpush1.msra.mxu0 %v105
  %438 = vmatprep.subr.mxu0 %v110
  %439 = vmatpush1.msra.mxu0 %v109
  %440 = vmatprep.subr.mxu0 %v114
  %441 = vmatpush1.msra.mxu0 %v113
  %442 = vmatprep.subr.mxu0 %v118
  %443 = vmatpush1.msra.mxu0 %v117
  %444 = vmatprep.subr.mxu0 %v122
  %445 = vmatpush1.msra.mxu0 %v121
  %446 = vmatprep.subr.mxu0 %v126
  %447 = vmatpush1.msra.mxu0 %v125
  %448 = vmatprep.subr.mxu0 %v130
  %449 = vmatpush1.msra.mxu0 %v129
  %450 = vmatprep.subr.mxu0 %v134
  %451 = vmatpush1.msra.mxu0 %v133
  %452 = vmatprep.subr.mxu0 %v138
  %453 = vmatpush1.msra.mxu0 %v137
  %454 = vmatprep.subr.mxu0 %v142
  %455 = vmatpush1.msra.mxu0 %v141
  %456 = vmatprep.subr.mxu0 %v146
  %457 = vmatpush1.msra.mxu0 %v145
  %458 = vmatprep.subr.mxu0 %v150
  %459 = vmatpush1.msra.mxu0 %v149
  %460 = vmatprep.subr.mxu0 %v154
  %461 = vmatpush1.msra.mxu0 %v153
  %462 = vmatprep.mubr.f32.mxu0 %v19
  %463 = vmatmul.mubr.f32.gmra.mrb[0].mxu0 %v18
  %v464 = vpop.f32.mrb[0].mxu0
  %v465 = vadd.f32 %v197, %v464
  %v466 = vpop.f32.mrb[0].mxu0
  %v467 = vadd.f32 %v197, %v466
  %468 = vmatprep.mubr.f32.mxu0 %v22
  %469 = vmatmul.mubr.f32.gmra.mrb[0].mxu0 %v21
  %v470 = vpop.f32.mrb[0].mxu0
  %v471 = vadd.f32 %v202, %v470
  %v472 = vpop.f32.mrb[0].mxu0
  %v473 = vadd.f32 %v202, %v472
  %474 = vmatprep.mubr.f32.mxu0 %v25
  %475 = vmatmul.mubr.f32.gmra.mrb[0].mxu0 %v24
  %v476 = vpop.f32.mrb[0].mxu0
  %v477 = vadd.f32 %v207, %v476
  %v478 = vpop.f32.mrb[0].mxu0
  %v479 = vadd.f32 %v207, %v478
  %480 = vdwg.mxu0
  %481 = vmatprep.subr.mxu0 %v158
  %482 = vmatpush1.msra.mxu0 %v157
  %483 = vmatprep.subr.mxu0 %v162
  %484 = vmatpush1.msra.mxu0 %v161
  %485 = vmatprep.subr.mxu0 %v166
  %486 = vmatpush1.msra.mxu0 %v165
  %487 = vmatprep.subr.mxu0 %v170
  %488 = vmatpush1.msra.mxu0 %v169
  %489 = vmatprep.subr.mxu0 %v174
  %490 = vmatpush1.msra.mxu0 %v173
  %491 = vmatprep.subr.mxu0 %v178
  %492 = vmatpush1.msra.mxu0 %v177
  %493 = vmatprep.subr.mxu0 %v182
  %494 = vmatpush1.msra.mxu0 %v181
  %495 = vmatprep.subr.mxu0 %v186
  %496 = vmatpush1.msra.mxu0 %v185
  %497 = vmatprep.subr.mxu0 %v230
  %498 = vmatpush1.msra.mxu0 %v227
  %499 = vmatprep.subr.mxu0 0.0
  %500 = vmatpush1.msra.mxu0 0.0
  %501 = vmatprep.subr.mxu0 0.0
  %502 = vmatpush1.msra.mxu0 0.0
  %503 = vmatprep.subr.mxu0 0.0
  %504 = vmatpush1.msra.mxu0 0.0
  %505 = vmatprep.subr.mxu0 0.0
  %506 = vmatpush1.msra.mxu0 0.0
  %507 = vmatprep.subr.mxu0 0.0
  %508 = vmatpush1.msra.mxu0 0.0
  %509 = vmatprep.subr.mxu0 0.0
  %510 = vmatpush1.msra.mxu0 0.0
  %511 = vmatprep.subr.mxu0 0.0
  %512 = vmatpush1.msra.mxu0 0.0
  %513 = vmatprep.subr.mxu0 0.0
  %514 = vmatpush1.msra.mxu0 0.0
  %515 = vmatprep.subr.mxu0 0.0
  %516 = vmatpush1.msra.mxu0 0.0
  %517 = vmatprep.subr.mxu0 0.0
  %518 = vmatpush1.msra.mxu0 0.0
  %519 = vmatprep.subr.mxu0 0.0
  %520 = vmatpush1.msra.mxu0 0.0
  %521 = vmatprep.subr.mxu0 0.0
  %522 = vmatpush1.msra.mxu0 0.0
  %523 = vmatprep.subr.mxu0 0.0
  %524 = vmatpush1.msra.mxu0 0.0
  %525 = vmatprep.subr.mxu0 0.0
  %526 = vmatpush1.msra.mxu0 0.0
  %527 = vmatprep.subr.mxu0 0.0
  %528 = vmatpush1.msra.mxu0 0.0
  %529 = vmatprep.subr.mxu0 0.0
  %530 = vmatpush1.msra.mxu0 0.0
  %531 = vmatprep.subr.mxu0 0.0
  %532 = vmatpush1.msra.mxu0 0.0
  %533 = vmatprep.subr.mxu0 0.0
  %534 = vmatpush1.msra.mxu0 0.0
  %535 = vmatprep.subr.mxu0 0.0
  %536 = vmatpush1.msra.mxu0 0.0
  %537 = vmatprep.subr.mxu0 0.0
  %538 = vmatpush1.msra.mxu0 0.0
  %539 = vmatprep.subr.mxu0 0.0
  %540 = vmatpush1.msra.mxu0 0.0
  %541 = vmatprep.subr.mxu0 0.0
  %542 = vmatpush1.msra.mxu0 0.0
  %543 = vmatprep.subr.mxu0 0.0
  %544 = vmatpush1.msra.mxu0 0.0
  %545 = vmatprep.mubr.f32.mxu0 0.0
  %546 = vmatmul.mubr.f32.gmra.mrb[0].mxu0 %v211
  %v547 = vpop.f32.mrb[0].mxu0
  %v548 = vadd.f32 %v465, %v547
  %v549 = vpop.f32.mrb[0].mxu0
  %v550 = vadd.f32 %v467, %v549
  %551 = vmatprep.mubr.f32.mxu0 0.0
  %552 = vmatmul.mubr.f32.gmra.mrb[0].mxu0 %v214
  %v553 = vpop.f32.mrb[0].mxu0
  %v554 = vadd.f32 %v471, %v553
  %v555 = vpop.f32.mrb[0].mxu0
  %v556 = vadd.f32 %v473, %v555
  %557 = vmatprep.mubr.f32.mxu0 0.0
  %558 = vmatmul.mubr.f32.gmra.mrb[0].mxu0 %v217
  %v559 = vpop.f32.mrb[0].mxu0
  %v560 = vadd.f32 %v477, %v559
  %v561 = vpop.f32.mrb[0].mxu0
  %v562 = vadd.f32 %v479, %v561
  %563 = vdwg.mxu0
  %s564 = sld [smem:[#allocation2]]
  %vm565 = vcmp.ge.f32.partialorder %v382, 0.0
  %vm566 = vcmp.ge.f32.partialorder %v384, 0.0
  %vm567 = vcmp.ge.f32.partialorder %v548, 0.0
  %vm568 = vcmp.ge.f32.partialorder %v550, 0.0
  %vm569 = vcmp.ge.f32.partialorder %v388, 0.0
  %vm570 = vcmp.ge.f32.partialorder %v390, 0.0
  %vm571 = vcmp.ge.f32.partialorder %v554, 0.0
  %vm572 = vcmp.ge.f32.partialorder %v556, 0.0
  %vm573 = vcmp.ge.f32.partialorder %v394, 0.0
  %vm574 = vcmp.ge.f32.partialorder %v396, 0.0
  %vm575 = vcmp.ge.f32.partialorder %v560, 0.0
  %vm576 = vcmp.ge.f32.partialorder %v562, 0.0
  %v577 = vstv %s564
  %v578 = vmul.f32 %v577, %v382
  %v579 = vmul.f32 %v577, %v384
  %v580 = vmul.f32 %v577, %v548
  %v581 = vmul.f32 %v577, %v550
  %v582 = vmul.f32 %v577, %v388
  %v583 = vmul.f32 %v577, %v390
  %v584 = vmul.f32 %v577, %v554
  %v585 = vmul.f32 %v577, %v556
  %v586 = vmul.f32 %v577, %v394
  %v587 = vmul.f32 %v577, %v396
  %v588 = vmul.f32 %v577, %v560
  %v589 = vmul.f32 %v577, %v562
  %v590 = vsel %vm565, %v382, %v578
  %v591 = vsel %vm566, %v384, %v579
  %v592 = vsel %vm567, %v548, %v580
  %v593 = vsel %vm568, %v550, %v581
  %v594 = vsel %vm569, %v388, %v582
  %v595 = vsel %vm570, %v390, %v583
  %v596 = vsel %vm571, %v554, %v584
  %v597 = vsel %vm572, %v556, %v585
  %v598 = vsel %vm573, %v394, %v586
  %v599 = vsel %vm574, %v396, %v587
  %v600 = vsel %vm575, %v560, %v588
  %v601 = vsel %vm576, %v562, %v589
  %602 = vst [vmem:[%s4] sm:$0xff] %v590
  %603 = vst [vmem:[%s4 + $0x8] sm:$0xff] %v591
  %604 = vst [vmem:[%s4 + $0x10] sm:$0xff] %v592
  %605 = vst [vmem:[%s4 + $0x18] sm:$0xff] %v593
  %606 = vst [vmem:[%s4 + $0x20] sm:$0xff] %v594
  %607 = vst [vmem:[%s4 + $0x28] sm:$0xff] %v595
  %608 = vst [vmem:[%s4 + $0x30] sm:$0xff] %v596
  %609 = vst [vmem:[%s4 + $0x38] sm:$0xff] %v597
  %610 = vst [vmem:[%s4 + $0x40] sm:$0x3] %v598
  %611 = vst [vmem:[%s4 + $0x48] sm:$0x3] %v599
  %612 = vst [vmem:[%s4 + $0x50] sm:$0x3] %v600
  %613 = vst [vmem:[%s4 + $0x58] sm:$0x3] %v601
  // Predicated region
  $region18: #{lp_attention_forward.9} parent=0 // pred_check
    _
  $region19: #{lp_attention_forward.9} parent=0 // pred_check_branch
    %615 = sbr.rel (0) target = $region21
  $region20: #{lp_attention_forward.9} parent=0 // pred_region
    _
  $region21: #{lp_attention_forward.9} parent=0 // pred_fallthru
    _
  // Predicated region
  $region22: #{lp_attention_forward.9} parent=0 // pred_check
    _
  $region23: #{lp_attention_forward.9} parent=0 // pred_check_branch
    %617 = sbr.rel (0) target = $region25
  $region24: #{lp_attention_forward.9} parent=0 // pred_region
    _
  $region25: #{lp_attention_forward.9} parent=0 // pred_fallthru
    _

// kernel: lp_attention_forward.10
$region0: #{lp_attention_forward.10}
  #allocation0 [shape = 'u32[]', space=smem, size = 0x4, offset = 0x4, fixed_abs, tag = 'smem constant byte address 0x4 - core index']
  #allocation1 [shape = 'u32[144,128]{1,0:T(1,128)}', space=vmem, size = 0x12000, scoped, tag = 'internal scratch']
  #allocation2 [shape = 'f32[1,1]{1,0:T(1,128)S(6)}', space=smem, size = 0x200, scoped, tag = 'scoped memory for lp_attention_forward.10']
  %s0 = inlined_call_operand.vmem [shape: f32[18,16,16], index: 0, kind: input, shape index: {}]
  %s1 = inlined_call_operand.vmem [shape: f32[18,16,16], index: 1, kind: input, shape index: {}]
  %s2 = inlined_call_operand.vmem [shape: f32[18,16,16], index: 2, kind: input, shape index: {}]
  %s3 = inlined_call_operand.<no memory space> [shape: f32[1,1], index: 3, kind: input, shape index: {}]
  %s4 = inlined_call_operand.vmem [shape: f32[18,16,16], index: 4, kind: output, shape index: {}]
  %s5 = sld [smem:[#allocation0]]
  $region26: #{lp_attention_forward.10} parent=0
    _
  %s7 = ssub.s32 1, %s5
  %s8 = scalar_select 0, %s7, %s5
  %9 = sst [smem:[#allocation2]] %s3
  // Predicated region
  $region2: #{lp_attention_forward.10} parent=0 // pred_check
    _
  $region3: #{lp_attention_forward.10} parent=0 // pred_check_branch
    %11 = sbr.rel (0) target = $region5
  $region4: #{lp_attention_forward.10} parent=0 // pred_region
    _
  $region5: #{lp_attention_forward.10} parent=0 // pred_fallthru
    _
  // Predicated region
  $region6: #{lp_attention_forward.10} parent=0 // pred_check
    _
  $region7: #{lp_attention_forward.10} parent=0 // pred_check_branch
    %13 = sbr.rel (0) target = $region9
  $region8: #{lp_attention_forward.10} parent=0 // pred_region
    _
  $region9: #{lp_attention_forward.10} parent=0 // pred_fallthru
    _
  // Predicated region
  $region10: #{lp_attention_forward.10} parent=0 // pred_check
    _
  $region11: #{lp_attention_forward.10} parent=0 // pred_check_branch
    %15 = sbr.rel (0) target = $region13
  $region12: #{lp_attention_forward.10} parent=0 // pred_region
    _
  $region13: #{lp_attention_forward.10} parent=0 // pred_fallthru
    _
  // Predicated region
  $region14: #{lp_attention_forward.10} parent=0 // pred_check
    _
  $region15: #{lp_attention_forward.10} parent=0 // pred_check_branch
    %17 = sbr.rel (0) target = $region17
  $region16: #{lp_attention_forward.10} parent=0 // pred_region
    _
  $region17: #{lp_attention_forward.10} parent=0 // pred_fallthru
    _
  %s18 = sld [smem:[#allocation2]]
  %v19 = vld [vmem:[%s0] sm:$0xff]
  %v20 = vld [vmem:[%s0 + $0x8] sm:$0xff]
  %v21 = vld [vmem:[%s0 + $0x10] sm:$0xff]
  %v22 = vld [vmem:[%s0 + $0x18] sm:$0xff]
  %v23 = vld [vmem:[%s0 + $0x20] sm:$0xff]
  %v24 = vld [vmem:[%s0 + $0x28] sm:$0xff]
  %v25 = vld [vmem:[%s0 + $0x30] sm:$0xff]
  %v26 = vld [vmem:[%s0 + $0x38] sm:$0xff]
  %v27 = vld [vmem:[%s0 + $0x40] sm:$0xff]
  %v28 = vld [vmem:[%s0 + $0x48] sm:$0xff]
  %v29 = vld [vmem:[%s0 + $0x50] sm:$0xff]
  %v30 = vld [vmem:[%s0 + $0x58] sm:$0xff]
  %v31 = vld [vmem:[%s0 + $0x60] sm:$0xff]
  %v32 = vld [vmem:[%s0 + $0x68] sm:$0xff]
  %v33 = vld [vmem:[%s0 + $0x70] sm:$0xff]
  %v34 = vld [vmem:[%s0 + $0x78] sm:$0xff]
  %v35 = vld [vmem:[%s0 + $0x80] sm:$0xff]
  %v36 = vld [vmem:[%s0 + $0x88] sm:$0xff]
  %v37 = vld [vmem:[%s0 + $0x90] sm:$0xff]
  %v38 = vld [vmem:[%s0 + $0x98] sm:$0xff]
  %v39 = vld [vmem:[%s0 + $0xa0] sm:$0xff]
  %v40 = vld [vmem:[%s0 + $0xa8] sm:$0xff]
  %v41 = vld [vmem:[%s0 + $0xb0] sm:$0xff]
  %v42 = vld [vmem:[%s0 + $0xb8] sm:$0xff]
  %v43 = vld [vmem:[%s0 + $0xc0] sm:$0xff]
  %v44 = vld [vmem:[%s0 + $0xc8] sm:$0xff]
  %v45 = vld [vmem:[%s0 + $0xd0] sm:$0xff]
  %v46 = vld [vmem:[%s0 + $0xd8] sm:$0xff]
  %v47 = vld [vmem:[%s0 + $0xe0] sm:$0xff]
  %v48 = vld [vmem:[%s0 + $0xe8] sm:$0xff]
  %v49 = vld [vmem:[%s0 + $0xf0] sm:$0xff]
  %v50 = vld [vmem:[%s0 + $0xf8] sm:$0xff]
  %v51 = vld [vmem:[%s0 + $0x100] sm:$0xff]
  %v52 = vld [vmem:[%s0 + $0x108] sm:$0xff]
  %v53 = vld [vmem:[%s0 + $0x110] sm:$0xff]
  %v54 = vld [vmem:[%s0 + $0x118] sm:$0xff]
  %vm55 = vcmp.ge.f32.partialorder %v19, 0.0
  %vm56 = vcmp.ge.f32.partialorder %v20, 0.0
  %vm57 = vcmp.ge.f32.partialorder %v21, 0.0
  %vm58 = vcmp.ge.f32.partialorder %v22, 0.0
  %vm59 = vcmp.ge.f32.partialorder %v23, 0.0
  %vm60 = vcmp.ge.f32.partialorder %v24, 0.0
  %vm61 = vcmp.ge.f32.partialorder %v25, 0.0
  %vm62 = vcmp.ge.f32.partialorder %v26, 0.0
  %vm63 = vcmp.ge.f32.partialorder %v27, 0.0
  %vm64 = vcmp.ge.f32.partialorder %v28, 0.0
  %vm65 = vcmp.ge.f32.partialorder %v29, 0.0
  %vm66 = vcmp.ge.f32.partialorder %v30, 0.0
  %vm67 = vcmp.ge.f32.partialorder %v31, 0.0
  %vm68 = vcmp.ge.f32.partialorder %v32, 0.0
  %vm69 = vcmp.ge.f32.partialorder %v33, 0.0
  %vm70 = vcmp.ge.f32.partialorder %v34, 0.0
  %vm71 = vcmp.ge.f32.partialorder %v35, 0.0
  %vm72 = vcmp.ge.f32.partialorder %v36, 0.0
  %vm73 = vcmp.ge.f32.partialorder %v37, 0.0
  %vm74 = vcmp.ge.f32.partialorder %v38, 0.0
  %vm75 = vcmp.ge.f32.partialorder %v39, 0.0
  %vm76 = vcmp.ge.f32.partialorder %v40, 0.0
  %vm77 = vcmp.ge.f32.partialorder %v41, 0.0
  %vm78 = vcmp.ge.f32.partialorder %v42, 0.0
  %vm79 = vcmp.ge.f32.partialorder %v43, 0.0
  %vm80 = vcmp.ge.f32.partialorder %v44, 0.0
  %vm81 = vcmp.ge.f32.partialorder %v45, 0.0
  %vm82 = vcmp.ge.f32.partialorder %v46, 0.0
  %vm83 = vcmp.ge.f32.partialorder %v47, 0.0
  %vm84 = vcmp.ge.f32.partialorder %v48, 0.0
  %vm85 = vcmp.ge.f32.partialorder %v49, 0.0
  %vm86 = vcmp.ge.f32.partialorder %v50, 0.0
  %vm87 = vcmp.ge.f32.partialorder %v51, 0.0
  %vm88 = vcmp.ge.f32.partialorder %v52, 0.0
  %vm89 = vcmp.ge.f32.partialorder %v53, 0.0
  %vm90 = vcmp.ge.f32.partialorder %v54, 0.0
  %v91 = vstv %s18
  %v92 = vmul.f32 %v91, %v19
  %v93 = vmul.f32 %v91, %v20
  %v94 = vmul.f32 %v91, %v21
  %v95 = vmul.f32 %v91, %v22
  %v96 = vmul.f32 %v91, %v23
  %v97 = vmul.f32 %v91, %v24
  %v98 = vmul.f32 %v91, %v25
  %v99 = vmul.f32 %v91, %v26
  %v100 = vmul.f32 %v91, %v27
  %v101 = vmul.f32 %v91, %v28
  %v102 = vmul.f32 %v91, %v29
  %v103 = vmul.f32 %v91, %v30
  %v104 = vmul.f32 %v91, %v31
  %v105 = vmul.f32 %v91, %v32
  %v106 = vmul.f32 %v91, %v33
  %v107 = vmul.f32 %v91, %v34
  %v108 = vmul.f32 %v91, %v35
  %v109 = vmul.f32 %v91, %v36
  %v110 = vmul.f32 %v91, %v37
  %v111 = vmul.f32 %v91, %v38
  %v112 = vmul.f32 %v91, %v39
  %v113 = vmul.f32 %v91, %v40
  %v114 = vmul.f32 %v91, %v41
  %v115 = vmul.f32 %v91, %v42
  %v116 = vmul.f32 %v91, %v43
  %v117 = vmul.f32 %v91, %v44
  %v118 = vmul.f32 %v91, %v45
  %v119 = vmul.f32 %v91, %v46
  %v120 = vmul.f32 %v91, %v47
  %v121 = vmul.f32 %v91, %v48
  %v122 = vmul.f32 %v91, %v49
  %v123 = vmul.f32 %v91, %v50
  %v124 = vmul.f32 %v91, %v51
  %v125 = vmul.f32 %v91, %v52
  %v126 = vmul.f32 %v91, %v53
  %v127 = vmul.f32 %v91, %v54
  %v128 = vsel %vm55, %v19, %v92
  %v129 = vsel %vm56, %v20, %v93
  %v130 = vsel %vm57, %v21, %v94
  %v131 = vsel %vm58, %v22, %v95
  %v132 = vsel %vm59, %v23, %v96
  %v133 = vsel %vm60, %v24, %v97
  %v134 = vsel %vm61, %v25, %v98
  %v135 = vsel %vm62, %v26, %v99
  %v136 = vsel %vm63, %v27, %v100
  %v137 = vsel %vm64, %v28, %v101
  %v138 = vsel %vm65, %v29, %v102
  %v139 = vsel %vm66, %v30, %v103
  %v140 = vsel %vm67, %v31, %v104
  %v141 = vsel %vm68, %v32, %v105
  %v142 = vsel %vm69, %v33, %v106
  %v143 = vsel %vm70, %v34, %v107
  %v144 = vsel %vm71, %v35, %v108
  %v145 = vsel %vm72, %v36, %v109
  %v146 = vsel %vm73, %v37, %v110
  %v147 = vsel %vm74, %v38, %v111
  %v148 = vsel %vm75, %v39, %v112
  %v149 = vsel %vm76, %v40, %v113
  %v150 = vsel %vm77, %v41, %v114
  %v151 = vsel %vm78, %v42, %v115
  %v152 = vsel %vm79, %v43, %v116
  %v153 = vsel %vm80, %v44, %v117
  %v154 = vsel %vm81, %v45, %v118
  %v155 = vsel %vm82, %v46, %v119
  %v156 = vsel %vm83, %v47, %v120
  %v157 = vsel %vm84, %v48, %v121
  %v158 = vsel %vm85, %v49, %v122
  %v159 = vsel %vm86, %v50, %v123
  %v160 = vsel %vm87, %v51, %v124
  %v161 = vsel %vm88, %v52, %v125
  %v162 = vsel %vm89, %v53, %v126
  %v163 = vsel %vm90, %v54, %v127
  %v164 = vld [vmem:[%s1] sm:$0xff]
  %v165 = vld [vmem:[%s1 + $0x8] sm:$0xff]
  %v166 = vld [vmem:[%s1 + $0x10] sm:$0xff]
  %v167 = vld [vmem:[%s1 + $0x18] sm:$0xff]
  %v168 = vld [vmem:[%s1 + $0x20] sm:$0xff]
  %v169 = vld [vmem:[%s1 + $0x28] sm:$0xff]
  %v170 = vld [vmem:[%s1 + $0x30] sm:$0xff]
  %v171 = vld [vmem:[%s1 + $0x38] sm:$0xff]
  %v172 = vld [vmem:[%s1 + $0x40] sm:$0xff]
  %v173 = vld [vmem:[%s1 + $0x48] sm:$0xff]
  %v174 = vld [vmem:[%s1 + $0x50] sm:$0xff]
  %v175 = vld [vmem:[%s1 + $0x58] sm:$0xff]
  %v176 = vld [vmem:[%s1 + $0x60] sm:$0xff]
  %v177 = vld [vmem:[%s1 + $0x68] sm:$0xff]
  %v178 = vld [vmem:[%s1 + $0x70] sm:$0xff]
  %v179 = vld [vmem:[%s1 + $0x78] sm:$0xff]
  %v180 = vld [vmem:[%s1 + $0x80] sm:$0xff]
  %v181 = vld [vmem:[%s1 + $0x88] sm:$0xff]
  %v182 = vld [vmem:[%s1 + $0x90] sm:$0xff]
  %v183 = vld [vmem:[%s1 + $0x98] sm:$0xff]
  %v184 = vld [vmem:[%s1 + $0xa0] sm:$0xff]
  %v185 = vld [vmem:[%s1 + $0xa8] sm:$0xff]
  %v186 = vld [vmem:[%s1 + $0xb0] sm:$0xff]
  %v187 = vld [vmem:[%s1 + $0xb8] sm:$0xff]
  %v188 = vld [vmem:[%s1 + $0xc0] sm:$0xff]
  %v189 = vld [vmem:[%s1 + $0xc8] sm:$0xff]
  %v190 = vld [vmem:[%s1 + $0xd0] sm:$0xff]
  %v191 = vld [vmem:[%s1 + $0xd8] sm:$0xff]
  %v192 = vld [vmem:[%s1 + $0xe0] sm:$0xff]
  %v193 = vld [vmem:[%s1 + $0xe8] sm:$0xff]
  %v194 = vld [vmem:[%s1 + $0xf0] sm:$0xff]
  %v195 = vld [vmem:[%s1 + $0xf8] sm:$0xff]
  %v196 = vld [vmem:[%s1 + $0x100] sm:$0xff]
  %v197 = vld [vmem:[%s1 + $0x108] sm:$0xff]
  %v198 = vld [vmem:[%s1 + $0x110] sm:$0xff]
  %v199 = vld [vmem:[%s1 + $0x118] sm:$0xff]
  %vm200 = vcmask 130048
  %v202 = vsel %vm200, %v128, 0
  %v205 = vsel %vm200, %v129, 0
  %v208 = vsel %vm200, %v164, 0
  %v211 = vsel %vm200, %v165, 0
  %213 = vmatprep.subr.mxu0 0.0
  %214 = vmatpush1.xpose.msra.mxu0 %v208
  %215 = vmatprep.subr.mxu0 0.0
  %216 = vmatpush1.xpose.msra.mxu0 %v211
  %217 = vmatprep.subr.mxu0 0.0
  %218 = vmatpush1.xpose.msra.mxu0 0.0
  %219 = vmatprep.subr.mxu0 0.0
  %220 = vmatpush1.xpose.msra.mxu0 0.0
  %221 = vmatprep.subr.mxu0 0.0
  %222 = vmatpush1.xpose.msra.mxu0 0.0
  %223 = vmatprep.subr.mxu0 0.0
  %224 = vmatpush1.xpose.msra.mxu0 0.0
  %225 = vmatprep.subr.mxu0 0.0
  %226 = vmatpush1.xpose.msra.mxu0 0.0
  %227 = vmatprep.subr.mxu0 0.0
  %228 = vmatpush1.xpose.msra.mxu0 0.0
  %229 = vmatprep.subr.mxu0 0.0
  %230 = vmatpush1.xpose.msra.mxu0 0.0
  %231 = vmatprep.subr.mxu0 0.0
  %232 = vmatpush1.xpose.msra.mxu0 0.0
  %233 = vmatprep.subr.mxu0 0.0
  %234 = vmatpush1.xpose.msra.mxu0 0.0
  %235 = vmatprep.subr.mxu0 0.0
  %236 = vmatpush1.xpose.msra.mxu0 0.0
  %237 = vmatprep.subr.mxu0 0.0
  %238 = vmatpush1.xpose.msra.mxu0 0.0
  %239 = vmatprep.subr.mxu0 0.0
  %240 = vmatpush1.xpose.msra.mxu0 0.0
  %241 = vmatprep.subr.mxu0 0.0
  %242 = vmatpush1.xpose.msra.mxu0 0.0
  %243 = vmatprep.subr.mxu0 0.0
  %244 = vmatpush1.xpose.msra.mxu0 0.0
  %245 = vmatprep.subr.mxu0 0.0
  %246 = vmatpush1.xpose.msra.mxu0 0.0
  %247 = vmatprep.subr.mxu0 0.0
  %248 = vmatpush1.xpose.msra.mxu0 0.0
  %249 = vmatprep.subr.mxu0 0.0
  %250 = vmatpush1.xpose.msra.mxu0 0.0
  %251 = vmatprep.subr.mxu0 0.0
  %252 = vmatpush1.xpose.msra.mxu0 0.0
  %253 = vmatprep.subr.mxu0 0.0
  %254 = vmatpush1.xpose.msra.mxu0 0.0
  %255 = vmatprep.subr.mxu0 0.0
  %256 = vmatpush1.xpose.msra.mxu0 0.0
  %257 = vmatprep.subr.mxu0 0.0
  %258 = vmatpush1.xpose.msra.mxu0 0.0
  %259 = vmatprep.subr.mxu0 0.0
  %260 = vmatpush1.xpose.msra.mxu0 0.0
  %261 = vmatprep.subr.mxu0 0.0
  %262 = vmatpush1.xpose.msra.mxu0 0.0
  %263 = vmatprep.subr.mxu0 0.0
  %264 = vmatpush1.xpose.msra.mxu0 0.0
  %265 = vmatprep.subr.mxu0 0.0
  %266 = vmatpush1.xpose.msra.mxu0 0.0
  %267 = vmatprep.subr.mxu0 0.0
  %268 = vmatpush1.xpose.msra.mxu0 0.0
  %269 = vmatprep.subr.mxu0 0.0
  %270 = vmatpush1.xpose.msra.mxu0 0.0
  %271 = vmatprep.subr.mxu0 0.0
  %272 = vmatpush1.xpose.msra.mxu0 0.0
  %273 = vmatprep.subr.mxu0 0.0
  %274 = vmatpush1.xpose.msra.mxu0 0.0
  %275 = vmatprep.subr.mxu0 0.0
  %276 = vmatpush1.xpose.msra.mxu0 0.0
  %277 = vmatprep.mubr.f32.mxu0 0.0
  %278 = vmatmul.mubr.f32.gmra.mrb[0].mxu0 %v202
  %v279 = vpop.f32.mrb[0].mxu0
  %v280 = vadd.f32 0.0, %v279
  %v281 = vpop.f32.mrb[0].mxu0
  %282 = vmatprep.mubr.f32.mxu0 0.0
  %283 = vmatmul.mubr.f32.gmra.mrb[0].mxu0 %v205
  %v284 = vpop.f32.mrb[0].mxu0
  %v285 = vadd.f32 0.0, %v284
  %v286 = vpop.f32.mrb[0].mxu0
  %287 = vdwg.mxu0
  %v289 = vsel %vm200, %v130, 0
  %v292 = vsel %vm200, %v131, 0
  %v295 = vsel %vm200, %v166, 0
  %v298 = vsel %vm200, %v167, 0
  %300 = vmatprep.subr.mxu0 0.0
  %301 = vmatpush1.xpose.msra.mxu0 %v295
  %302 = vmatprep.subr.mxu0 0.0
  %303 = vmatpush1.xpose.msra.mxu0 %v298
  %304 = vmatprep.subr.mxu0 0.0
  %305 = vmatpush1.xpose.msra.mxu0 0.0
  %306 = vmatprep.subr.mxu0 0.0
  %307 = vmatpush1.xpose.msra.mxu0 0.0
  %308 = vmatprep.subr.mxu0 0.0
  %309 = vmatpush1.xpose.msra.mxu0 0.0
  %310 = vmatprep.subr.mxu0 0.0
  %311 = vmatpush1.xpose.msra.mxu0 0.0
  %312 = vmatprep.subr.mxu0 0.0
  %313 = vmatpush1.xpose.msra.mxu0 0.0
  %314 = vmatprep.subr.mxu0 0.0
  %315 = vmatpush1.xpose.msra.mxu0 0.0
  %316 = vmatprep.subr.mxu0 0.0
  %317 = vmatpush1.xpose.msra.mxu0 0.0
  %318 = vmatprep.subr.mxu0 0.0
  %319 = vmatpush1.xpose.msra.mxu0 0.0
  %320 = vmatprep.subr.mxu0 0.0
  %321 = vmatpush1.xpose.msra.mxu0 0.0
  %322 = vmatprep.subr.mxu0 0.0
  %323 = vmatpush1.xpose.msra.mxu0 0.0
  %324 = vmatprep.subr.mxu0 0.0
  %325 = vmatpush1.xpose.msra.mxu0 0.0
  %326 = vmatprep.subr.mxu0 0.0
  %327 = vmatpush1.xpose.msra.mxu0 0.0
  %328 = vmatprep.subr.mxu0 0.0
  %329 = vmatpush1.xpose.msra.mxu0 0.0
  %330 = vmatprep.subr.mxu0 0.0
  %331 = vmatpush1.xpose.msra.mxu0 0.0
  %332 = vmatprep.subr.mxu0 0.0
  %333 = vmatpush1.xpose.msra.mxu0 0.0
  %334 = vmatprep.subr.mxu0 0.0
  %335 = vmatpush1.xpose.msra.mxu0 0.0
  %336 = vmatprep.subr.mxu0 0.0
  %337 = vmatpush1.xpose.msra.mxu0 0.0
  %338 = vmatprep.subr.mxu0 0.0
  %339 = vmatpush1.xpose.msra.mxu0 0.0
  %340 = vmatprep.subr.mxu0 0.0
  %341 = vmatpush1.xpose.msra.mxu0 0.0
  %342 = vmatprep.subr.mxu0 0.0
  %343 = vmatpush1.xpose.msra.mxu0 0.0
  %344 = vmatprep.subr.mxu0 0.0
  %345 = vmatpush1.xpose.msra.mxu0 0.0
  %346 = vmatprep.subr.mxu0 0.0
  %347 = vmatpush1.xpose.msra.mxu0 0.0
  %348 = vmatprep.subr.mxu0 0.0
  %349 = vmatpush1.xpose.msra.mxu0 0.0
  %350 = vmatprep.subr.mxu0 0.0
  %351 = vmatpush1.xpose.msra.mxu0 0.0
  %352 = vmatprep.subr.mxu0 0.0
  %353 = vmatpush1.xpose.msra.mxu0 0.0
  %354 = vmatprep.subr.mxu0 0.0
  %355 = vmatpush1.xpose.msra.mxu0 0.0
  %356 = vmatprep.subr.mxu0 0.0
  %357 = vmatpush1.xpose.msra.mxu0 0.0
  %358 = vmatprep.subr.mxu0 0.0
  %359 = vmatpush1.xpose.msra.mxu0 0.0
  %360 = vmatprep.subr.mxu0 0.0
  %361 = vmatpush1.xpose.msra.mxu0 0.0
  %362 = vmatprep.subr.mxu0 0.0
  %363 = vmatpush1.xpose.msra.mxu0 0.0
  %364 = vmatprep.mubr.f32.mxu0 0.0
  %365 = vmatmul.mubr.f32.gmra.mrb[0].mxu0 %v289
  %v366 = vpop.f32.mrb[0].mxu0
  %v367 = vadd.f32 0.0, %v366
  %v368 = vpop.f32.mrb[0].mxu0
  %369 = vmatprep.mubr.f32.mxu0 0.0
  %370 = vmatmul.mubr.f32.gmra.mrb[0].mxu0 %v292
  %v371 = vpop.f32.mrb[0].mxu0
  %v372 = vadd.f32 0.0, %v371
  %v373 = vpop.f32.mrb[0].mxu0
  %374 = vdwg.mxu0
  %v376 = vsel %vm200, %v132, 0
  %v379 = vsel %vm200, %v133, 0
  %v382 = vsel %vm200, %v168, 0
  %v385 = vsel %vm200, %v169, 0
  %387 = vmatprep.subr.mxu0 0.0
  %388 = vmatpush1.xpose.msra.mxu0 %v382
  %389 = vmatprep.subr.mxu0 0.0
  %390 = vmatpush1.xpose.msra.mxu0 %v385
  %391 = vmatprep.subr.mxu0 0.0
  %392 = vmatpush1.xpose.msra.mxu0 0.0
  %393 = vmatprep.subr.mxu0 0.0
  %394 = vmatpush1.xpose.msra.mxu0 0.0
  %395 = vmatprep.subr.mxu0 0.0
  %396 = vmatpush1.xpose.msra.mxu0 0.0
  %397 = vmatprep.subr.mxu0 0.0
  %398 = vmatpush1.xpose.msra.mxu0 0.0
  %399 = vmatprep.subr.mxu0 0.0
  %400 = vmatpush1.xpose.msra.mxu0 0.0
  %401 = vmatprep.subr.mxu0 0.0
  %402 = vmatpush1.xpose.msra.mxu0 0.0
  %403 = vmatprep.subr.mxu0 0.0
  %404 = vmatpush1.xpose.msra.mxu0 0.0
  %405 = vmatprep.subr.mxu0 0.0
  %406 = vmatpush1.xpose.msra.mxu0 0.0
  %407 = vmatprep.subr.mxu0 0.0
  %408 = vmatpush1.xpose.msra.mxu0 0.0
  %409 = vmatprep.subr.mxu0 0.0
  %410 = vmatpush1.xpose.msra.mxu0 0.0
  %411 = vmatprep.subr.mxu0 0.0
  %412 = vmatpush1.xpose.msra.mxu0 0.0
  %413 = vmatprep.subr.mxu0 0.0
  %414 = vmatpush1.xpose.msra.mxu0 0.0
  %415 = vmatprep.subr.mxu0 0.0
  %416 = vmatpush1.xpose.msra.mxu0 0.0
  %417 = vmatprep.subr.mxu0 0.0
  %418 = vmatpush1.xpose.msra.mxu0 0.0
  %419 = vmatprep.subr.mxu0 0.0
  %420 = vmatpush1.xpose.msra.mxu0 0.0
  %421 = vmatprep.subr.mxu0 0.0
  %422 = vmatpush1.xpose.msra.mxu0 0.0
  %423 = vmatprep.subr.mxu0 0.0
  %424 = vmatpush1.xpose.msra.mxu0 0.0
  %425 = vmatprep.subr.mxu0 0.0
  %426 = vmatpush1.xpose.msra.mxu0 0.0
  %427 = vmatprep.subr.mxu0 0.0
  %428 = vmatpush1.xpose.msra.mxu0 0.0
  %429 = vmatprep.subr.mxu0 0.0
  %430 = vmatpush1.xpose.msra.mxu0 0.0
  %431 = vmatprep.subr.mxu0 0.0
  %432 = vmatpush1.xpose.msra.mxu0 0.0
  %433 = vmatprep.subr.mxu0 0.0
  %434 = vmatpush1.xpose.msra.mxu0 0.0
  %435 = vmatprep.subr.mxu0 0.0
  %436 = vmatpush1.xpose.msra.mxu0 0.0
  %437 = vmatprep.subr.mxu0 0.0
  %438 = vmatpush1.xpose.msra.mxu0 0.0
  %439 = vmatprep.subr.mxu0 0.0
  %440 = vmatpush1.xpose.msra.mxu0 0.0
  %441 = vmatprep.subr.mxu0 0.0
  %442 = vmatpush1.xpose.msra.mxu0 0.0
  %443 = vmatprep.subr.mxu0 0.0
  %444 = vmatpush1.xpose.msra.mxu0 0.0
  %445 = vmatprep.subr.mxu0 0.0
  %446 = vmatpush1.xpose.msra.mxu0 0.0
  %447 = vmatprep.subr.mxu0 0.0
  %448 = vmatpush1.xpose.msra.mxu0 0.0
  %449 = vmatprep.subr.mxu0 0.0
  %450 = vmatpush1.xpose.msra.mxu0 0.0
  %451 = vmatprep.mubr.f32.mxu0 0.0
  %452 = vmatmul.mubr.f32.gmra.mrb[0].mxu0 %v376
  %v453 = vpop.f32.mrb[0].mxu0
  %v454 = vadd.f32 0.0, %v453
  %v455 = vpop.f32.mrb[0].mxu0
  %456 = vmatprep.mubr.f32.mxu0 0.0
  %457 = vmatmul.mubr.f32.gmra.mrb[0].mxu0 %v379
  %v458 = vpop.f32.mrb[0].mxu0
  %v459 = vadd.f32 0.0, %v458
  %v460 = vpop.f32.mrb[0].mxu0
  %461 = vdwg.mxu0
  %v463 = vsel %vm200, %v134, 0
  %v466 = vsel %vm200, %v135, 0
  %v469 = vsel %vm200, %v170, 0
  %v472 = vsel %vm200, %v171, 0
  %474 = vmatprep.subr.mxu0 0.0
  %475 = vmatpush1.xpose.msra.mxu0 %v469
  %476 = vmatprep.subr.mxu0 0.0
  %477 = vmatpush1.xpose.msra.mxu0 %v472
  %478 = vmatprep.subr.mxu0 0.0
  %479 = vmatpush1.xpose.msra.mxu0 0.0
  %480 = vmatprep.subr.mxu0 0.0
  %481 = vmatpush1.xpose.msra.mxu0 0.0
  %482 = vmatprep.subr.mxu0 0.0
  %483 = vmatpush1.xpose.msra.mxu0 0.0
  %484 = vmatprep.subr.mxu0 0.0
  %485 = vmatpush1.xpose.msra.mxu0 0.0
  %486 = vmatprep.subr.mxu0 0.0
  %487 = vmatpush1.xpose.msra.mxu0 0.0
  %488 = vmatprep.subr.mxu0 0.0
  %489 = vmatpush1.xpose.msra.mxu0 0.0
  %490 = vmatprep.subr.mxu0 0.0
  %491 = vmatpush1.xpose.msra.mxu0 0.0
  %492 = vmatprep.subr.mxu0 0.0
  %493 = vmatpush1.xpose.msra.mxu0 0.0
  %494 = vmatprep.subr.mxu0 0.0
  %495 = vmatpush1.xpose.msra.mxu0 0.0
  %496 = vmatprep.subr.mxu0 0.0
  %497 = vmatpush1.xpose.msra.mxu0 0.0
  %498 = vmatprep.subr.mxu0 0.0
  %499 = vmatpush1.xpose.msra.mxu0 0.0
  %500 = vmatprep.subr.mxu0 0.0
  %501 = vmatpush1.xpose.msra.mxu0 0.0
  %502 = vmatprep.subr.mxu0 0.0
  %503 = vmatpush1.xpose.msra.mxu0 0.0
  %504 = vmatprep.subr.mxu0 0.0
  %505 = vmatpush1.xpose.msra.mxu0 0.0
  %506 = vmatprep.subr.mxu0 0.0
  %507 = vmatpush1.xpose.msra.mxu0 0.0
  %508 = vmatprep.subr.mxu0 0.0
  %509 = vmatpush1.xpose.msra.mxu0 0.0
  %510 = vmatprep.subr.mxu0 0.0
  %511 = vmatpush1.xpose.msra.mxu0 0.0
  %512 = vmatprep.subr.mxu0 0.0
  %513 = vmatpush1.xpose.msra.mxu0 0.0
  %514 = vmatprep.subr.mxu0 0.0
  %515 = vmatpush1.xpose.msra.mxu0 0.0
  %516 = vmatprep.subr.mxu0 0.0
  %517 = vmatpush1.xpose.msra.mxu0 0.0
  %518 = vmatprep.subr.mxu0 0.0
  %519 = vmatpush1.xpose.msra.mxu0 0.0
  %520 = vmatprep.subr.mxu0 0.0
  %521 = vmatpush1.xpose.msra.mxu0 0.0
  %522 = vmatprep.subr.mxu0 0.0
  %523 = vmatpush1.xpose.msra.mxu0 0.0
  %524 = vmatprep.subr.mxu0 0.0
  %525 = vmatpush1.xpose.msra.mxu0 0.0
  %526 = vmatprep.subr.mxu0 0.0
  %527 = vmatpush1.xpose.msra.mxu0 0.0
  %528 = vmatprep.subr.mxu0 0.0
  %529 = vmatpush1.xpose.msra.mxu0 0.0
  %530 = vmatprep.subr.mxu0 0.0
  %531 = vmatpush1.xpose.msra.mxu0 0.0
  %532 = vmatprep.subr.mxu0 0.0
  %533 = vmatpush1.xpose.msra.mxu0 0.0
  %534 = vmatprep.subr.mxu0 0.0
  %535 = vmatpush1.xpose.msra.mxu0 0.0
  %536 = vmatprep.subr.mxu0 0.0
  %537 = vmatpush1.xpose.msra.mxu0 0.0
  %538 = vmatprep.mubr.f32.mxu0 0.0
  %539 = vmatmul.mubr.f32.gmra.mrb[0].mxu0 %v463
  %v540 = vpop.f32.mrb[0].mxu0
  %v541 = vadd.f32 0.0, %v540
  %v542 = vpop.f32.mrb[0].mxu0
  %543 = vmatprep.mubr.f32.mxu0 0.0
  %544 = vmatmul.mubr.f32.gmra.mrb[0].mxu0 %v466
  %v545 = vpop.f32.mrb[0].mxu0
  %v546 = vadd.f32 0.0, %v545
  %v547 = vpop.f32.mrb[0].mxu0
  %548 = vdwg.mxu0
  %v550 = vsel %vm200, %v136, 0
  %v553 = vsel %vm200, %v137, 0
  %v556 = vsel %vm200, %v172, 0
  %v559 = vsel %vm200, %v173, 0
  %561 = vmatprep.subr.mxu0 0.0
  %562 = vmatpush1.xpose.msra.mxu0 %v556
  %563 = vmatprep.subr.mxu0 0.0
  %564 = vmatpush1.xpose.msra.mxu0 %v559
  %565 = vmatprep.subr.mxu0 0.0
  %566 = vmatpush1.xpose.msra.mxu0 0.0
  %567 = vmatprep.subr.mxu0 0.0
  %568 = vmatpush1.xpose.msra.mxu0 0.0
  %569 = vmatprep.subr.mxu0 0.0
  %570 = vmatpush1.xpose.msra.mxu0 0.0
  %571 = vmatprep.subr.mxu0 0.0
  %572 = vmatpush1.xpose.msra.mxu0 0.0
  %573 = vmatprep.subr.mxu0 0.0
  %574 = vmatpush1.xpose.msra.mxu0 0.0
  %575 = vmatprep.subr.mxu0 0.0
  %576 = vmatpush1.xpose.msra.mxu0 0.0
  %577 = vmatprep.subr.mxu0 0.0
  %578 = vmatpush1.xpose.msra.mxu0 0.0
  %579 = vmatprep.subr.mxu0 0.0
  %580 = vmatpush1.xpose.msra.mxu0 0.0
  %581 = vmatprep.subr.mxu0 0.0
  %582 = vmatpush1.xpose.msra.mxu0 0.0
  %583 = vmatprep.subr.mxu0 0.0
  %584 = vmatpush1.xpose.msra.mxu0 0.0
  %585 = vmatprep.subr.mxu0 0.0
  %586 = vmatpush1.xpose.msra.mxu0 0.0
  %587 = vmatprep.subr.mxu0 0.0
  %588 = vmatpush1.xpose.msra.mxu0 0.0
  %589 = vmatprep.subr.mxu0 0.0
  %590 = vmatpush1.xpose.msra.mxu0 0.0
  %591 = vmatprep.subr.mxu0 0.0
  %592 = vmatpush1.xpose.msra.mxu0 0.0
  %593 = vmatprep.subr.mxu0 0.0
  %594 = vmatpush1.xpose.msra.mxu0 0.0
  %595 = vmatprep.subr.mxu0 0.0
  %596 = vmatpush1.xpose.msra.mxu0 0.0
  %597 = vmatprep.subr.mxu0 0.0
  %598 = vmatpush1.xpose.msra.mxu0 0.0
  %599 = vmatprep.subr.mxu0 0.0
  %600 = vmatpush1.xpose.msra.mxu0 0.0
  %601 = vmatprep.subr.mxu0 0.0
  %602 = vmatpush1.xpose.msra.mxu0 0.0
  %603 = vmatprep.subr.mxu0 0.0
  %604 = vmatpush1.xpose.msra.mxu0 0.0
  %605 = vmatprep.subr.mxu0 0.0
  %606 = vmatpush1.xpose.msra.mxu0 0.0
  %607 = vmatprep.subr.mxu0 0.0
  %608 = vmatpush1.xpose.msra.mxu0 0.0
  %609 = vmatprep.subr.mxu0 0.0
  %610 = vmatpush1.xpose.msra.mxu0 0.0
  %611 = vmatprep.subr.mxu0 0.0
  %612 = vmatpush1.xpose.msra.mxu0 0.0
  %613 = vmatprep.subr.mxu0 0.0
  %614 = vmatpush1.xpose.msra.mxu0 0.0
  %615 = vmatprep.subr.mxu0 0.0
  %616 = vmatpush1.xpose.msra.mxu0 0.0
  %617 = vmatprep.subr.mxu0 0.0
  %618 = vmatpush1.xpose.msra.mxu0 0.0
  %619 = vmatprep.subr.mxu0 0.0
  %620 = vmatpush1.xpose.msra.mxu0 0.0
  %621 = vmatprep.subr.mxu0 0.0
  %622 = vmatpush1.xpose.msra.mxu0 0.0
  %623 = vmatprep.subr.mxu0 0.0
  %624 = vmatpush1.xpose.msra.mxu0 0.0
  %625 = vmatprep.mubr.f32.mxu0 0.0
  %626 = vmatmul.mubr.f32.gmra.mrb[0].mxu0 %v550
  %v627 = vpop.f32.mrb[0].mxu0
  %v628 = vadd.f32 0.0, %v627
  %v629 = vpop.f32.mrb[0].mxu0
  %630 = vmatprep.mubr.f32.mxu0 0.0
  %631 = vmatmul.mubr.f32.gmra.mrb[0].mxu0 %v553
  %v632 = vpop.f32.mrb[0].mxu0
  %v633 = vadd.f32 0.0, %v632
  %v634 = vpop.f32.mrb[0].mxu0
  %635 = vdwg.mxu0
  %v637 = vsel %vm200, %v138, 0
  %v640 = vsel %vm200, %v139, 0
  %v643 = vsel %vm200, %v174, 0
  %v646 = vsel %vm200, %v175, 0
  %648 = vmatprep.subr.mxu0 0.0
  %649 = vmatpush1.xpose.msra.mxu0 %v643
  %650 = vmatprep.subr.mxu0 0.0
  %651 = vmatpush1.xpose.msra.mxu0 %v646
  %652 = vmatprep.subr.mxu0 0.0
  %653 = vmatpush1.xpose.msra.mxu0 0.0
  %654 = vmatprep.subr.mxu0 0.0
  %655 = vmatpush1.xpose.msra.mxu0 0.0
  %656 = vmatprep.subr.mxu0 0.0
  %657 = vmatpush1.xpose.msra.mxu0 0.0
  %658 = vmatprep.subr.mxu0 0.0
  %659 = vmatpush1.xpose.msra.mxu0 0.0
  %660 = vmatprep.subr.mxu0 0.0
  %661 = vmatpush1.xpose.msra.mxu0 0.0
  %662 = vmatprep.subr.mxu0 0.0
  %663 = vmatpush1.xpose.msra.mxu0 0.0
  %664 = vmatprep.subr.mxu0 0.0
  %665 = vmatpush1.xpose.msra.mxu0 0.0
  %666 = vmatprep.subr.mxu0 0.0
  %667 = vmatpush1.xpose.msra.mxu0 0.0
  %668 = vmatprep.subr.mxu0 0.0
  %669 = vmatpush1.xpose.msra.mxu0 0.0
  %670 = vmatprep.subr.mxu0 0.0
  %671 = vmatpush1.xpose.msra.mxu0 0.0
  %672 = vmatprep.subr.mxu0 0.0
  %673 = vmatpush1.xpose.msra.mxu0 0.0
  %674 = vmatprep.subr.mxu0 0.0
  %675 = vmatpush1.xpose.msra.mxu0 0.0
  %676 = vmatprep.subr.mxu0 0.0
  %677 = vmatpush1.xpose.msra.mxu0 0.0
  %678 = vmatprep.subr.mxu0 0.0
  %679 = vmatpush1.xpose.msra.mxu0 0.0
  %680 = vmatprep.subr.mxu0 0.0
  %681 = vmatpush1.xpose.msra.mxu0 0.0
  %682 = vmatprep.subr.mxu0 0.0
  %683 = vmatpush1.xpose.msra.mxu0 0.0
  %684 = vmatprep.subr.mxu0 0.0
  %685 = vmatpush1.xpose.msra.mxu0 0.0
  %686 = vmatprep.subr.mxu0 0.0
  %687 = vmatpush1.xpose.msra.mxu0 0.0
  %688 = vmatprep.subr.mxu0 0.0
  %689 = vmatpush1.xpose.msra.mxu0 0.0
  %690 = vmatprep.subr.mxu0 0.0
  %691 = vmatpush1.xpose.msra.mxu0 0.0
  %692 = vmatprep.subr.mxu0 0.0
  %693 = vmatpush1.xpose.msra.mxu0 0.0
  %694 = vmatprep.subr.mxu0 0.0
  %695 = vmatpush1.xpose.msra.mxu0 0.0
  %696 = vmatprep.subr.mxu0 0.0
  %697 = vmatpush1.xpose.msra.mxu0 0.0
  %698 = vmatprep.subr.mxu0 0.0
  %699 = vmatpush1.xpose.msra.mxu0 0.0
  %700 = vmatprep.subr.mxu0 0.0
  %701 = vmatpush1.xpose.msra.mxu0 0.0
  %702 = vmatprep.subr.mxu0 0.0
  %703 = vmatpush1.xpose.msra.mxu0 0.0
  %704 = vmatprep.subr.mxu0 0.0
  %705 = vmatpush1.xpose.msra.mxu0 0.0
  %706 = vmatprep.subr.mxu0 0.0
  %707 = vmatpush1.xpose.msra.mxu0 0.0
  %708 = vmatprep.subr.mxu0 0.0
  %709 = vmatpush1.xpose.msra.mxu0 0.0
  %710 = vmatprep.subr.mxu0 0.0
  %711 = vmatpush1.xpose.msra.mxu0 0.0
  %712 = vmatprep.mubr.f32.mxu0 0.0
  %713 = vmatmul.mubr.f32.gmra.mrb[0].mxu0 %v637
  %v714 = vpop.f32.mrb[0].mxu0
  %v715 = vadd.f32 0.0, %v714
  %v716 = vpop.f32.mrb[0].mxu0
  %717 = vmatprep.mubr.f32.mxu0 0.0
  %718 = vmatmul.mubr.f32.gmra.mrb[0].mxu0 %v640
  %v719 = vpop.f32.mrb[0].mxu0
  %v720 = vadd.f32 0.0, %v719
  %v721 = vpop.f32.mrb[0].mxu0
  %722 = vdwg.mxu0
  %v724 = vsel %vm200, %v140, 0
  %v727 = vsel %vm200, %v141, 0
  %v730 = vsel %vm200, %v176, 0
  %v733 = vsel %vm200, %v177, 0
  %735 = vmatprep.subr.mxu0 0.0
  %736 = vmatpush1.xpose.msra.mxu0 %v730
  %737 = vmatprep.subr.mxu0 0.0
  %738 = vmatpush1.xpose.msra.mxu0 %v733
  %739 = vmatprep.subr.mxu0 0.0
  %740 = vmatpush1.xpose.msra.mxu0 0.0
  %741 = vmatprep.subr.mxu0 0.0
  %742 = vmatpush1.xpose.msra.mxu0 0.0
  %743 = vmatprep.subr.mxu0 0.0
  %744 = vmatpush1.xpose.msra.mxu0 0.0
  %745 = vmatprep.subr.mxu0 0.0
  %746 = vmatpush1.xpose.msra.mxu0 0.0
  %747 = vmatprep.subr.mxu0 0.0
  %748 = vmatpush1.xpose.msra.mxu0 0.0
  %749 = vmatprep.subr.mxu0 0.0
  %750 = vmatpush1.xpose.msra.mxu0 0.0
  %751 = vmatprep.subr.mxu0 0.0
  %752 = vmatpush1.xpose.msra.mxu0 0.0
  %753 = vmatprep.subr.mxu0 0.0
  %754 = vmatpush1.xpose.msra.mxu0 0.0
  %755 = vmatprep.subr.mxu0 0.0
  %756 = vmatpush1.xpose.msra.mxu0 0.0
  %757 = vmatprep.subr.mxu0 0.0
  %758 = vmatpush1.xpose.msra.mxu0 0.0
  %759 = vmatprep.subr.mxu0 0.0
  %760 = vmatpush1.xpose.msra.mxu0 0.0
  %761 = vmatprep.subr.mxu0 0.0
  %762 = vmatpush1.xpose.msra.mxu0 0.0
  %763 = vmatprep.subr.mxu0 0.0
  %764 = vmatpush1.xpose.msra.mxu0 0.0
  %765 = vmatprep.subr.mxu0 0.0
  %766 = vmatpush1.xpose.msra.mxu0 0.0
  %767 = vmatprep.subr.mxu0 0.0
  %768 = vmatpush1.xpose.msra.mxu0 0.0
  %769 = vmatprep.subr.mxu0 0.0
  %770 = vmatpush1.xpose.msra.mxu0 0.0
  %771 = vmatprep.subr.mxu0 0.0
  %772 = vmatpush1.xpose.msra.mxu0 0.0
  %773 = vmatprep.subr.mxu0 0.0
  %774 = vmatpush1.xpose.msra.mxu0 0.0
  %775 = vmatprep.subr.mxu0 0.0
  %776 = vmatpush1.xpose.msra.mxu0 0.0
  %777 = vmatprep.subr.mxu0 0.0
  %778 = vmatpush1.xpose.msra.mxu0 0.0
  %779 = vmatprep.subr.mxu0 0.0
  %780 = vmatpush1.xpose.msra.mxu0 0.0
  %781 = vmatprep.subr.mxu0 0.0
  %782 = vmatpush1.xpose.msra.mxu0 0.0
  %783 = vmatprep.subr.mxu0 0.0
  %784 = vmatpush1.xpose.msra.mxu0 0.0
  %785 = vmatprep.subr.mxu0 0.0
  %786 = vmatpush1.xpose.msra.mxu0 0.0
  %787 = vmatprep.subr.mxu0 0.0
  %788 = vmatpush1.xpose.msra.mxu0 0.0
  %789 = vmatprep.subr.mxu0 0.0
  %790 = vmatpush1.xpose.msra.mxu0 0.0
  %791 = vmatprep.subr.mxu0 0.0
  %792 = vmatpush1.xpose.msra.mxu0 0.0
  %793 = vmatprep.subr.mxu0 0.0
  %794 = vmatpush1.xpose.msra.mxu0 0.0
  %795 = vmatprep.subr.mxu0 0.0
  %796 = vmatpush1.xpose.msra.mxu0 0.0
  %797 = vmatprep.subr.mxu0 0.0
  %798 = vmatpush1.xpose.msra.mxu0 0.0
  %799 = vmatprep.mubr.f32.mxu0 0.0
  %800 = vmatmul.mubr.f32.gmra.mrb[0].mxu0 %v724
  %v801 = vpop.f32.mrb[0].mxu0
  %v802 = vadd.f32 0.0, %v801
  %v803 = vpop.f32.mrb[0].mxu0
  %804 = vmatprep.mubr.f32.mxu0 0.0
  %805 = vmatmul.mubr.f32.gmra.mrb[0].mxu0 %v727
  %v806 = vpop.f32.mrb[0].mxu0
  %v807 = vadd.f32 0.0, %v806
  %v808 = vpop.f32.mrb[0].mxu0
  %809 = vdwg.mxu0
  %v811 = vsel %vm200, %v142, 0
  %v814 = vsel %vm200, %v143, 0
  %v817 = vsel %vm200, %v178, 0
  %v820 = vsel %vm200, %v179, 0
  %822 = vmatprep.subr.mxu0 0.0
  %823 = vmatpush1.xpose.msra.mxu0 %v817
  %824 = vmatprep.subr.mxu0 0.0
  %825 = vmatpush1.xpose.msra.mxu0 %v820
  %826 = vmatprep.subr.mxu0 0.0
  %827 = vmatpush1.xpose.msra.mxu0 0.0
  %828 = vmatprep.subr.mxu0 0.0
  %829 = vmatpush1.xpose.msra.mxu0 0.0
  %830 = vmatprep.subr.mxu0 0.0
  %831 = vmatpush1.xpose.msra.mxu0 0.0
  %832 = vmatprep.subr.mxu0 0.0
  %833 = vmatpush1.xpose.msra.mxu0 0.0
  %834 = vmatprep.subr.mxu0 0.0
  %835 = vmatpush1.xpose.msra.mxu0 0.0
  %836 = vmatprep.subr.mxu0 0.0
  %837 = vmatpush1.xpose.msra.mxu0 0.0
  %838 = vmatprep.subr.mxu0 0.0
  %839 = vmatpush1.xpose.msra.mxu0 0.0
  %840 = vmatprep.subr.mxu0 0.0
  %841 = vmatpush1.xpose.msra.mxu0 0.0
  %842 = vmatprep.subr.mxu0 0.0
  %843 = vmatpush1.xpose.msra.mxu0 0.0
  %844 = vmatprep.subr.mxu0 0.0
  %845 = vmatpush1.xpose.msra.mxu0 0.0
  %846 = vmatprep.subr.mxu0 0.0
  %847 = vmatpush1.xpose.msra.mxu0 0.0
  %848 = vmatprep.subr.mxu0 0.0
  %849 = vmatpush1.xpose.msra.mxu0 0.0
  %850 = vmatprep.subr.mxu0 0.0
  %851 = vmatpush1.xpose.msra.mxu0 0.0
  %852 = vmatprep.subr.mxu0 0.0
  %853 = vmatpush1.xpose.msra.mxu0 0.0
  %854 = vmatprep.subr.mxu0 0.0
  %855 = vmatpush1.xpose.msra.mxu0 0.0
  %856 = vmatprep.subr.mxu0 0.0
  %857 = vmatpush1.xpose.msra.mxu0 0.0
  %858 = vmatprep.subr.mxu0 0.0
  %859 = vmatpush1.xpose.msra.mxu0 0.0
  %860 = vmatprep.subr.mxu0 0.0
  %861 = vmatpush1.xpose.msra.mxu0 0.0
  %862 = vmatprep.subr.mxu0 0.0
  %863 = vmatpush1.xpose.msra.mxu0 0.0
  %864 = vmatprep.subr.mxu0 0.0
  %865 = vmatpush1.xpose.msra.mxu0 0.0
  %866 = vmatprep.subr.mxu0 0.0
  %867 = vmatpush1.xpose.msra.mxu0 0.0
  %868 = vmatprep.subr.mxu0 0.0
  %869 = vmatpush1.xpose.msra.mxu0 0.0
  %870 = vmatprep.subr.mxu0 0.0
  %871 = vmatpush1.xpose.msra.mxu0 0.0
  %872 = vmatprep.subr.mxu0 0.0
  %873 = vmatpush1.xpose.msra.mxu0 0.0
  %874 = vmatprep.subr.mxu0 0.0
  %875 = vmatpush1.xpose.msra.mxu0 0.0
  %876 = vmatprep.subr.mxu0 0.0
  %877 = vmatpush1.xpose.msra.mxu0 0.0
  %878 = vmatprep.subr.mxu0 0.0
  %879 = vmatpush1.xpose.msra.mxu0 0.0
  %880 = vmatprep.subr.mxu0 0.0
  %881 = vmatpush1.xpose.msra.mxu0 0.0
  %882 = vmatprep.subr.mxu0 0.0
  %883 = vmatpush1.xpose.msra.mxu0 0.0
  %884 = vmatprep.subr.mxu0 0.0
  %885 = vmatpush1.xpose.msra.mxu0 0.0
  %886 = vmatprep.mubr.f32.mxu0 0.0
  %887 = vmatmul.mubr.f32.gmra.mrb[0].mxu0 %v811
  %v888 = vpop.f32.mrb[0].mxu0
  %v889 = vadd.f32 0.0, %v888
  %v890 = vpop.f32.mrb[0].mxu0
  %891 = vmatprep.mubr.f32.mxu0 0.0
  %892 = vmatmul.mubr.f32.gmra.mrb[0].mxu0 %v814
  %v893 = vpop.f32.mrb[0].mxu0
  %v894 = vadd.f32 0.0, %v893
  %v895 = vpop.f32.mrb[0].mxu0
  %896 = vdwg.mxu0
  %v898 = vsel %vm200, %v144, 0
  %v901 = vsel %vm200, %v145, 0
  %v904 = vsel %vm200, %v180, 0
  %v907 = vsel %vm200, %v181, 0
  %909 = vmatprep.subr.mxu0 0.0
  %910 = vmatpush1.xpose.msra.mxu0 %v904
  %911 = vmatprep.subr.mxu0 0.0
  %912 = vmatpush1.xpose.msra.mxu0 %v907
  %913 = vmatprep.subr.mxu0 0.0
  %914 = vmatpush1.xpose.msra.mxu0 0.0
  %915 = vmatprep.subr.mxu0 0.0
  %916 = vmatpush1.xpose.msra.mxu0 0.0
  %917 = vmatprep.subr.mxu0 0.0
  %918 = vmatpush1.xpose.msra.mxu0 0.0
  %919 = vmatprep.subr.mxu0 0.0
  %920 = vmatpush1.xpose.msra.mxu0 0.0
  %921 = vmatprep.subr.mxu0 0.0
  %922 = vmatpush1.xpose.msra.mxu0 0.0
  %923 = vmatprep.subr.mxu0 0.0
  %924 = vmatpush1.xpose.msra.mxu0 0.0
  %925 = vmatprep.subr.mxu0 0.0
  %926 = vmatpush1.xpose.msra.mxu0 0.0
  %927 = vmatprep.subr.mxu0 0.0
  %928 = vmatpush1.xpose.msra.mxu0 0.0
  %929 = vmatprep.subr.mxu0 0.0
  %930 = vmatpush1.xpose.msra.mxu0 0.0
  %931 = vmatprep.subr.mxu0 0.0
  %932 = vmatpush1.xpose.msra.mxu0 0.0
  %933 = vmatprep.subr.mxu0 0.0
  %934 = vmatpush1.xpose.msra.mxu0 0.0
  %935 = vmatprep.subr.mxu0 0.0
  %936 = vmatpush1.xpose.msra.mxu0 0.0
  %937 = vmatprep.subr.mxu0 0.0
  %938 = vmatpush1.xpose.msra.mxu0 0.0
  %939 = vmatprep.subr.mxu0 0.0
  %940 = vmatpush1.xpose.msra.mxu0 0.0
  %941 = vmatprep.subr.mxu0 0.0
  %942 = vmatpush1.xpose.msra.mxu0 0.0
  %943 = vmatprep.subr.mxu0 0.0
  %944 = vmatpush1.xpose.msra.mxu0 0.0
  %945 = vmatprep.subr.mxu0 0.0
  %946 = vmatpush1.xpose.msra.mxu0 0.0
  %947 = vmatprep.subr.mxu0 0.0
  %948 = vmatpush1.xpose.msra.mxu0 0.0
  %949 = vmatprep.subr.mxu0 0.0
  %950 = vmatpush1.xpose.msra.mxu0 0.0
  %951 = vmatprep.subr.mxu0 0.0
  %952 = vmatpush1.xpose.msra.mxu0 0.0
  %953 = vmatprep.subr.mxu0 0.0
  %954 = vmatpush1.xpose.msra.mxu0 0.0
  %955 = vmatprep.subr.mxu0 0.0
  %956 = vmatpush1.xpose.msra.mxu0 0.0
  %957 = vmatprep.subr.mxu0 0.0
  %958 = vmatpush1.xpose.msra.mxu0 0.0
  %959 = vmatprep.subr.mxu0 0.0
  %960 = vmatpush1.xpose.msra.mxu0 0.0
  %961 = vmatprep.subr.mxu0 0.0
  %962 = vmatpush1.xpose.msra.mxu0 0.0
  %963 = vmatprep.subr.mxu0 0.0
  %964 = vmatpush1.xpose.msra.mxu0 0.0
  %965 = vmatprep.subr.mxu0 0.0
  %966 = vmatpush1.xpose.msra.mxu0 0.0
  %967 = vmatprep.subr.mxu0 0.0
  %968 = vmatpush1.xpose.msra.mxu0 0.0
  %969 = vmatprep.subr.mxu0 0.0
  %970 = vmatpush1.xpose.msra.mxu0 0.0
  %971 = vmatprep.subr.mxu0 0.0
  %972 = vmatpush1.xpose.msra.mxu0 0.0
  %973 = vmatprep.mubr.f32.mxu0 0.0
  %974 = vmatmul.mubr.f32.gmra.mrb[0].mxu0 %v898
  %v975 = vpop.f32.mrb[0].mxu0
  %v976 = vadd.f32 0.0, %v975
  %v977 = vpop.f32.mrb[0].mxu0
  %978 = vmatprep.mubr.f32.mxu0 0.0
  %979 = vmatmul.mubr.f32.gmra.mrb[0].mxu0 %v901
  %v980 = vpop.f32.mrb[0].mxu0
  %v981 = vadd.f32 0.0, %v980
  %v982 = vpop.f32.mrb[0].mxu0
  %983 = vdwg.mxu0
  %v985 = vsel %vm200, %v146, 0
  %v988 = vsel %vm200, %v147, 0
  %v991 = vsel %vm200, %v182, 0
  %v994 = vsel %vm200, %v183, 0
  %996 = vmatprep.subr.mxu0 0.0
  %997 = vmatpush1.xpose.msra.mxu0 %v991
  %998 = vmatprep.subr.mxu0 0.0
  %999 = vmatpush1.xpose.msra.mxu0 %v994
  %1000 = vmatprep.subr.mxu0 0.0
  %1001 = vmatpush1.xpose.msra.mxu0 0.0
  %1002 = vmatprep.subr.mxu0 0.0
  %1003 = vmatpush1.xpose.msra.mxu0 0.0
  %1004 = vmatprep.subr.mxu0 0.0
  %1005 = vmatpush1.xpose.msra.mxu0 0.0
  %1006 = vmatprep.subr.mxu0 0.0
  %1007 = vmatpush1.xpose.msra.mxu0 0.0
  %1008 = vmatprep.subr.mxu0 0.0
  %1009 = vmatpush1.xpose.msra.mxu0 0.0
  %1010 = vmatprep.subr.mxu0 0.0
  %1011 = vmatpush1.xpose.msra.mxu0 0.0
  %1012 = vmatprep.subr.mxu0 0.0
  %1013 = vmatpush1.xpose.msra.mxu0 0.0
  %1014 = vmatprep.subr.mxu0 0.0
  %1015 = vmatpush1.xpose.msra.mxu0 0.0
  %1016 = vmatprep.subr.mxu0 0.0
  %1017 = vmatpush1.xpose.msra.mxu0 0.0
  %1018 = vmatprep.subr.mxu0 0.0
  %1019 = vmatpush1.xpose.msra.mxu0 0.0
  %1020 = vmatprep.subr.mxu0 0.0
  %1021 = vmatpush1.xpose.msra.mxu0 0.0
  %1022 = vmatprep.subr.mxu0 0.0
  %1023 = vmatpush1.xpose.msra.mxu0 0.0
  %1024 = vmatprep.subr.mxu0 0.0
  %1025 = vmatpush1.xpose.msra.mxu0 0.0
  %1026 = vmatprep.subr.mxu0 0.0
  %1027 = vmatpush1.xpose.msra.mxu0 0.0
  %1028 = vmatprep.subr.mxu0 0.0
  %1029 = vmatpush1.xpose.msra.mxu0 0.0
  %1030 = vmatprep.subr.mxu0 0.0
  %1031 = vmatpush1.xpose.msra.mxu0 0.0
  %1032 = vmatprep.subr.mxu0 0.0
  %1033 = vmatpush1.xpose.msra.mxu0 0.0
  %1034 = vmatprep.subr.mxu0 0.0
  %1035 = vmatpush1.xpose.msra.mxu0 0.0
  %1036 = vmatprep.subr.mxu0 0.0
  %1037 = vmatpush1.xpose.msra.mxu0 0.0
  %1038 = vmatprep.subr.mxu0 0.0
  %1039 = vmatpush1.xpose.msra.mxu0 0.0
  %1040 = vmatprep.subr.mxu0 0.0
  %1041 = vmatpush1.xpose.msra.mxu0 0.0
  %1042 = vmatprep.subr.mxu0 0.0
  %1043 = vmatpush1.xpose.msra.mxu0 0.0
  %1044 = vmatprep.subr.mxu0 0.0
  %1045 = vmatpush1.xpose.msra.mxu0 0.0
  %1046 = vmatprep.subr.mxu0 0.0
  %1047 = vmatpush1.xpose.msra.mxu0 0.0
  %1048 = vmatprep.subr.mxu0 0.0
  %1049 = vmatpush1.xpose.msra.mxu0 0.0
  %1050 = vmatprep.subr.mxu0 0.0
  %1051 = vmatpush1.xpose.msra.mxu0 0.0
  %1052 = vmatprep.subr.mxu0 0.0
  %1053 = vmatpush1.xpose.msra.mxu0 0.0
  %1054 = vmatprep.subr.mxu0 0.0
  %1055 = vmatpush1.xpose.msra.mxu0 0.0
  %1056 = vmatprep.subr.mxu0 0.0
  %1057 = vmatpush1.xpose.msra.mxu0 0.0
  %1058 = vmatprep.subr.mxu0 0.0
  %1059 = vmatpush1.xpose.msra.mxu0 0.0
  %1060 = vmatprep.mubr.f32.mxu0 0.0
  %1061 = vmatmul.mubr.f32.gmra.mrb[0].mxu0 %v985
  %v1062 = vpop.f32.mrb[0].mxu0
  %v1063 = vadd.f32 0.0, %v1062
  %v1064 = vpop.f32.mrb[0].mxu0
  %1065 = vmatprep.mubr.f32.mxu0 0.0
  %1066 = vmatmul.mubr.f32.gmra.mrb[0].mxu0 %v988
  %v1067 = vpop.f32.mrb[0].mxu0
  %v1068 = vadd.f32 0.0, %v1067
  %v1069 = vpop.f32.mrb[0].mxu0
  %1070 = vdwg.mxu0
  %v1072 = vsel %vm200, %v148, 0
  %v1075 = vsel %vm200, %v149, 0
  %v1078 = vsel %vm200, %v184, 0
  %v1081 = vsel %vm200, %v185, 0
  %1083 = vmatprep.subr.mxu0 0.0
  %1084 = vmatpush1.xpose.msra.mxu0 %v1078
  %1085 = vmatprep.subr.mxu0 0.0
  %1086 = vmatpush1.xpose.msra.mxu0 %v1081
  %1087 = vmatprep.subr.mxu0 0.0
  %1088 = vmatpush1.xpose.msra.mxu0 0.0
  %1089 = vmatprep.subr.mxu0 0.0
  %1090 = vmatpush1.xpose.msra.mxu0 0.0
  %1091 = vmatprep.subr.mxu0 0.0
  %1092 = vmatpush1.xpose.msra.mxu0 0.0
  %1093 = vmatprep.subr.mxu0 0.0
  %1094 = vmatpush1.xpose.msra.mxu0 0.0
  %1095 = vmatprep.subr.mxu0 0.0
  %1096 = vmatpush1.xpose.msra.mxu0 0.0
  %1097 = vmatprep.subr.mxu0 0.0
  %1098 = vmatpush1.xpose.msra.mxu0 0.0
  %1099 = vmatprep.subr.mxu0 0.0
  %1100 = vmatpush1.xpose.msra.mxu0 0.0
  %1101 = vmatprep.subr.mxu0 0.0
  %1102 = vmatpush1.xpose.msra.mxu0 0.0
  %1103 = vmatprep.subr.mxu0 0.0
  %1104 = vmatpush1.xpose.msra.mxu0 0.0
  %1105 = vmatprep.subr.mxu0 0.0
  %1106 = vmatpush1.xpose.msra.mxu0 0.0
  %1107 = vmatprep.subr.mxu0 0.0
  %1108 = vmatpush1.xpose.msra.mxu0 0.0
  %1109 = vmatprep.subr.mxu0 0.0
  %1110 = vmatpush1.xpose.msra.mxu0 0.0
  %1111 = vmatprep.subr.mxu0 0.0
  %1112 = vmatpush1.xpose.msra.mxu0 0.0
  %1113 = vmatprep.subr.mxu0 0.0
  %1114 = vmatpush1.xpose.msra.mxu0 0.0
  %1115 = vmatprep.subr.mxu0 0.0
  %1116 = vmatpush1.xpose.msra.mxu0 0.0
  %1117 = vmatprep.subr.mxu0 0.0
  %1118 = vmatpush1.xpose.msra.mxu0 0.0
  %1119 = vmatprep.subr.mxu0 0.0
  %1120 = vmatpush1.xpose.msra.mxu0 0.0
  %1121 = vmatprep.subr.mxu0 0.0
  %1122 = vmatpush1.xpose.msra.mxu0 0.0
  %1123 = vmatprep.subr.mxu0 0.0
  %1124 = vmatpush1.xpose.msra.mxu0 0.0
  %1125 = vmatprep.subr.mxu0 0.0
  %1126 = vmatpush1.xpose.msra.mxu0 0.0
  %1127 = vmatprep.subr.mxu0 0.0
  %1128 = vmatpush1.xpose.msra.mxu0 0.0
  %1129 = vmatprep.subr.mxu0 0.0
  %1130 = vmatpush1.xpose.msra.mxu0 0.0
  %1131 = vmatprep.subr.mxu0 0.0
  %1132 = vmatpush1.xpose.msra.mxu0 0.0
  %1133 = vmatprep.subr.mxu0 0.0
  %1134 = vmatpush1.xpose.msra.mxu0 0.0
  %1135 = vmatprep.subr.mxu0 0.0
  %1136 = vmatpush1.xpose.msra.mxu0 0.0
  %1137 = vmatprep.subr.mxu0 0.0
  %1138 = vmatpush1.xpose.msra.mxu0 0.0
  %1139 = vmatprep.subr.mxu0 0.0
  %1140 = vmatpush1.xpose.msra.mxu0 0.0
  %1141 = vmatprep.subr.mxu0 0.0
  %1142 = vmatpush1.xpose.msra.mxu0 0.0
  %1143 = vmatprep.subr.mxu0 0.0
  %1144 = vmatpush1.xpose.msra.mxu0 0.0
  %1145 = vmatprep.subr.mxu0 0.0
  %1146 = vmatpush1.xpose.msra.mxu0 0.0
  %1147 = vmatprep.mubr.f32.mxu0 0.0
  %1148 = vmatmul.mubr.f32.gmra.mrb[0].mxu0 %v1072
  %v1149 = vpop.f32.mrb[0].mxu0
  %v1150 = vadd.f32 0.0, %v1149
  %v1151 = vpop.f32.mrb[0].mxu0
  %1152 = vmatprep.mubr.f32.mxu0 0.0
  %1153 = vmatmul.mubr.f32.gmra.mrb[0].mxu0 %v1075
  %v1154 = vpop.f32.mrb[0].mxu0
  %v1155 = vadd.f32 0.0, %v1154
  %v1156 = vpop.f32.mrb[0].mxu0
  %1157 = vdwg.mxu0
  %v1159 = vsel %vm200, %v150, 0
  %v1162 = vsel %vm200, %v151, 0
  %v1165 = vsel %vm200, %v186, 0
  %v1168 = vsel %vm200, %v187, 0
  %1170 = vmatprep.subr.mxu0 0.0
  %1171 = vmatpush1.xpose.msra.mxu0 %v1165
  %1172 = vmatprep.subr.mxu0 0.0
  %1173 = vmatpush1.xpose.msra.mxu0 %v1168
  %1174 = vmatprep.subr.mxu0 0.0
  %1175 = vmatpush1.xpose.msra.mxu0 0.0
  %1176 = vmatprep.subr.mxu0 0.0
  %1177 = vmatpush1.xpose.msra.mxu0 0.0
  %1178 = vmatprep.subr.mxu0 0.0
  %1179 = vmatpush1.xpose.msra.mxu0 0.0
  %1180 = vmatprep.subr.mxu0 0.0
  %1181 = vmatpush1.xpose.msra.mxu0 0.0
  %1182 = vmatprep.subr.mxu0 0.0
  %1183 = vmatpush1.xpose.msra.mxu0 0.0
  %1184 = vmatprep.subr.mxu0 0.0
  %1185 = vmatpush1.xpose.msra.mxu0 0.0
  %1186 = vmatprep.subr.mxu0 0.0
  %1187 = vmatpush1.xpose.msra.mxu0 0.0
  %1188 = vmatprep.subr.mxu0 0.0
  %1189 = vmatpush1.xpose.msra.mxu0 0.0
  %1190 = vmatprep.subr.mxu0 0.0
  %1191 = vmatpush1.xpose.msra.mxu0 0.0
  %1192 = vmatprep.subr.mxu0 0.0
  %1193 = vmatpush1.xpose.msra.mxu0 0.0
  %1194 = vmatprep.subr.mxu0 0.0
  %1195 = vmatpush1.xpose.msra.mxu0 0.0
  %1196 = vmatprep.subr.mxu0 0.0
  %1197 = vmatpush1.xpose.msra.mxu0 0.0
  %1198 = vmatprep.subr.mxu0 0.0
  %1199 = vmatpush1.xpose.msra.mxu0 0.0
  %1200 = vmatprep.subr.mxu0 0.0
  %1201 = vmatpush1.xpose.msra.mxu0 0.0
  %1202 = vmatprep.subr.mxu0 0.0
  %1203 = vmatpush1.xpose.msra.mxu0 0.0
  %1204 = vmatprep.subr.mxu0 0.0
  %1205 = vmatpush1.xpose.msra.mxu0 0.0
  %1206 = vmatprep.subr.mxu0 0.0
  %1207 = vmatpush1.xpose.msra.mxu0 0.0
  %1208 = vmatprep.subr.mxu0 0.0
  %1209 = vmatpush1.xpose.msra.mxu0 0.0
  %1210 = vmatprep.subr.mxu0 0.0
  %1211 = vmatpush1.xpose.msra.mxu0 0.0
  %1212 = vmatprep.subr.mxu0 0.0
  %1213 = vmatpush1.xpose.msra.mxu0 0.0
  %1214 = vmatprep.subr.mxu0 0.0
  %1215 = vmatpush1.xpose.msra.mxu0 0.0
  %1216 = vmatprep.subr.mxu0 0.0
  %1217 = vmatpush1.xpose.msra.mxu0 0.0
  %1218 = vmatprep.subr.mxu0 0.0
  %1219 = vmatpush1.xpose.msra.mxu0 0.0
  %1220 = vmatprep.subr.mxu0 0.0
  %1221 = vmatpush1.xpose.msra.mxu0 0.0
  %1222 = vmatprep.subr.mxu0 0.0
  %1223 = vmatpush1.xpose.msra.mxu0 0.0
  %1224 = vmatprep.subr.mxu0 0.0
  %1225 = vmatpush1.xpose.msra.mxu0 0.0
  %1226 = vmatprep.subr.mxu0 0.0
  %1227 = vmatpush1.xpose.msra.mxu0 0.0
  %1228 = vmatprep.subr.mxu0 0.0
  %1229 = vmatpush1.xpose.msra.mxu0 0.0
  %1230 = vmatprep.subr.mxu0 0.0
  %1231 = vmatpush1.xpose.msra.mxu0 0.0
  %1232 = vmatprep.subr.mxu0 0.0
  %1233 = vmatpush1.xpose.msra.mxu0 0.0
  %1234 = vmatprep.mubr.f32.mxu0 0.0
  %1235 = vmatmul.mubr.f32.gmra.mrb[0].mxu0 %v1159
  %v1236 = vpop.f32.mrb[0].mxu0
  %v1237 = vadd.f32 0.0, %v1236
  %v1238 = vpop.f32.mrb[0].mxu0
  %1239 = vmatprep.mubr.f32.mxu0 0.0
  %1240 = vmatmul.mubr.f32.gmra.mrb[0].mxu0 %v1162
  %v1241 = vpop.f32.mrb[0].mxu0
  %v1242 = vadd.f32 0.0, %v1241
  %v1243 = vpop.f32.mrb[0].mxu0
  %1244 = vdwg.mxu0
  %v1246 = vsel %vm200, %v152, 0
  %v1249 = vsel %vm200, %v153, 0
  %v1252 = vsel %vm200, %v188, 0
  %v1255 = vsel %vm200, %v189, 0
  %1257 = vmatprep.subr.mxu0 0.0
  %1258 = vmatpush1.xpose.msra.mxu0 %v1252
  %1259 = vmatprep.subr.mxu0 0.0
  %1260 = vmatpush1.xpose.msra.mxu0 %v1255
  %1261 = vmatprep.subr.mxu0 0.0
  %1262 = vmatpush1.xpose.msra.mxu0 0.0
  %1263 = vmatprep.subr.mxu0 0.0
  %1264 = vmatpush1.xpose.msra.mxu0 0.0
  %1265 = vmatprep.subr.mxu0 0.0
  %1266 = vmatpush1.xpose.msra.mxu0 0.0
  %1267 = vmatprep.subr.mxu0 0.0
  %1268 = vmatpush1.xpose.msra.mxu0 0.0
  %1269 = vmatprep.subr.mxu0 0.0
  %1270 = vmatpush1.xpose.msra.mxu0 0.0
  %1271 = vmatprep.subr.mxu0 0.0
  %1272 = vmatpush1.xpose.msra.mxu0 0.0
  %1273 = vmatprep.subr.mxu0 0.0
  %1274 = vmatpush1.xpose.msra.mxu0 0.0
  %1275 = vmatprep.subr.mxu0 0.0
  %1276 = vmatpush1.xpose.msra.mxu0 0.0
  %1277 = vmatprep.subr.mxu0 0.0
  %1278 = vmatpush1.xpose.msra.mxu0 0.0
  %1279 = vmatprep.subr.mxu0 0.0
  %1280 = vmatpush1.xpose.msra.mxu0 0.0
  %1281 = vmatprep.subr.mxu0 0.0
  %1282 = vmatpush1.xpose.msra.mxu0 0.0
  %1283 = vmatprep.subr.mxu0 0.0
  %1284 = vmatpush1.xpose.msra.mxu0 0.0
  %1285 = vmatprep.subr.mxu0 0.0
  %1286 = vmatpush1.xpose.msra.mxu0 0.0
  %1287 = vmatprep.subr.mxu0 0.0
  %1288 = vmatpush1.xpose.msra.mxu0 0.0
  %1289 = vmatprep.subr.mxu0 0.0
  %1290 = vmatpush1.xpose.msra.mxu0 0.0
  %1291 = vmatprep.subr.mxu0 0.0
  %1292 = vmatpush1.xpose.msra.mxu0 0.0
  %1293 = vmatprep.subr.mxu0 0.0
  %1294 = vmatpush1.xpose.msra.mxu0 0.0
  %1295 = vmatprep.subr.mxu0 0.0
  %1296 = vmatpush1.xpose.msra.mxu0 0.0
  %1297 = vmatprep.subr.mxu0 0.0
  %1298 = vmatpush1.xpose.msra.mxu0 0.0
  %1299 = vmatprep.subr.mxu0 0.0
  %1300 = vmatpush1.xpose.msra.mxu0 0.0
  %1301 = vmatprep.subr.mxu0 0.0
  %1302 = vmatpush1.xpose.msra.mxu0 0.0
  %1303 = vmatprep.subr.mxu0 0.0
  %1304 = vmatpush1.xpose.msra.mxu0 0.0
  %1305 = vmatprep.subr.mxu0 0.0
  %1306 = vmatpush1.xpose.msra.mxu0 0.0
  %1307 = vmatprep.subr.mxu0 0.0
  %1308 = vmatpush1.xpose.msra.mxu0 0.0
  %1309 = vmatprep.subr.mxu0 0.0
  %1310 = vmatpush1.xpose.msra.mxu0 0.0
  %1311 = vmatprep.subr.mxu0 0.0
  %1312 = vmatpush1.xpose.msra.mxu0 0.0
  %1313 = vmatprep.subr.mxu0 0.0
  %1314 = vmatpush1.xpose.msra.mxu0 0.0
  %1315 = vmatprep.subr.mxu0 0.0
  %1316 = vmatpush1.xpose.msra.mxu0 0.0
  %1317 = vmatprep.subr.mxu0 0.0
  %1318 = vmatpush1.xpose.msra.mxu0 0.0
  %1319 = vmatprep.subr.mxu0 0.0
  %1320 = vmatpush1.xpose.msra.mxu0 0.0
  %1321 = vmatprep.mubr.f32.mxu0 0.0
  %1322 = vmatmul.mubr.f32.gmra.mrb[0].mxu0 %v1246
  %v1323 = vpop.f32.mrb[0].mxu0
  %v1324 = vadd.f32 0.0, %v1323
  %v1325 = vpop.f32.mrb[0].mxu0
  %1326 = vmatprep.mubr.f32.mxu0 0.0
  %1327 = vmatmul.mubr.f32.gmra.mrb[0].mxu0 %v1249
  %v1328 = vpop.f32.mrb[0].mxu0
  %v1329 = vadd.f32 0.0, %v1328
  %v1330 = vpop.f32.mrb[0].mxu0
  %1331 = vdwg.mxu0
  %v1333 = vsel %vm200, %v154, 0
  %v1336 = vsel %vm200, %v155, 0
  %v1339 = vsel %vm200, %v190, 0
  %v1342 = vsel %vm200, %v191, 0
  %1344 = vmatprep.subr.mxu0 0.0
  %1345 = vmatpush1.xpose.msra.mxu0 %v1339
  %1346 = vmatprep.subr.mxu0 0.0
  %1347 = vmatpush1.xpose.msra.mxu0 %v1342
  %1348 = vmatprep.subr.mxu0 0.0
  %1349 = vmatpush1.xpose.msra.mxu0 0.0
  %1350 = vmatprep.subr.mxu0 0.0
  %1351 = vmatpush1.xpose.msra.mxu0 0.0
  %1352 = vmatprep.subr.mxu0 0.0
  %1353 = vmatpush1.xpose.msra.mxu0 0.0
  %1354 = vmatprep.subr.mxu0 0.0
  %1355 = vmatpush1.xpose.msra.mxu0 0.0
  %1356 = vmatprep.subr.mxu0 0.0
  %1357 = vmatpush1.xpose.msra.mxu0 0.0
  %1358 = vmatprep.subr.mxu0 0.0
  %1359 = vmatpush1.xpose.msra.mxu0 0.0
  %1360 = vmatprep.subr.mxu0 0.0
  %1361 = vmatpush1.xpose.msra.mxu0 0.0
  %1362 = vmatprep.subr.mxu0 0.0
  %1363 = vmatpush1.xpose.msra.mxu0 0.0
  %1364 = vmatprep.subr.mxu0 0.0
  %1365 = vmatpush1.xpose.msra.mxu0 0.0
  %1366 = vmatprep.subr.mxu0 0.0
  %1367 = vmatpush1.xpose.msra.mxu0 0.0
  %1368 = vmatprep.subr.mxu0 0.0
  %1369 = vmatpush1.xpose.msra.mxu0 0.0
  %1370 = vmatprep.subr.mxu0 0.0
  %1371 = vmatpush1.xpose.msra.mxu0 0.0
  %1372 = vmatprep.subr.mxu0 0.0
  %1373 = vmatpush1.xpose.msra.mxu0 0.0
  %1374 = vmatprep.subr.mxu0 0.0
  %1375 = vmatpush1.xpose.msra.mxu0 0.0
  %1376 = vmatprep.subr.mxu0 0.0
  %1377 = vmatpush1.xpose.msra.mxu0 0.0
  %1378 = vmatprep.subr.mxu0 0.0
  %1379 = vmatpush1.xpose.msra.mxu0 0.0
  %1380 = vmatprep.subr.mxu0 0.0
  %1381 = vmatpush1.xpose.msra.mxu0 0.0
  %1382 = vmatprep.subr.mxu0 0.0
  %1383 = vmatpush1.xpose.msra.mxu0 0.0
  %1384 = vmatprep.subr.mxu0 0.0
  %1385 = vmatpush1.xpose.msra.mxu0 0.0
  %1386 = vmatprep.subr.mxu0 0.0
  %1387 = vmatpush1.xpose.msra.mxu0 0.0
  %1388 = vmatprep.subr.mxu0 0.0
  %1389 = vmatpush1.xpose.msra.mxu0 0.0
  %1390 = vmatprep.subr.mxu0 0.0
  %1391 = vmatpush1.xpose.msra.mxu0 0.0
  %1392 = vmatprep.subr.mxu0 0.0
  %1393 = vmatpush1.xpose.msra.mxu0 0.0
  %1394 = vmatprep.subr.mxu0 0.0
  %1395 = vmatpush1.xpose.msra.mxu0 0.0
  %1396 = vmatprep.subr.mxu0 0.0
  %1397 = vmatpush1.xpose.msra.mxu0 0.0
  %1398 = vmatprep.subr.mxu0 0.0
  %1399 = vmatpush1.xpose.msra.mxu0 0.0
  %1400 = vmatprep.subr.mxu0 0.0
  %1401 = vmatpush1.xpose.msra.mxu0 0.0
  %1402 = vmatprep.subr.mxu0 0.0
  %1403 = vmatpush1.xpose.msra.mxu0 0.0
  %1404 = vmatprep.subr.mxu0 0.0
  %1405 = vmatpush1.xpose.msra.mxu0 0.0
  %1406 = vmatprep.subr.mxu0 0.0
  %1407 = vmatpush1.xpose.msra.mxu0 0.0
  %1408 = vmatprep.mubr.f32.mxu0 0.0
  %1409 = vmatmul.mubr.f32.gmra.mrb[0].mxu0 %v1333
  %v1410 = vpop.f32.mrb[0].mxu0
  %v1411 = vadd.f32 0.0, %v1410
  %v1412 = vpop.f32.mrb[0].mxu0
  %1413 = vmatprep.mubr.f32.mxu0 0.0
  %1414 = vmatmul.mubr.f32.gmra.mrb[0].mxu0 %v1336
  %v1415 = vpop.f32.mrb[0].mxu0
  %v1416 = vadd.f32 0.0, %v1415
  %v1417 = vpop.f32.mrb[0].mxu0
  %1418 = vdwg.mxu0
  %v1420 = vsel %vm200, %v156, 0
  %v1423 = vsel %vm200, %v157, 0
  %v1426 = vsel %vm200, %v192, 0
  %v1429 = vsel %vm200, %v193, 0
  %1431 = vmatprep.subr.mxu0 0.0
  %1432 = vmatpush1.xpose.msra.mxu0 %v1426
  %1433 = vmatprep.subr.mxu0 0.0
  %1434 = vmatpush1.xpose.msra.mxu0 %v1429
  %1435 = vmatprep.subr.mxu0 0.0
  %1436 = vmatpush1.xpose.msra.mxu0 0.0
  %1437 = vmatprep.subr.mxu0 0.0
  %1438 = vmatpush1.xpose.msra.mxu0 0.0
  %1439 = vmatprep.subr.mxu0 0.0
  %1440 = vmatpush1.xpose.msra.mxu0 0.0
  %1441 = vmatprep.subr.mxu0 0.0
  %1442 = vmatpush1.xpose.msra.mxu0 0.0
  %1443 = vmatprep.subr.mxu0 0.0
  %1444 = vmatpush1.xpose.msra.mxu0 0.0
  %1445 = vmatprep.subr.mxu0 0.0
  %1446 = vmatpush1.xpose.msra.mxu0 0.0
  %1447 = vmatprep.subr.mxu0 0.0
  %1448 = vmatpush1.xpose.msra.mxu0 0.0
  %1449 = vmatprep.subr.mxu0 0.0
  %1450 = vmatpush1.xpose.msra.mxu0 0.0
  %1451 = vmatprep.subr.mxu0 0.0
  %1452 = vmatpush1.xpose.msra.mxu0 0.0
  %1453 = vmatprep.subr.mxu0 0.0
  %1454 = vmatpush1.xpose.msra.mxu0 0.0
  %1455 = vmatprep.subr.mxu0 0.0
  %1456 = vmatpush1.xpose.msra.mxu0 0.0
  %1457 = vmatprep.subr.mxu0 0.0
  %1458 = vmatpush1.xpose.msra.mxu0 0.0
  %1459 = vmatprep.subr.mxu0 0.0
  %1460 = vmatpush1.xpose.msra.mxu0 0.0
  %1461 = vmatprep.subr.mxu0 0.0
  %1462 = vmatpush1.xpose.msra.mxu0 0.0
  %1463 = vmatprep.subr.mxu0 0.0
  %1464 = vmatpush1.xpose.msra.mxu0 0.0
  %1465 = vmatprep.subr.mxu0 0.0
  %1466 = vmatpush1.xpose.msra.mxu0 0.0
  %1467 = vmatprep.subr.mxu0 0.0
  %1468 = vmatpush1.xpose.msra.mxu0 0.0
  %1469 = vmatprep.subr.mxu0 0.0
  %1470 = vmatpush1.xpose.msra.mxu0 0.0
  %1471 = vmatprep.subr.mxu0 0.0
  %1472 = vmatpush1.xpose.msra.mxu0 0.0
  %1473 = vmatprep.subr.mxu0 0.0
  %1474 = vmatpush1.xpose.msra.mxu0 0.0
  %1475 = vmatprep.subr.mxu0 0.0
  %1476 = vmatpush1.xpose.msra.mxu0 0.0
  %1477 = vmatprep.subr.mxu0 0.0
  %1478 = vmatpush1.xpose.msra.mxu0 0.0
  %1479 = vmatprep.subr.mxu0 0.0
  %1480 = vmatpush1.xpose.msra.mxu0 0.0
  %1481 = vmatprep.subr.mxu0 0.0
  %1482 = vmatpush1.xpose.msra.mxu0 0.0
  %1483 = vmatprep.subr.mxu0 0.0
  %1484 = vmatpush1.xpose.msra.mxu0 0.0
  %1485 = vmatprep.subr.mxu0 0.0
  %1486 = vmatpush1.xpose.msra.mxu0 0.0
  %1487 = vmatprep.subr.mxu0 0.0
  %1488 = vmatpush1.xpose.msra.mxu0 0.0
  %1489 = vmatprep.subr.mxu0 0.0
  %1490 = vmatpush1.xpose.msra.mxu0 0.0
  %1491 = vmatprep.subr.mxu0 0.0
  %1492 = vmatpush1.xpose.msra.mxu0 0.0
  %1493 = vmatprep.subr.mxu0 0.0
  %1494 = vmatpush1.xpose.msra.mxu0 0.0
  %1495 = vmatprep.mubr.f32.mxu0 0.0
  %1496 = vmatmul.mubr.f32.gmra.mrb[0].mxu0 %v1420
  %v1497 = vpop.f32.mrb[0].mxu0
  %v1498 = vadd.f32 0.0, %v1497
  %v1499 = vpop.f32.mrb[0].mxu0
  %1500 = vmatprep.mubr.f32.mxu0 0.0
  %1501 = vmatmul.mubr.f32.gmra.mrb[0].mxu0 %v1423
  %v1502 = vpop.f32.mrb[0].mxu0
  %v1503 = vadd.f32 0.0, %v1502
  %v1504 = vpop.f32.mrb[0].mxu0
  %1505 = vdwg.mxu0
  %v1507 = vsel %vm200, %v158, 0
  %v1510 = vsel %vm200, %v159, 0
  %v1513 = vsel %vm200, %v194, 0
  %v1516 = vsel %vm200, %v195, 0
  %1518 = vmatprep.subr.mxu0 0.0
  %1519 = vmatpush1.xpose.msra.mxu0 %v1513
  %1520 = vmatprep.subr.mxu0 0.0
  %1521 = vmatpush1.xpose.msra.mxu0 %v1516
  %1522 = vmatprep.subr.mxu0 0.0
  %1523 = vmatpush1.xpose.msra.mxu0 0.0
  %1524 = vmatprep.subr.mxu0 0.0
  %1525 = vmatpush1.xpose.msra.mxu0 0.0
  %1526 = vmatprep.subr.mxu0 0.0
  %1527 = vmatpush1.xpose.msra.mxu0 0.0
  %1528 = vmatprep.subr.mxu0 0.0
  %1529 = vmatpush1.xpose.msra.mxu0 0.0
  %1530 = vmatprep.subr.mxu0 0.0
  %1531 = vmatpush1.xpose.msra.mxu0 0.0
  %1532 = vmatprep.subr.mxu0 0.0
  %1533 = vmatpush1.xpose.msra.mxu0 0.0
  %1534 = vmatprep.subr.mxu0 0.0
  %1535 = vmatpush1.xpose.msra.mxu0 0.0
  %1536 = vmatprep.subr.mxu0 0.0
  %1537 = vmatpush1.xpose.msra.mxu0 0.0
  %1538 = vmatprep.subr.mxu0 0.0
  %1539 = vmatpush1.xpose.msra.mxu0 0.0
  %1540 = vmatprep.subr.mxu0 0.0
  %1541 = vmatpush1.xpose.msra.mxu0 0.0
  %1542 = vmatprep.subr.mxu0 0.0
  %1543 = vmatpush1.xpose.msra.mxu0 0.0
  %1544 = vmatprep.subr.mxu0 0.0
  %1545 = vmatpush1.xpose.msra.mxu0 0.0
  %1546 = vmatprep.subr.mxu0 0.0
  %1547 = vmatpush1.xpose.msra.mxu0 0.0
  %1548 = vmatprep.subr.mxu0 0.0
  %1549 = vmatpush1.xpose.msra.mxu0 0.0
  %1550 = vmatprep.subr.mxu0 0.0
  %1551 = vmatpush1.xpose.msra.mxu0 0.0
  %1552 = vmatprep.subr.mxu0 0.0
  %1553 = vmatpush1.xpose.msra.mxu0 0.0
  %1554 = vmatprep.subr.mxu0 0.0
  %1555 = vmatpush1.xpose.msra.mxu0 0.0
  %1556 = vmatprep.subr.mxu0 0.0
  %1557 = vmatpush1.xpose.msra.mxu0 0.0
  %1558 = vmatprep.subr.mxu0 0.0
  %1559 = vmatpush1.xpose.msra.mxu0 0.0
  %1560 = vmatprep.subr.mxu0 0.0
  %1561 = vmatpush1.xpose.msra.mxu0 0.0
  %1562 = vmatprep.subr.mxu0 0.0
  %1563 = vmatpush1.xpose.msra.mxu0 0.0
  %1564 = vmatprep.subr.mxu0 0.0
  %1565 = vmatpush1.xpose.msra.mxu0 0.0
  %1566 = vmatprep.subr.mxu0 0.0
  %1567 = vmatpush1.xpose.msra.mxu0 0.0
  %1568 = vmatprep.subr.mxu0 0.0
  %1569 = vmatpush1.xpose.msra.mxu0 0.0
  %1570 = vmatprep.subr.mxu0 0.0
  %1571 = vmatpush1.xpose.msra.mxu0 0.0
  %1572 = vmatprep.subr.mxu0 0.0
  %1573 = vmatpush1.xpose.msra.mxu0 0.0
  %1574 = vmatprep.subr.mxu0 0.0
  %1575 = vmatpush1.xpose.msra.mxu0 0.0
  %1576 = vmatprep.subr.mxu0 0.0
  %1577 = vmatpush1.xpose.msra.mxu0 0.0
  %1578 = vmatprep.subr.mxu0 0.0
  %1579 = vmatpush1.xpose.msra.mxu0 0.0
  %1580 = vmatprep.subr.mxu0 0.0
  %1581 = vmatpush1.xpose.msra.mxu0 0.0
  %1582 = vmatprep.mubr.f32.mxu0 0.0
  %1583 = vmatmul.mubr.f32.gmra.mrb[0].mxu0 %v1507
  %v1584 = vpop.f32.mrb[0].mxu0
  %v1585 = vadd.f32 0.0, %v1584
  %v1586 = vpop.f32.mrb[0].mxu0
  %1587 = vmatprep.mubr.f32.mxu0 0.0
  %1588 = vmatmul.mubr.f32.gmra.mrb[0].mxu0 %v1510
  %v1589 = vpop.f32.mrb[0].mxu0
  %v1590 = vadd.f32 0.0, %v1589
  %v1591 = vpop.f32.mrb[0].mxu0
  %1592 = vdwg.mxu0
  %v1594 = vsel %vm200, %v160, 0
  %v1597 = vsel %vm200, %v161, 0
  %v1600 = vsel %vm200, %v196, 0
  %v1603 = vsel %vm200, %v197, 0
  %1605 = vmatprep.subr.mxu0 0.0
  %1606 = vmatpush1.xpose.msra.mxu0 %v1600
  %1607 = vmatprep.subr.mxu0 0.0
  %1608 = vmatpush1.xpose.msra.mxu0 %v1603
  %1609 = vmatprep.subr.mxu0 0.0
  %1610 = vmatpush1.xpose.msra.mxu0 0.0
  %1611 = vmatprep.subr.mxu0 0.0
  %1612 = vmatpush1.xpose.msra.mxu0 0.0
  %1613 = vmatprep.subr.mxu0 0.0
  %1614 = vmatpush1.xpose.msra.mxu0 0.0
  %1615 = vmatprep.subr.mxu0 0.0
  %1616 = vmatpush1.xpose.msra.mxu0 0.0
  %1617 = vmatprep.subr.mxu0 0.0
  %1618 = vmatpush1.xpose.msra.mxu0 0.0
  %1619 = vmatprep.subr.mxu0 0.0
  %1620 = vmatpush1.xpose.msra.mxu0 0.0
  %1621 = vmatprep.subr.mxu0 0.0
  %1622 = vmatpush1.xpose.msra.mxu0 0.0
  %1623 = vmatprep.subr.mxu0 0.0
  %1624 = vmatpush1.xpose.msra.mxu0 0.0
  %1625 = vmatprep.subr.mxu0 0.0
  %1626 = vmatpush1.xpose.msra.mxu0 0.0
  %1627 = vmatprep.subr.mxu0 0.0
  %1628 = vmatpush1.xpose.msra.mxu0 0.0
  %1629 = vmatprep.subr.mxu0 0.0
  %1630 = vmatpush1.xpose.msra.mxu0 0.0
  %1631 = vmatprep.subr.mxu0 0.0
  %1632 = vmatpush1.xpose.msra.mxu0 0.0
  %1633 = vmatprep.subr.mxu0 0.0
  %1634 = vmatpush1.xpose.msra.mxu0 0.0
  %1635 = vmatprep.subr.mxu0 0.0
  %1636 = vmatpush1.xpose.msra.mxu0 0.0
  %1637 = vmatprep.subr.mxu0 0.0
  %1638 = vmatpush1.xpose.msra.mxu0 0.0
  %1639 = vmatprep.subr.mxu0 0.0
  %1640 = vmatpush1.xpose.msra.mxu0 0.0
  %1641 = vmatprep.subr.mxu0 0.0
  %1642 = vmatpush1.xpose.msra.mxu0 0.0
  %1643 = vmatprep.subr.mxu0 0.0
  %1644 = vmatpush1.xpose.msra.mxu0 0.0
  %1645 = vmatprep.subr.mxu0 0.0
  %1646 = vmatpush1.xpose.msra.mxu0 0.0
  %1647 = vmatprep.subr.mxu0 0.0
  %1648 = vmatpush1.xpose.msra.mxu0 0.0
  %1649 = vmatprep.subr.mxu0 0.0
  %1650 = vmatpush1.xpose.msra.mxu0 0.0
  %1651 = vmatprep.subr.mxu0 0.0
  %1652 = vmatpush1.xpose.msra.mxu0 0.0
  %1653 = vmatprep.subr.mxu0 0.0
  %1654 = vmatpush1.xpose.msra.mxu0 0.0
  %1655 = vmatprep.subr.mxu0 0.0
  %1656 = vmatpush1.xpose.msra.mxu0 0.0
  %1657 = vmatprep.subr.mxu0 0.0
  %1658 = vmatpush1.xpose.msra.mxu0 0.0
  %1659 = vmatprep.subr.mxu0 0.0
  %1660 = vmatpush1.xpose.msra.mxu0 0.0
  %1661 = vmatprep.subr.mxu0 0.0
  %1662 = vmatpush1.xpose.msra.mxu0 0.0
  %1663 = vmatprep.subr.mxu0 0.0
  %1664 = vmatpush1.xpose.msra.mxu0 0.0
  %1665 = vmatprep.subr.mxu0 0.0
  %1666 = vmatpush1.xpose.msra.mxu0 0.0
  %1667 = vmatprep.subr.mxu0 0.0
  %1668 = vmatpush1.xpose.msra.mxu0 0.0
  %1669 = vmatprep.mubr.f32.mxu0 0.0
  %1670 = vmatmul.mubr.f32.gmra.mrb[0].mxu0 %v1594
  %v1671 = vpop.f32.mrb[0].mxu0
  %v1672 = vadd.f32 0.0, %v1671
  %v1673 = vpop.f32.mrb[0].mxu0
  %1674 = vmatprep.mubr.f32.mxu0 0.0
  %1675 = vmatmul.mubr.f32.gmra.mrb[0].mxu0 %v1597
  %v1676 = vpop.f32.mrb[0].mxu0
  %v1677 = vadd.f32 0.0, %v1676
  %v1678 = vpop.f32.mrb[0].mxu0
  %1679 = vdwg.mxu0
  %v1681 = vsel %vm200, %v162, 0
  %v1684 = vsel %vm200, %v163, 0
  %v1687 = vsel %vm200, %v198, 0
  %v1690 = vsel %vm200, %v199, 0
  %1692 = vmatprep.subr.mxu0 0.0
  %1693 = vmatpush1.xpose.msra.mxu0 %v1687
  %1694 = vmatprep.subr.mxu0 0.0
  %1695 = vmatpush1.xpose.msra.mxu0 %v1690
  %1696 = vmatprep.subr.mxu0 0.0
  %1697 = vmatpush1.xpose.msra.mxu0 0.0
  %1698 = vmatprep.subr.mxu0 0.0
  %1699 = vmatpush1.xpose.msra.mxu0 0.0
  %1700 = vmatprep.subr.mxu0 0.0
  %1701 = vmatpush1.xpose.msra.mxu0 0.0
  %1702 = vmatprep.subr.mxu0 0.0
  %1703 = vmatpush1.xpose.msra.mxu0 0.0
  %1704 = vmatprep.subr.mxu0 0.0
  %1705 = vmatpush1.xpose.msra.mxu0 0.0
  %1706 = vmatprep.subr.mxu0 0.0
  %1707 = vmatpush1.xpose.msra.mxu0 0.0
  %1708 = vmatprep.subr.mxu0 0.0
  %1709 = vmatpush1.xpose.msra.mxu0 0.0
  %1710 = vmatprep.subr.mxu0 0.0
  %1711 = vmatpush1.xpose.msra.mxu0 0.0
  %1712 = vmatprep.subr.mxu0 0.0
  %1713 = vmatpush1.xpose.msra.mxu0 0.0
  %1714 = vmatprep.subr.mxu0 0.0
  %1715 = vmatpush1.xpose.msra.mxu0 0.0
  %1716 = vmatprep.subr.mxu0 0.0
  %1717 = vmatpush1.xpose.msra.mxu0 0.0
  %1718 = vmatprep.subr.mxu0 0.0
  %1719 = vmatpush1.xpose.msra.mxu0 0.0
  %1720 = vmatprep.subr.mxu0 0.0
  %1721 = vmatpush1.xpose.msra.mxu0 0.0
  %1722 = vmatprep.subr.mxu0 0.0
  %1723 = vmatpush1.xpose.msra.mxu0 0.0
  %1724 = vmatprep.subr.mxu0 0.0
  %1725 = vmatpush1.xpose.msra.mxu0 0.0
  %1726 = vmatprep.subr.mxu0 0.0
  %1727 = vmatpush1.xpose.msra.mxu0 0.0
  %1728 = vmatprep.subr.mxu0 0.0
  %1729 = vmatpush1.xpose.msra.mxu0 0.0
  %1730 = vmatprep.subr.mxu0 0.0
  %1731 = vmatpush1.xpose.msra.mxu0 0.0
  %1732 = vmatprep.subr.mxu0 0.0
  %1733 = vmatpush1.xpose.msra.mxu0 0.0
  %1734 = vmatprep.subr.mxu0 0.0
  %1735 = vmatpush1.xpose.msra.mxu0 0.0
  %1736 = vmatprep.subr.mxu0 0.0
  %1737 = vmatpush1.xpose.msra.mxu0 0.0
  %1738 = vmatprep.subr.mxu0 0.0
  %1739 = vmatpush1.xpose.msra.mxu0 0.0
  %1740 = vmatprep.subr.mxu0 0.0
  %1741 = vmatpush1.xpose.msra.mxu0 0.0
  %1742 = vmatprep.subr.mxu0 0.0
  %1743 = vmatpush1.xpose.msra.mxu0 0.0
  %1744 = vmatprep.subr.mxu0 0.0
  %1745 = vmatpush1.xpose.msra.mxu0 0.0
  %1746 = vmatprep.subr.mxu0 0.0
  %1747 = vmatpush1.xpose.msra.mxu0 0.0
  %1748 = vmatprep.subr.mxu0 0.0
  %1749 = vmatpush1.xpose.msra.mxu0 0.0
  %1750 = vmatprep.subr.mxu0 0.0
  %1751 = vmatpush1.xpose.msra.mxu0 0.0
  %1752 = vmatprep.subr.mxu0 0.0
  %1753 = vmatpush1.xpose.msra.mxu0 0.0
  %1754 = vmatprep.subr.mxu0 0.0
  %1755 = vmatpush1.xpose.msra.mxu0 0.0
  %1756 = vmatprep.mubr.f32.mxu0 0.0
  %1757 = vmatmul.mubr.f32.gmra.mrb[0].mxu0 %v1681
  %v1758 = vpop.f32.mrb[0].mxu0
  %v1759 = vadd.f32 0.0, %v1758
  %v1760 = vpop.f32.mrb[0].mxu0
  %1761 = vmatprep.mubr.f32.mxu0 0.0
  %1762 = vmatmul.mubr.f32.gmra.mrb[0].mxu0 %v1684
  %v1763 = vpop.f32.mrb[0].mxu0
  %v1764 = vadd.f32 0.0, %v1763
  %v1765 = vpop.f32.mrb[0].mxu0
  %1766 = vdwg.mxu0
  %v1767 = vld [vmem:[%s2] sm:$0xff]
  %v1768 = vld [vmem:[%s2 + $0x8] sm:$0xff]
  %v1769 = vld [vmem:[%s2 + $0x10] sm:$0xff]
  %v1770 = vld [vmem:[%s2 + $0x18] sm:$0xff]
  %v1771 = vld [vmem:[%s2 + $0x20] sm:$0xff]
  %v1772 = vld [vmem:[%s2 + $0x28] sm:$0xff]
  %v1773 = vld [vmem:[%s2 + $0x30] sm:$0xff]
  %v1774 = vld [vmem:[%s2 + $0x38] sm:$0xff]
  %v1775 = vld [vmem:[%s2 + $0x40] sm:$0xff]
  %v1776 = vld [vmem:[%s2 + $0x48] sm:$0xff]
  %v1777 = vld [vmem:[%s2 + $0x50] sm:$0xff]
  %v1778 = vld [vmem:[%s2 + $0x58] sm:$0xff]
  %v1779 = vld [vmem:[%s2 + $0x60] sm:$0xff]
  %v1780 = vld [vmem:[%s2 + $0x68] sm:$0xff]
  %v1781 = vld [vmem:[%s2 + $0x70] sm:$0xff]
  %v1782 = vld [vmem:[%s2 + $0x78] sm:$0xff]
  %v1783 = vld [vmem:[%s2 + $0x80] sm:$0xff]
  %v1784 = vld [vmem:[%s2 + $0x88] sm:$0xff]
  %v1785 = vld [vmem:[%s2 + $0x90] sm:$0xff]
  %v1786 = vld [vmem:[%s2 + $0x98] sm:$0xff]
  %v1787 = vld [vmem:[%s2 + $0xa0] sm:$0xff]
  %v1788 = vld [vmem:[%s2 + $0xa8] sm:$0xff]
  %v1789 = vld [vmem:[%s2 + $0xb0] sm:$0xff]
  %v1790 = vld [vmem:[%s2 + $0xb8] sm:$0xff]
  %v1791 = vld [vmem:[%s2 + $0xc0] sm:$0xff]
  %v1792 = vld [vmem:[%s2 + $0xc8] sm:$0xff]
  %v1793 = vld [vmem:[%s2 + $0xd0] sm:$0xff]
  %v1794 = vld [vmem:[%s2 + $0xd8] sm:$0xff]
  %v1795 = vld [vmem:[%s2 + $0xe0] sm:$0xff]
  %v1796 = vld [vmem:[%s2 + $0xe8] sm:$0xff]
  %v1797 = vld [vmem:[%s2 + $0xf0] sm:$0xff]
  %v1798 = vld [vmem:[%s2 + $0xf8] sm:$0xff]
  %v1799 = vld [vmem:[%s2 + $0x100] sm:$0xff]
  %v1800 = vld [vmem:[%s2 + $0x108] sm:$0xff]
  %v1801 = vld [vmem:[%s2 + $0x110] sm:$0xff]
  %v1802 = vld [vmem:[%s2 + $0x118] sm:$0xff]
  %v1804 = vsel %vm200, %v280, 0
  %v1807 = vsel %vm200, %v285, 0
  %1809 = vmatprep.subr.mxu0 0.0
  %1810 = vmatpush1.msra.mxu0 %v1767
  %1811 = vmatprep.subr.mxu0 0.0
  %1812 = vmatpush1.msra.mxu0 %v1768
  %1813 = vmatprep.subr.mxu0 0.0
  %1814 = vmatpush1.msra.mxu0 0.0
  %1815 = vmatprep.subr.mxu0 0.0
  %1816 = vmatpush1.msra.mxu0 0.0
  %1817 = vmatprep.subr.mxu0 0.0
  %1818 = vmatpush1.msra.mxu0 0.0
  %1819 = vmatprep.subr.mxu0 0.0
  %1820 = vmatpush1.msra.mxu0 0.0
  %1821 = vmatprep.subr.mxu0 0.0
  %1822 = vmatpush1.msra.mxu0 0.0
  %1823 = vmatprep.subr.mxu0 0.0
  %1824 = vmatpush1.msra.mxu0 0.0
  %1825 = vmatprep.subr.mxu0 0.0
  %1826 = vmatpush1.msra.mxu0 0.0
  %1827 = vmatprep.subr.mxu0 0.0
  %1828 = vmatpush1.msra.mxu0 0.0
  %1829 = vmatprep.subr.mxu0 0.0
  %1830 = vmatpush1.msra.mxu0 0.0
  %1831 = vmatprep.subr.mxu0 0.0
  %1832 = vmatpush1.msra.mxu0 0.0
  %1833 = vmatprep.subr.mxu0 0.0
  %1834 = vmatpush1.msra.mxu0 0.0
  %1835 = vmatprep.subr.mxu0 0.0
  %1836 = vmatpush1.msra.mxu0 0.0
  %1837 = vmatprep.subr.mxu0 0.0
  %1838 = vmatpush1.msra.mxu0 0.0
  %1839 = vmatprep.subr.mxu0 0.0
  %1840 = vmatpush1.msra.mxu0 0.0
  %1841 = vmatprep.subr.mxu0 0.0
  %1842 = vmatpush1.msra.mxu0 0.0
  %1843 = vmatprep.subr.mxu0 0.0
  %1844 = vmatpush1.msra.mxu0 0.0
  %1845 = vmatprep.subr.mxu0 0.0
  %1846 = vmatpush1.msra.mxu0 0.0
  %1847 = vmatprep.subr.mxu0 0.0
  %1848 = vmatpush1.msra.mxu0 0.0
  %1849 = vmatprep.subr.mxu0 0.0
  %1850 = vmatpush1.msra.mxu0 0.0
  %1851 = vmatprep.subr.mxu0 0.0
  %1852 = vmatpush1.msra.mxu0 0.0
  %1853 = vmatprep.subr.mxu0 0.0
  %1854 = vmatpush1.msra.mxu0 0.0
  %1855 = vmatprep.subr.mxu0 0.0
  %1856 = vmatpush1.msra.mxu0 0.0
  %1857 = vmatprep.subr.mxu0 0.0
  %1858 = vmatpush1.msra.mxu0 0.0
  %1859 = vmatprep.subr.mxu0 0.0
  %1860 = vmatpush1.msra.mxu0 0.0
  %1861 = vmatprep.subr.mxu0 0.0
  %1862 = vmatpush1.msra.mxu0 0.0
  %1863 = vmatprep.subr.mxu0 0.0
  %1864 = vmatpush1.msra.mxu0 0.0
  %1865 = vmatprep.subr.mxu0 0.0
  %1866 = vmatpush1.msra.mxu0 0.0
  %1867 = vmatprep.subr.mxu0 0.0
  %1868 = vmatpush1.msra.mxu0 0.0
  %1869 = vmatprep.subr.mxu0 0.0
  %1870 = vmatpush1.msra.mxu0 0.0
  %1871 = vmatprep.subr.mxu0 0.0
  %1872 = vmatpush1.msra.mxu0 0.0
  %1873 = vmatprep.mubr.f32.mxu0 0.0
  %1874 = vmatmul.mubr.f32.gmra.mrb[0].mxu0 %v1804
  %v1875 = vpop.f32.mrb[0].mxu0
  %v1876 = vadd.f32 0.0, %v1875
  %v1877 = vpop.f32.mrb[0].mxu0
  %1878 = vmatprep.mubr.f32.mxu0 0.0
  %1879 = vmatmul.mubr.f32.gmra.mrb[0].mxu0 %v1807
  %v1880 = vpop.f32.mrb[0].mxu0
  %v1881 = vadd.f32 0.0, %v1880
  %v1882 = vpop.f32.mrb[0].mxu0
  %1883 = vdwg.mxu0
  %v1885 = vsel %vm200, %v367, 0
  %v1888 = vsel %vm200, %v372, 0
  %1890 = vmatprep.subr.mxu0 0.0
  %1891 = vmatpush1.msra.mxu0 %v1769
  %1892 = vmatprep.subr.mxu0 0.0
  %1893 = vmatpush1.msra.mxu0 %v1770
  %1894 = vmatprep.subr.mxu0 0.0
  %1895 = vmatpush1.msra.mxu0 0.0
  %1896 = vmatprep.subr.mxu0 0.0
  %1897 = vmatpush1.msra.mxu0 0.0
  %1898 = vmatprep.subr.mxu0 0.0
  %1899 = vmatpush1.msra.mxu0 0.0
  %1900 = vmatprep.subr.mxu0 0.0
  %1901 = vmatpush1.msra.mxu0 0.0
  %1902 = vmatprep.subr.mxu0 0.0
  %1903 = vmatpush1.msra.mxu0 0.0
  %1904 = vmatprep.subr.mxu0 0.0
  %1905 = vmatpush1.msra.mxu0 0.0
  %1906 = vmatprep.subr.mxu0 0.0
  %1907 = vmatpush1.msra.mxu0 0.0
  %1908 = vmatprep.subr.mxu0 0.0
  %1909 = vmatpush1.msra.mxu0 0.0
  %1910 = vmatprep.subr.mxu0 0.0
  %1911 = vmatpush1.msra.mxu0 0.0
  %1912 = vmatprep.subr.mxu0 0.0
  %1913 = vmatpush1.msra.mxu0 0.0
  %1914 = vmatprep.subr.mxu0 0.0
  %1915 = vmatpush1.msra.mxu0 0.0
  %1916 = vmatprep.subr.mxu0 0.0
  %1917 = vmatpush1.msra.mxu0 0.0
  %1918 = vmatprep.subr.mxu0 0.0
  %1919 = vmatpush1.msra.mxu0 0.0
  %1920 = vmatprep.subr.mxu0 0.0
  %1921 = vmatpush1.msra.mxu0 0.0
  %1922 = vmatprep.subr.mxu0 0.0
  %1923 = vmatpush1.msra.mxu0 0.0
  %1924 = vmatprep.subr.mxu0 0.0
  %1925 = vmatpush1.msra.mxu0 0.0
  %1926 = vmatprep.subr.mxu0 0.0
  %1927 = vmatpush1.msra.mxu0 0.0
  %1928 = vmatprep.subr.mxu0 0.0
  %1929 = vmatpush1.msra.mxu0 0.0
  %1930 = vmatprep.subr.mxu0 0.0
  %1931 = vmatpush1.msra.mxu0 0.0
  %1932 = vmatprep.subr.mxu0 0.0
  %1933 = vmatpush1.msra.mxu0 0.0
  %1934 = vmatprep.subr.mxu0 0.0
  %1935 = vmatpush1.msra.mxu0 0.0
  %1936 = vmatprep.subr.mxu0 0.0
  %1937 = vmatpush1.msra.mxu0 0.0
  %1938 = vmatprep.subr.mxu0 0.0
  %1939 = vmatpush1.msra.mxu0 0.0
  %1940 = vmatprep.subr.mxu0 0.0
  %1941 = vmatpush1.msra.mxu0 0.0
  %1942 = vmatprep.subr.mxu0 0.0
  %1943 = vmatpush1.msra.mxu0 0.0
  %1944 = vmatprep.subr.mxu0 0.0
  %1945 = vmatpush1.msra.mxu0 0.0
  %1946 = vmatprep.subr.mxu0 0.0
  %1947 = vmatpush1.msra.mxu0 0.0
  %1948 = vmatprep.subr.mxu0 0.0
  %1949 = vmatpush1.msra.mxu0 0.0
  %1950 = vmatprep.subr.mxu0 0.0
  %1951 = vmatpush1.msra.mxu0 0.0
  %1952 = vmatprep.subr.mxu0 0.0
  %1953 = vmatpush1.msra.mxu0 0.0
  %1954 = vmatprep.mubr.f32.mxu0 0.0
  %1955 = vmatmul.mubr.f32.gmra.mrb[0].mxu0 %v1885
  %v1956 = vpop.f32.mrb[0].mxu0
  %v1957 = vadd.f32 0.0, %v1956
  %v1958 = vpop.f32.mrb[0].mxu0
  %1959 = vmatprep.mubr.f32.mxu0 0.0
  %1960 = vmatmul.mubr.f32.gmra.mrb[0].mxu0 %v1888
  %v1961 = vpop.f32.mrb[0].mxu0
  %v1962 = vadd.f32 0.0, %v1961
  %v1963 = vpop.f32.mrb[0].mxu0
  %1964 = vdwg.mxu0
  %v1966 = vsel %vm200, %v454, 0
  %v1969 = vsel %vm200, %v459, 0
  %1971 = vmatprep.subr.mxu0 0.0
  %1972 = vmatpush1.msra.mxu0 %v1771
  %1973 = vmatprep.subr.mxu0 0.0
  %1974 = vmatpush1.msra.mxu0 %v1772
  %1975 = vmatprep.subr.mxu0 0.0
  %1976 = vmatpush1.msra.mxu0 0.0
  %1977 = vmatprep.subr.mxu0 0.0
  %1978 = vmatpush1.msra.mxu0 0.0
  %1979 = vmatprep.subr.mxu0 0.0
  %1980 = vmatpush1.msra.mxu0 0.0
  %1981 = vmatprep.subr.mxu0 0.0
  %1982 = vmatpush1.msra.mxu0 0.0
  %1983 = vmatprep.subr.mxu0 0.0
  %1984 = vmatpush1.msra.mxu0 0.0
  %1985 = vmatprep.subr.mxu0 0.0
  %1986 = vmatpush1.msra.mxu0 0.0
  %1987 = vmatprep.subr.mxu0 0.0
  %1988 = vmatpush1.msra.mxu0 0.0
  %1989 = vmatprep.subr.mxu0 0.0
  %1990 = vmatpush1.msra.mxu0 0.0
  %1991 = vmatprep.subr.mxu0 0.0
  %1992 = vmatpush1.msra.mxu0 0.0
  %1993 = vmatprep.subr.mxu0 0.0
  %1994 = vmatpush1.msra.mxu0 0.0
  %1995 = vmatprep.subr.mxu0 0.0
  %1996 = vmatpush1.msra.mxu0 0.0
  %1997 = vmatprep.subr.mxu0 0.0
  %1998 = vmatpush1.msra.mxu0 0.0
  %1999 = vmatprep.subr.mxu0 0.0
  %2000 = vmatpush1.msra.mxu0 0.0
  %2001 = vmatprep.subr.mxu0 0.0
  %2002 = vmatpush1.msra.mxu0 0.0
  %2003 = vmatprep.subr.mxu0 0.0
  %2004 = vmatpush1.msra.mxu0 0.0
  %2005 = vmatprep.subr.mxu0 0.0
  %2006 = vmatpush1.msra.mxu0 0.0
  %2007 = vmatprep.subr.mxu0 0.0
  %2008 = vmatpush1.msra.mxu0 0.0
  %2009 = vmatprep.subr.mxu0 0.0
  %2010 = vmatpush1.msra.mxu0 0.0
  %2011 = vmatprep.subr.mxu0 0.0
  %2012 = vmatpush1.msra.mxu0 0.0
  %2013 = vmatprep.subr.mxu0 0.0
  %2014 = vmatpush1.msra.mxu0 0.0
  %2015 = vmatprep.subr.mxu0 0.0
  %2016 = vmatpush1.msra.mxu0 0.0
  %2017 = vmatprep.subr.mxu0 0.0
  %2018 = vmatpush1.msra.mxu0 0.0
  %2019 = vmatprep.subr.mxu0 0.0
  %2020 = vmatpush1.msra.mxu0 0.0
  %2021 = vmatprep.subr.mxu0 0.0
  %2022 = vmatpush1.msra.mxu0 0.0
  %2023 = vmatprep.subr.mxu0 0.0
  %2024 = vmatpush1.msra.mxu0 0.0
  %2025 = vmatprep.subr.mxu0 0.0
  %2026 = vmatpush1.msra.mxu0 0.0
  %2027 = vmatprep.subr.mxu0 0.0
  %2028 = vmatpush1.msra.mxu0 0.0
  %2029 = vmatprep.subr.mxu0 0.0
  %2030 = vmatpush1.msra.mxu0 0.0
  %2031 = vmatprep.subr.mxu0 0.0
  %2032 = vmatpush1.msra.mxu0 0.0
  %2033 = vmatprep.subr.mxu0 0.0
  %2034 = vmatpush1.msra.mxu0 0.0
  %2035 = vmatprep.mubr.f32.mxu0 0.0
  %2036 = vmatmul.mubr.f32.gmra.mrb[0].mxu0 %v1966
  %v2037 = vpop.f32.mrb[0].mxu0
  %v2038 = vadd.f32 0.0, %v2037
  %v2039 = vpop.f32.mrb[0].mxu0
  %2040 = vmatprep.mubr.f32.mxu0 0.0
  %2041 = vmatmul.mubr.f32.gmra.mrb[0].mxu0 %v1969
  %v2042 = vpop.f32.mrb[0].mxu0
  %v2043 = vadd.f32 0.0, %v2042
  %v2044 = vpop.f32.mrb[0].mxu0
  %2045 = vdwg.mxu0
  %v2047 = vsel %vm200, %v541, 0
  %v2050 = vsel %vm200, %v546, 0
  %2052 = vmatprep.subr.mxu0 0.0
  %2053 = vmatpush1.msra.mxu0 %v1773
  %2054 = vmatprep.subr.mxu0 0.0
  %2055 = vmatpush1.msra.mxu0 %v1774
  %2056 = vmatprep.subr.mxu0 0.0
  %2057 = vmatpush1.msra.mxu0 0.0
  %2058 = vmatprep.subr.mxu0 0.0
  %2059 = vmatpush1.msra.mxu0 0.0
  %2060 = vmatprep.subr.mxu0 0.0
  %2061 = vmatpush1.msra.mxu0 0.0
  %2062 = vmatprep.subr.mxu0 0.0
  %2063 = vmatpush1.msra.mxu0 0.0
  %2064 = vmatprep.subr.mxu0 0.0
  %2065 = vmatpush1.msra.mxu0 0.0
  %2066 = vmatprep.subr.mxu0 0.0
  %2067 = vmatpush1.msra.mxu0 0.0
  %2068 = vmatprep.subr.mxu0 0.0
  %2069 = vmatpush1.msra.mxu0 0.0
  %2070 = vmatprep.subr.mxu0 0.0
  %2071 = vmatpush1.msra.mxu0 0.0
  %2072 = vmatprep.subr.mxu0 0.0
  %2073 = vmatpush1.msra.mxu0 0.0
  %2074 = vmatprep.subr.mxu0 0.0
  %2075 = vmatpush1.msra.mxu0 0.0
  %2076 = vmatprep.subr.mxu0 0.0
  %2077 = vmatpush1.msra.mxu0 0.0
  %2078 = vmatprep.subr.mxu0 0.0
  %2079 = vmatpush1.msra.mxu0 0.0
  %2080 = vmatprep.subr.mxu0 0.0
  %2081 = vmatpush1.msra.mxu0 0.0
  %2082 = vmatprep.subr.mxu0 0.0
  %2083 = vmatpush1.msra.mxu0 0.0
  %2084 = vmatprep.subr.mxu0 0.0
  %2085 = vmatpush1.msra.mxu0 0.0
  %2086 = vmatprep.subr.mxu0 0.0
  %2087 = vmatpush1.msra.mxu0 0.0
  %2088 = vmatprep.subr.mxu0 0.0
  %2089 = vmatpush1.msra.mxu0 0.0
  %2090 = vmatprep.subr.mxu0 0.0
  %2091 = vmatpush1.msra.mxu0 0.0
  %2092 = vmatprep.subr.mxu0 0.0
  %2093 = vmatpush1.msra.mxu0 0.0
  %2094 = vmatprep.subr.mxu0 0.0
  %2095 = vmatpush1.msra.mxu0 0.0
  %2096 = vmatprep.subr.mxu0 0.0
  %2097 = vmatpush1.msra.mxu0 0.0
  %2098 = vmatprep.subr.mxu0 0.0
  %2099 = vmatpush1.msra.mxu0 0.0
  %2100 = vmatprep.subr.mxu0 0.0
  %2101 = vmatpush1.msra.mxu0 0.0
  %2102 = vmatprep.subr.mxu0 0.0
  %2103 = vmatpush1.msra.mxu0 0.0
  %2104 = vmatprep.subr.mxu0 0.0
  %2105 = vmatpush1.msra.mxu0 0.0
  %2106 = vmatprep.subr.mxu0 0.0
  %2107 = vmatpush1.msra.mxu0 0.0
  %2108 = vmatprep.subr.mxu0 0.0
  %2109 = vmatpush1.msra.mxu0 0.0
  %2110 = vmatprep.subr.mxu0 0.0
  %2111 = vmatpush1.msra.mxu0 0.0
  %2112 = vmatprep.subr.mxu0 0.0
  %2113 = vmatpush1.msra.mxu0 0.0
  %2114 = vmatprep.subr.mxu0 0.0
  %2115 = vmatpush1.msra.mxu0 0.0
  %2116 = vmatprep.mubr.f32.mxu0 0.0
  %2117 = vmatmul.mubr.f32.gmra.mrb[0].mxu0 %v2047
  %v2118 = vpop.f32.mrb[0].mxu0
  %v2119 = vadd.f32 0.0, %v2118
  %v2120 = vpop.f32.mrb[0].mxu0
  %2121 = vmatprep.mubr.f32.mxu0 0.0
  %2122 = vmatmul.mubr.f32.gmra.mrb[0].mxu0 %v2050
  %v2123 = vpop.f32.mrb[0].mxu0
  %v2124 = vadd.f32 0.0, %v2123
  %v2125 = vpop.f32.mrb[0].mxu0
  %2126 = vdwg.mxu0
  %v2128 = vsel %vm200, %v628, 0
  %v2131 = vsel %vm200, %v633, 0
  %2133 = vmatprep.subr.mxu0 0.0
  %2134 = vmatpush1.msra.mxu0 %v1775
  %2135 = vmatprep.subr.mxu0 0.0
  %2136 = vmatpush1.msra.mxu0 %v1776
  %2137 = vmatprep.subr.mxu0 0.0
  %2138 = vmatpush1.msra.mxu0 0.0
  %2139 = vmatprep.subr.mxu0 0.0
  %2140 = vmatpush1.msra.mxu0 0.0
  %2141 = vmatprep.subr.mxu0 0.0
  %2142 = vmatpush1.msra.mxu0 0.0
  %2143 = vmatprep.subr.mxu0 0.0
  %2144 = vmatpush1.msra.mxu0 0.0
  %2145 = vmatprep.subr.mxu0 0.0
  %2146 = vmatpush1.msra.mxu0 0.0
  %2147 = vmatprep.subr.mxu0 0.0
  %2148 = vmatpush1.msra.mxu0 0.0
  %2149 = vmatprep.subr.mxu0 0.0
  %2150 = vmatpush1.msra.mxu0 0.0
  %2151 = vmatprep.subr.mxu0 0.0
  %2152 = vmatpush1.msra.mxu0 0.0
  %2153 = vmatprep.subr.mxu0 0.0
  %2154 = vmatpush1.msra.mxu0 0.0
  %2155 = vmatprep.subr.mxu0 0.0
  %2156 = vmatpush1.msra.mxu0 0.0
  %2157 = vmatprep.subr.mxu0 0.0
  %2158 = vmatpush1.msra.mxu0 0.0
  %2159 = vmatprep.subr.mxu0 0.0
  %2160 = vmatpush1.msra.mxu0 0.0
  %2161 = vmatprep.subr.mxu0 0.0
  %2162 = vmatpush1.msra.mxu0 0.0
  %2163 = vmatprep.subr.mxu0 0.0
  %2164 = vmatpush1.msra.mxu0 0.0
  %2165 = vmatprep.subr.mxu0 0.0
  %2166 = vmatpush1.msra.mxu0 0.0
  %2167 = vmatprep.subr.mxu0 0.0
  %2168 = vmatpush1.msra.mxu0 0.0
  %2169 = vmatprep.subr.mxu0 0.0
  %2170 = vmatpush1.msra.mxu0 0.0
  %2171 = vmatprep.subr.mxu0 0.0
  %2172 = vmatpush1.msra.mxu0 0.0
  %2173 = vmatprep.subr.mxu0 0.0
  %2174 = vmatpush1.msra.mxu0 0.0
  %2175 = vmatprep.subr.mxu0 0.0
  %2176 = vmatpush1.msra.mxu0 0.0
  %2177 = vmatprep.subr.mxu0 0.0
  %2178 = vmatpush1.msra.mxu0 0.0
  %2179 = vmatprep.subr.mxu0 0.0
  %2180 = vmatpush1.msra.mxu0 0.0
  %2181 = vmatprep.subr.mxu0 0.0
  %2182 = vmatpush1.msra.mxu0 0.0
  %2183 = vmatprep.subr.mxu0 0.0
  %2184 = vmatpush1.msra.mxu0 0.0
  %2185 = vmatprep.subr.mxu0 0.0
  %2186 = vmatpush1.msra.mxu0 0.0
  %2187 = vmatprep.subr.mxu0 0.0
  %2188 = vmatpush1.msra.mxu0 0.0
  %2189 = vmatprep.subr.mxu0 0.0
  %2190 = vmatpush1.msra.mxu0 0.0
  %2191 = vmatprep.subr.mxu0 0.0
  %2192 = vmatpush1.msra.mxu0 0.0
  %2193 = vmatprep.subr.mxu0 0.0
  %2194 = vmatpush1.msra.mxu0 0.0
  %2195 = vmatprep.subr.mxu0 0.0
  %2196 = vmatpush1.msra.mxu0 0.0
  %2197 = vmatprep.mubr.f32.mxu0 0.0
  %2198 = vmatmul.mubr.f32.gmra.mrb[0].mxu0 %v2128
  %v2199 = vpop.f32.mrb[0].mxu0
  %v2200 = vadd.f32 0.0, %v2199
  %v2201 = vpop.f32.mrb[0].mxu0
  %2202 = vmatprep.mubr.f32.mxu0 0.0
  %2203 = vmatmul.mubr.f32.gmra.mrb[0].mxu0 %v2131
  %v2204 = vpop.f32.mrb[0].mxu0
  %v2205 = vadd.f32 0.0, %v2204
  %v2206 = vpop.f32.mrb[0].mxu0
  %2207 = vdwg.mxu0
  %v2209 = vsel %vm200, %v715, 0
  %v2212 = vsel %vm200, %v720, 0
  %2214 = vmatprep.subr.mxu0 0.0
  %2215 = vmatpush1.msra.mxu0 %v1777
  %2216 = vmatprep.subr.mxu0 0.0
  %2217 = vmatpush1.msra.mxu0 %v1778
  %2218 = vmatprep.subr.mxu0 0.0
  %2219 = vmatpush1.msra.mxu0 0.0
  %2220 = vmatprep.subr.mxu0 0.0
  %2221 = vmatpush1.msra.mxu0 0.0
  %2222 = vmatprep.subr.mxu0 0.0
  %2223 = vmatpush1.msra.mxu0 0.0
  %2224 = vmatprep.subr.mxu0 0.0
  %2225 = vmatpush1.msra.mxu0 0.0
  %2226 = vmatprep.subr.mxu0 0.0
  %2227 = vmatpush1.msra.mxu0 0.0
  %2228 = vmatprep.subr.mxu0 0.0
  %2229 = vmatpush1.msra.mxu0 0.0
  %2230 = vmatprep.subr.mxu0 0.0
  %2231 = vmatpush1.msra.mxu0 0.0
  %2232 = vmatprep.subr.mxu0 0.0
  %2233 = vmatpush1.msra.mxu0 0.0
  %2234 = vmatprep.subr.mxu0 0.0
  %2235 = vmatpush1.msra.mxu0 0.0
  %2236 = vmatprep.subr.mxu0 0.0
  %2237 = vmatpush1.msra.mxu0 0.0
  %2238 = vmatprep.subr.mxu0 0.0
  %2239 = vmatpush1.msra.mxu0 0.0
  %2240 = vmatprep.subr.mxu0 0.0
  %2241 = vmatpush1.msra.mxu0 0.0
  %2242 = vmatprep.subr.mxu0 0.0
  %2243 = vmatpush1.msra.mxu0 0.0
  %2244 = vmatprep.subr.mxu0 0.0
  %2245 = vmatpush1.msra.mxu0 0.0
  %2246 = vmatprep.subr.mxu0 0.0
  %2247 = vmatpush1.msra.mxu0 0.0
  %2248 = vmatprep.subr.mxu0 0.0
  %2249 = vmatpush1.msra.mxu0 0.0
  %2250 = vmatprep.subr.mxu0 0.0
  %2251 = vmatpush1.msra.mxu0 0.0
  %2252 = vmatprep.subr.mxu0 0.0
  %2253 = vmatpush1.msra.mxu0 0.0
  %2254 = vmatprep.subr.mxu0 0.0
  %2255 = vmatpush1.msra.mxu0 0.0
  %2256 = vmatprep.subr.mxu0 0.0
  %2257 = vmatpush1.msra.mxu0 0.0
  %2258 = vmatprep.subr.mxu0 0.0
  %2259 = vmatpush1.msra.mxu0 0.0
  %2260 = vmatprep.subr.mxu0 0.0
  %2261 = vmatpush1.msra.mxu0 0.0
  %2262 = vmatprep.subr.mxu0 0.0
  %2263 = vmatpush1.msra.mxu0 0.0
  %2264 = vmatprep.subr.mxu0 0.0
  %2265 = vmatpush1.msra.mxu0 0.0
  %2266 = vmatprep.subr.mxu0 0.0
  %2267 = vmatpush1.msra.mxu0 0.0
  %2268 = vmatprep.subr.mxu0 0.0
  %2269 = vmatpush1.msra.mxu0 0.0
  %2270 = vmatprep.subr.mxu0 0.0
  %2271 = vmatpush1.msra.mxu0 0.0
  %2272 = vmatprep.subr.mxu0 0.0
  %2273 = vmatpush1.msra.mxu0 0.0
  %2274 = vmatprep.subr.mxu0 0.0
  %2275 = vmatpush1.msra.mxu0 0.0
  %2276 = vmatprep.subr.mxu0 0.0
  %2277 = vmatpush1.msra.mxu0 0.0
  %2278 = vmatprep.mubr.f32.mxu0 0.0
  %2279 = vmatmul.mubr.f32.gmra.mrb[0].mxu0 %v2209
  %v2280 = vpop.f32.mrb[0].mxu0
  %v2281 = vadd.f32 0.0, %v2280
  %v2282 = vpop.f32.mrb[0].mxu0
  %2283 = vmatprep.mubr.f32.mxu0 0.0
  %2284 = vmatmul.mubr.f32.gmra.mrb[0].mxu0 %v2212
  %v2285 = vpop.f32.mrb[0].mxu0
  %v2286 = vadd.f32 0.0, %v2285
  %v2287 = vpop.f32.mrb[0].mxu0
  %2288 = vdwg.mxu0
  %v2290 = vsel %vm200, %v802, 0
  %v2293 = vsel %vm200, %v807, 0
  %2295 = vmatprep.subr.mxu0 0.0
  %2296 = vmatpush1.msra.mxu0 %v1779
  %2297 = vmatprep.subr.mxu0 0.0
  %2298 = vmatpush1.msra.mxu0 %v1780
  %2299 = vmatprep.subr.mxu0 0.0
  %2300 = vmatpush1.msra.mxu0 0.0
  %2301 = vmatprep.subr.mxu0 0.0
  %2302 = vmatpush1.msra.mxu0 0.0
  %2303 = vmatprep.subr.mxu0 0.0
  %2304 = vmatpush1.msra.mxu0 0.0
  %2305 = vmatprep.subr.mxu0 0.0
  %2306 = vmatpush1.msra.mxu0 0.0
  %2307 = vmatprep.subr.mxu0 0.0
  %2308 = vmatpush1.msra.mxu0 0.0
  %2309 = vmatprep.subr.mxu0 0.0
  %2310 = vmatpush1.msra.mxu0 0.0
  %2311 = vmatprep.subr.mxu0 0.0
  %2312 = vmatpush1.msra.mxu0 0.0
  %2313 = vmatprep.subr.mxu0 0.0
  %2314 = vmatpush1.msra.mxu0 0.0
  %2315 = vmatprep.subr.mxu0 0.0
  %2316 = vmatpush1.msra.mxu0 0.0
  %2317 = vmatprep.subr.mxu0 0.0
  %2318 = vmatpush1.msra.mxu0 0.0
  %2319 = vmatprep.subr.mxu0 0.0
  %2320 = vmatpush1.msra.mxu0 0.0
  %2321 = vmatprep.subr.mxu0 0.0
  %2322 = vmatpush1.msra.mxu0 0.0
  %2323 = vmatprep.subr.mxu0 0.0
  %2324 = vmatpush1.msra.mxu0 0.0
  %2325 = vmatprep.subr.mxu0 0.0
  %2326 = vmatpush1.msra.mxu0 0.0
  %2327 = vmatprep.subr.mxu0 0.0
  %2328 = vmatpush1.msra.mxu0 0.0
  %2329 = vmatprep.subr.mxu0 0.0
  %2330 = vmatpush1.msra.mxu0 0.0
  %2331 = vmatprep.subr.mxu0 0.0
  %2332 = vmatpush1.msra.mxu0 0.0
  %2333 = vmatprep.subr.mxu0 0.0
  %2334 = vmatpush1.msra.mxu0 0.0
  %2335 = vmatprep.subr.mxu0 0.0
  %2336 = vmatpush1.msra.mxu0 0.0
  %2337 = vmatprep.subr.mxu0 0.0
  %2338 = vmatpush1.msra.mxu0 0.0
  %2339 = vmatprep.subr.mxu0 0.0
  %2340 = vmatpush1.msra.mxu0 0.0
  %2341 = vmatprep.subr.mxu0 0.0
  %2342 = vmatpush1.msra.mxu0 0.0
  %2343 = vmatprep.subr.mxu0 0.0
  %2344 = vmatpush1.msra.mxu0 0.0
  %2345 = vmatprep.subr.mxu0 0.0
  %2346 = vmatpush1.msra.mxu0 0.0
  %2347 = vmatprep.subr.mxu0 0.0
  %2348 = vmatpush1.msra.mxu0 0.0
  %2349 = vmatprep.subr.mxu0 0.0
  %2350 = vmatpush1.msra.mxu0 0.0
  %2351 = vmatprep.subr.mxu0 0.0
  %2352 = vmatpush1.msra.mxu0 0.0
  %2353 = vmatprep.subr.mxu0 0.0
  %2354 = vmatpush1.msra.mxu0 0.0
  %2355 = vmatprep.subr.mxu0 0.0
  %2356 = vmatpush1.msra.mxu0 0.0
  %2357 = vmatprep.subr.mxu0 0.0
  %2358 = vmatpush1.msra.mxu0 0.0
  %2359 = vmatprep.mubr.f32.mxu0 0.0
  %2360 = vmatmul.mubr.f32.gmra.mrb[0].mxu0 %v2290
  %v2361 = vpop.f32.mrb[0].mxu0
  %v2362 = vadd.f32 0.0, %v2361
  %v2363 = vpop.f32.mrb[0].mxu0
  %2364 = vmatprep.mubr.f32.mxu0 0.0
  %2365 = vmatmul.mubr.f32.gmra.mrb[0].mxu0 %v2293
  %v2366 = vpop.f32.mrb[0].mxu0
  %v2367 = vadd.f32 0.0, %v2366
  %v2368 = vpop.f32.mrb[0].mxu0
  %2369 = vdwg.mxu0
  %v2371 = vsel %vm200, %v889, 0
  %v2374 = vsel %vm200, %v894, 0
  %2376 = vmatprep.subr.mxu0 0.0
  %2377 = vmatpush1.msra.mxu0 %v1781
  %2378 = vmatprep.subr.mxu0 0.0
  %2379 = vmatpush1.msra.mxu0 %v1782
  %2380 = vmatprep.subr.mxu0 0.0
  %2381 = vmatpush1.msra.mxu0 0.0
  %2382 = vmatprep.subr.mxu0 0.0
  %2383 = vmatpush1.msra.mxu0 0.0
  %2384 = vmatprep.subr.mxu0 0.0
  %2385 = vmatpush1.msra.mxu0 0.0
  %2386 = vmatprep.subr.mxu0 0.0
  %2387 = vmatpush1.msra.mxu0 0.0
  %2388 = vmatprep.subr.mxu0 0.0
  %2389 = vmatpush1.msra.mxu0 0.0
  %2390 = vmatprep.subr.mxu0 0.0
  %2391 = vmatpush1.msra.mxu0 0.0
  %2392 = vmatprep.subr.mxu0 0.0
  %2393 = vmatpush1.msra.mxu0 0.0
  %2394 = vmatprep.subr.mxu0 0.0
  %2395 = vmatpush1.msra.mxu0 0.0
  %2396 = vmatprep.subr.mxu0 0.0
  %2397 = vmatpush1.msra.mxu0 0.0
  %2398 = vmatprep.subr.mxu0 0.0
  %2399 = vmatpush1.msra.mxu0 0.0
  %2400 = vmatprep.subr.mxu0 0.0
  %2401 = vmatpush1.msra.mxu0 0.0
  %2402 = vmatprep.subr.mxu0 0.0
  %2403 = vmatpush1.msra.mxu0 0.0
  %2404 = vmatprep.subr.mxu0 0.0
  %2405 = vmatpush1.msra.mxu0 0.0
  %2406 = vmatprep.subr.mxu0 0.0
  %2407 = vmatpush1.msra.mxu0 0.0
  %2408 = vmatprep.subr.mxu0 0.0
  %2409 = vmatpush1.msra.mxu0 0.0
  %2410 = vmatprep.subr.mxu0 0.0
  %2411 = vmatpush1.msra.mxu0 0.0
  %2412 = vmatprep.subr.mxu0 0.0
  %2413 = vmatpush1.msra.mxu0 0.0
  %2414 = vmatprep.subr.mxu0 0.0
  %2415 = vmatpush1.msra.mxu0 0.0
  %2416 = vmatprep.subr.mxu0 0.0
  %2417 = vmatpush1.msra.mxu0 0.0
  %2418 = vmatprep.subr.mxu0 0.0
  %2419 = vmatpush1.msra.mxu0 0.0
  %2420 = vmatprep.subr.mxu0 0.0
  %2421 = vmatpush1.msra.mxu0 0.0
  %2422 = vmatprep.subr.mxu0 0.0
  %2423 = vmatpush1.msra.mxu0 0.0
  %2424 = vmatprep.subr.mxu0 0.0
  %2425 = vmatpush1.msra.mxu0 0.0
  %2426 = vmatprep.subr.mxu0 0.0
  %2427 = vmatpush1.msra.mxu0 0.0
  %2428 = vmatprep.subr.mxu0 0.0
  %2429 = vmatpush1.msra.mxu0 0.0
  %2430 = vmatprep.subr.mxu0 0.0
  %2431 = vmatpush1.msra.mxu0 0.0
  %2432 = vmatprep.subr.mxu0 0.0
  %2433 = vmatpush1.msra.mxu0 0.0
  %2434 = vmatprep.subr.mxu0 0.0
  %2435 = vmatpush1.msra.mxu0 0.0
  %2436 = vmatprep.subr.mxu0 0.0
  %2437 = vmatpush1.msra.mxu0 0.0
  %2438 = vmatprep.subr.mxu0 0.0
  %2439 = vmatpush1.msra.mxu0 0.0
  %2440 = vmatprep.mubr.f32.mxu0 0.0
  %2441 = vmatmul.mubr.f32.gmra.mrb[0].mxu0 %v2371
  %v2442 = vpop.f32.mrb[0].mxu0
  %v2443 = vadd.f32 0.0, %v2442
  %v2444 = vpop.f32.mrb[0].mxu0
  %2445 = vmatprep.mubr.f32.mxu0 0.0
  %2446 = vmatmul.mubr.f32.gmra.mrb[0].mxu0 %v2374
  %v2447 = vpop.f32.mrb[0].mxu0
  %v2448 = vadd.f32 0.0, %v2447
  %v2449 = vpop.f32.mrb[0].mxu0
  %2450 = vdwg.mxu0
  %v2452 = vsel %vm200, %v976, 0
  %v2455 = vsel %vm200, %v981, 0
  %2457 = vmatprep.subr.mxu0 0.0
  %2458 = vmatpush1.msra.mxu0 %v1783
  %2459 = vmatprep.subr.mxu0 0.0
  %2460 = vmatpush1.msra.mxu0 %v1784
  %2461 = vmatprep.subr.mxu0 0.0
  %2462 = vmatpush1.msra.mxu0 0.0
  %2463 = vmatprep.subr.mxu0 0.0
  %2464 = vmatpush1.msra.mxu0 0.0
  %2465 = vmatprep.subr.mxu0 0.0
  %2466 = vmatpush1.msra.mxu0 0.0
  %2467 = vmatprep.subr.mxu0 0.0
  %2468 = vmatpush1.msra.mxu0 0.0
  %2469 = vmatprep.subr.mxu0 0.0
  %2470 = vmatpush1.msra.mxu0 0.0
  %2471 = vmatprep.subr.mxu0 0.0
  %2472 = vmatpush1.msra.mxu0 0.0
  %2473 = vmatprep.subr.mxu0 0.0
  %2474 = vmatpush1.msra.mxu0 0.0
  %2475 = vmatprep.subr.mxu0 0.0
  %2476 = vmatpush1.msra.mxu0 0.0
  %2477 = vmatprep.subr.mxu0 0.0
  %2478 = vmatpush1.msra.mxu0 0.0
  %2479 = vmatprep.subr.mxu0 0.0
  %2480 = vmatpush1.msra.mxu0 0.0
  %2481 = vmatprep.subr.mxu0 0.0
  %2482 = vmatpush1.msra.mxu0 0.0
  %2483 = vmatprep.subr.mxu0 0.0
  %2484 = vmatpush1.msra.mxu0 0.0
  %2485 = vmatprep.subr.mxu0 0.0
  %2486 = vmatpush1.msra.mxu0 0.0
  %2487 = vmatprep.subr.mxu0 0.0
  %2488 = vmatpush1.msra.mxu0 0.0
  %2489 = vmatprep.subr.mxu0 0.0
  %2490 = vmatpush1.msra.mxu0 0.0
  %2491 = vmatprep.subr.mxu0 0.0
  %2492 = vmatpush1.msra.mxu0 0.0
  %2493 = vmatprep.subr.mxu0 0.0
  %2494 = vmatpush1.msra.mxu0 0.0
  %2495 = vmatprep.subr.mxu0 0.0
  %2496 = vmatpush1.msra.mxu0 0.0
  %2497 = vmatprep.subr.mxu0 0.0
  %2498 = vmatpush1.msra.mxu0 0.0
  %2499 = vmatprep.subr.mxu0 0.0
  %2500 = vmatpush1.msra.mxu0 0.0
  %2501 = vmatprep.subr.mxu0 0.0
  %2502 = vmatpush1.msra.mxu0 0.0
  %2503 = vmatprep.subr.mxu0 0.0
  %2504 = vmatpush1.msra.mxu0 0.0
  %2505 = vmatprep.subr.mxu0 0.0
  %2506 = vmatpush1.msra.mxu0 0.0
  %2507 = vmatprep.subr.mxu0 0.0
  %2508 = vmatpush1.msra.mxu0 0.0
  %2509 = vmatprep.subr.mxu0 0.0
  %2510 = vmatpush1.msra.mxu0 0.0
  %2511 = vmatprep.subr.mxu0 0.0
  %2512 = vmatpush1.msra.mxu0 0.0
  %2513 = vmatprep.subr.mxu0 0.0
  %2514 = vmatpush1.msra.mxu0 0.0
  %2515 = vmatprep.subr.mxu0 0.0
  %2516 = vmatpush1.msra.mxu0 0.0
  %2517 = vmatprep.subr.mxu0 0.0
  %2518 = vmatpush1.msra.mxu0 0.0
  %2519 = vmatprep.subr.mxu0 0.0
  %2520 = vmatpush1.msra.mxu0 0.0
  %2521 = vmatprep.mubr.f32.mxu0 0.0
  %2522 = vmatmul.mubr.f32.gmra.mrb[0].mxu0 %v2452
  %v2523 = vpop.f32.mrb[0].mxu0
  %v2524 = vadd.f32 0.0, %v2523
  %v2525 = vpop.f32.mrb[0].mxu0
  %2526 = vmatprep.mubr.f32.mxu0 0.0
  %2527 = vmatmul.mubr.f32.gmra.mrb[0].mxu0 %v2455
  %v2528 = vpop.f32.mrb[0].mxu0
  %v2529 = vadd.f32 0.0, %v2528
  %v2530 = vpop.f32.mrb[0].mxu0
  %2531 = vdwg.mxu0
  %v2533 = vsel %vm200, %v1063, 0
  %v2536 = vsel %vm200, %v1068, 0
  %2538 = vmatprep.subr.mxu0 0.0
  %2539 = vmatpush1.msra.mxu0 %v1785
  %2540 = vmatprep.subr.mxu0 0.0
  %2541 = vmatpush1.msra.mxu0 %v1786
  %2542 = vmatprep.subr.mxu0 0.0
  %2543 = vmatpush1.msra.mxu0 0.0
  %2544 = vmatprep.subr.mxu0 0.0
  %2545 = vmatpush1.msra.mxu0 0.0
  %2546 = vmatprep.subr.mxu0 0.0
  %2547 = vmatpush1.msra.mxu0 0.0
  %2548 = vmatprep.subr.mxu0 0.0
  %2549 = vmatpush1.msra.mxu0 0.0
  %2550 = vmatprep.subr.mxu0 0.0
  %2551 = vmatpush1.msra.mxu0 0.0
  %2552 = vmatprep.subr.mxu0 0.0
  %2553 = vmatpush1.msra.mxu0 0.0
  %2554 = vmatprep.subr.mxu0 0.0
  %2555 = vmatpush1.msra.mxu0 0.0
  %2556 = vmatprep.subr.mxu0 0.0
  %2557 = vmatpush1.msra.mxu0 0.0
  %2558 = vmatprep.subr.mxu0 0.0
  %2559 = vmatpush1.msra.mxu0 0.0
  %2560 = vmatprep.subr.mxu0 0.0
  %2561 = vmatpush1.msra.mxu0 0.0
  %2562 = vmatprep.subr.mxu0 0.0
  %2563 = vmatpush1.msra.mxu0 0.0
  %2564 = vmatprep.subr.mxu0 0.0
  %2565 = vmatpush1.msra.mxu0 0.0
  %2566 = vmatprep.subr.mxu0 0.0
  %2567 = vmatpush1.msra.mxu0 0.0
  %2568 = vmatprep.subr.mxu0 0.0
  %2569 = vmatpush1.msra.mxu0 0.0
  %2570 = vmatprep.subr.mxu0 0.0
  %2571 = vmatpush1.msra.mxu0 0.0
  %2572 = vmatprep.subr.mxu0 0.0
  %2573 = vmatpush1.msra.mxu0 0.0
  %2574 = vmatprep.subr.mxu0 0.0
  %2575 = vmatpush1.msra.mxu0 0.0
  %2576 = vmatprep.subr.mxu0 0.0
  %2577 = vmatpush1.msra.mxu0 0.0
  %2578 = vmatprep.subr.mxu0 0.0
  %2579 = vmatpush1.msra.mxu0 0.0
  %2580 = vmatprep.subr.mxu0 0.0
  %2581 = vmatpush1.msra.mxu0 0.0
  %2582 = vmatprep.subr.mxu0 0.0
  %2583 = vmatpush1.msra.mxu0 0.0
  %2584 = vmatprep.subr.mxu0 0.0
  %2585 = vmatpush1.msra.mxu0 0.0
  %2586 = vmatprep.subr.mxu0 0.0
  %2587 = vmatpush1.msra.mxu0 0.0
  %2588 = vmatprep.subr.mxu0 0.0
  %2589 = vmatpush1.msra.mxu0 0.0
  %2590 = vmatprep.subr.mxu0 0.0
  %2591 = vmatpush1.msra.mxu0 0.0
  %2592 = vmatprep.subr.mxu0 0.0
  %2593 = vmatpush1.msra.mxu0 0.0
  %2594 = vmatprep.subr.mxu0 0.0
  %2595 = vmatpush1.msra.mxu0 0.0
  %2596 = vmatprep.subr.mxu0 0.0
  %2597 = vmatpush1.msra.mxu0 0.0
  %2598 = vmatprep.subr.mxu0 0.0
  %2599 = vmatpush1.msra.mxu0 0.0
  %2600 = vmatprep.subr.mxu0 0.0
  %2601 = vmatpush1.msra.mxu0 0.0
  %2602 = vmatprep.mubr.f32.mxu0 0.0
  %2603 = vmatmul.mubr.f32.gmra.mrb[0].mxu0 %v2533
  %v2604 = vpop.f32.mrb[0].mxu0
  %v2605 = vadd.f32 0.0, %v2604
  %v2606 = vpop.f32.mrb[0].mxu0
  %2607 = vmatprep.mubr.f32.mxu0 0.0
  %2608 = vmatmul.mubr.f32.gmra.mrb[0].mxu0 %v2536
  %v2609 = vpop.f32.mrb[0].mxu0
  %v2610 = vadd.f32 0.0, %v2609
  %v2611 = vpop.f32.mrb[0].mxu0
  %2612 = vdwg.mxu0
  %v2614 = vsel %vm200, %v1150, 0
  %v2617 = vsel %vm200, %v1155, 0
  %2619 = vmatprep.subr.mxu0 0.0
  %2620 = vmatpush1.msra.mxu0 %v1787
  %2621 = vmatprep.subr.mxu0 0.0
  %2622 = vmatpush1.msra.mxu0 %v1788
  %2623 = vmatprep.subr.mxu0 0.0
  %2624 = vmatpush1.msra.mxu0 0.0
  %2625 = vmatprep.subr.mxu0 0.0
  %2626 = vmatpush1.msra.mxu0 0.0
  %2627 = vmatprep.subr.mxu0 0.0
  %2628 = vmatpush1.msra.mxu0 0.0
  %2629 = vmatprep.subr.mxu0 0.0
  %2630 = vmatpush1.msra.mxu0 0.0
  %2631 = vmatprep.subr.mxu0 0.0
  %2632 = vmatpush1.msra.mxu0 0.0
  %2633 = vmatprep.subr.mxu0 0.0
  %2634 = vmatpush1.msra.mxu0 0.0
  %2635 = vmatprep.subr.mxu0 0.0
  %2636 = vmatpush1.msra.mxu0 0.0
  %2637 = vmatprep.subr.mxu0 0.0
  %2638 = vmatpush1.msra.mxu0 0.0
  %2639 = vmatprep.subr.mxu0 0.0
  %2640 = vmatpush1.msra.mxu0 0.0
  %2641 = vmatprep.subr.mxu0 0.0
  %2642 = vmatpush1.msra.mxu0 0.0
  %2643 = vmatprep.subr.mxu0 0.0
  %2644 = vmatpush1.msra.mxu0 0.0
  %2645 = vmatprep.subr.mxu0 0.0
  %2646 = vmatpush1.msra.mxu0 0.0
  %2647 = vmatprep.subr.mxu0 0.0
  %2648 = vmatpush1.msra.mxu0 0.0
  %2649 = vmatprep.subr.mxu0 0.0
  %2650 = vmatpush1.msra.mxu0 0.0
  %2651 = vmatprep.subr.mxu0 0.0
  %2652 = vmatpush1.msra.mxu0 0.0
  %2653 = vmatprep.subr.mxu0 0.0
  %2654 = vmatpush1.msra.mxu0 0.0
  %2655 = vmatprep.subr.mxu0 0.0
  %2656 = vmatpush1.msra.mxu0 0.0
  %2657 = vmatprep.subr.mxu0 0.0
  %2658 = vmatpush1.msra.mxu0 0.0
  %2659 = vmatprep.subr.mxu0 0.0
  %2660 = vmatpush1.msra.mxu0 0.0
  %2661 = vmatprep.subr.mxu0 0.0
  %2662 = vmatpush1.msra.mxu0 0.0
  %2663 = vmatprep.subr.mxu0 0.0
  %2664 = vmatpush1.msra.mxu0 0.0
  %2665 = vmatprep.subr.mxu0 0.0
  %2666 = vmatpush1.msra.mxu0 0.0
  %2667 = vmatprep.subr.mxu0 0.0
  %2668 = vmatpush1.msra.mxu0 0.0
  %2669 = vmatprep.subr.mxu0 0.0
  %2670 = vmatpush1.msra.mxu0 0.0
  %2671 = vmatprep.subr.mxu0 0.0
  %2672 = vmatpush1.msra.mxu0 0.0
  %2673 = vmatprep.subr.mxu0 0.0
  %2674 = vmatpush1.msra.mxu0 0.0
  %2675 = vmatprep.subr.mxu0 0.0
  %2676 = vmatpush1.msra.mxu0 0.0
  %2677 = vmatprep.subr.mxu0 0.0
  %2678 = vmatpush1.msra.mxu0 0.0
  %2679 = vmatprep.subr.mxu0 0.0
  %2680 = vmatpush1.msra.mxu0 0.0
  %2681 = vmatprep.subr.mxu0 0.0
  %2682 = vmatpush1.msra.mxu0 0.0
  %2683 = vmatprep.mubr.f32.mxu0 0.0
  %2684 = vmatmul.mubr.f32.gmra.mrb[0].mxu0 %v2614
  %v2685 = vpop.f32.mrb[0].mxu0
  %v2686 = vadd.f32 0.0, %v2685
  %v2687 = vpop.f32.mrb[0].mxu0
  %2688 = vmatprep.mubr.f32.mxu0 0.0
  %2689 = vmatmul.mubr.f32.gmra.mrb[0].mxu0 %v2617
  %v2690 = vpop.f32.mrb[0].mxu0
  %v2691 = vadd.f32 0.0, %v2690
  %v2692 = vpop.f32.mrb[0].mxu0
  %2693 = vdwg.mxu0
  %v2695 = vsel %vm200, %v1237, 0
  %v2698 = vsel %vm200, %v1242, 0
  %2700 = vmatprep.subr.mxu0 0.0
  %2701 = vmatpush1.msra.mxu0 %v1789
  %2702 = vmatprep.subr.mxu0 0.0
  %2703 = vmatpush1.msra.mxu0 %v1790
  %2704 = vmatprep.subr.mxu0 0.0
  %2705 = vmatpush1.msra.mxu0 0.0
  %2706 = vmatprep.subr.mxu0 0.0
  %2707 = vmatpush1.msra.mxu0 0.0
  %2708 = vmatprep.subr.mxu0 0.0
  %2709 = vmatpush1.msra.mxu0 0.0
  %2710 = vmatprep.subr.mxu0 0.0
  %2711 = vmatpush1.msra.mxu0 0.0
  %2712 = vmatprep.subr.mxu0 0.0
  %2713 = vmatpush1.msra.mxu0 0.0
  %2714 = vmatprep.subr.mxu0 0.0
  %2715 = vmatpush1.msra.mxu0 0.0
  %2716 = vmatprep.subr.mxu0 0.0
  %2717 = vmatpush1.msra.mxu0 0.0
  %2718 = vmatprep.subr.mxu0 0.0
  %2719 = vmatpush1.msra.mxu0 0.0
  %2720 = vmatprep.subr.mxu0 0.0
  %2721 = vmatpush1.msra.mxu0 0.0
  %2722 = vmatprep.subr.mxu0 0.0
  %2723 = vmatpush1.msra.mxu0 0.0
  %2724 = vmatprep.subr.mxu0 0.0
  %2725 = vmatpush1.msra.mxu0 0.0
  %2726 = vmatprep.subr.mxu0 0.0
  %2727 = vmatpush1.msra.mxu0 0.0
  %2728 = vmatprep.subr.mxu0 0.0
  %2729 = vmatpush1.msra.mxu0 0.0
  %2730 = vmatprep.subr.mxu0 0.0
  %2731 = vmatpush1.msra.mxu0 0.0
  %2732 = vmatprep.subr.mxu0 0.0
  %2733 = vmatpush1.msra.mxu0 0.0
  %2734 = vmatprep.subr.mxu0 0.0
  %2735 = vmatpush1.msra.mxu0 0.0
  %2736 = vmatprep.subr.mxu0 0.0
  %2737 = vmatpush1.msra.mxu0 0.0
  %2738 = vmatprep.subr.mxu0 0.0
  %2739 = vmatpush1.msra.mxu0 0.0
  %2740 = vmatprep.subr.mxu0 0.0
  %2741 = vmatpush1.msra.mxu0 0.0
  %2742 = vmatprep.subr.mxu0 0.0
  %2743 = vmatpush1.msra.mxu0 0.0
  %2744 = vmatprep.subr.mxu0 0.0
  %2745 = vmatpush1.msra.mxu0 0.0
  %2746 = vmatprep.subr.mxu0 0.0
  %2747 = vmatpush1.msra.mxu0 0.0
  %2748 = vmatprep.subr.mxu0 0.0
  %2749 = vmatpush1.msra.mxu0 0.0
  %2750 = vmatprep.subr.mxu0 0.0
  %2751 = vmatpush1.msra.mxu0 0.0
  %2752 = vmatprep.subr.mxu0 0.0
  %2753 = vmatpush1.msra.mxu0 0.0
  %2754 = vmatprep.subr.mxu0 0.0
  %2755 = vmatpush1.msra.mxu0 0.0
  %2756 = vmatprep.subr.mxu0 0.0
  %2757 = vmatpush1.msra.mxu0 0.0
  %2758 = vmatprep.subr.mxu0 0.0
  %2759 = vmatpush1.msra.mxu0 0.0
  %2760 = vmatprep.subr.mxu0 0.0
  %2761 = vmatpush1.msra.mxu0 0.0
  %2762 = vmatprep.subr.mxu0 0.0
  %2763 = vmatpush1.msra.mxu0 0.0
  %2764 = vmatprep.mubr.f32.mxu0 0.0
  %2765 = vmatmul.mubr.f32.gmra.mrb[0].mxu0 %v2695
  %v2766 = vpop.f32.mrb[0].mxu0
  %v2767 = vadd.f32 0.0, %v2766
  %v2768 = vpop.f32.mrb[0].mxu0
  %2769 = vmatprep.mubr.f32.mxu0 0.0
  %2770 = vmatmul.mubr.f32.gmra.mrb[0].mxu0 %v2698
  %v2771 = vpop.f32.mrb[0].mxu0
  %v2772 = vadd.f32 0.0, %v2771
  %v2773 = vpop.f32.mrb[0].mxu0
  %2774 = vdwg.mxu0
  %v2776 = vsel %vm200, %v1324, 0
  %v2779 = vsel %vm200, %v1329, 0
  %2781 = vmatprep.subr.mxu0 0.0
  %2782 = vmatpush1.msra.mxu0 %v1791
  %2783 = vmatprep.subr.mxu0 0.0
  %2784 = vmatpush1.msra.mxu0 %v1792
  %2785 = vmatprep.subr.mxu0 0.0
  %2786 = vmatpush1.msra.mxu0 0.0
  %2787 = vmatprep.subr.mxu0 0.0
  %2788 = vmatpush1.msra.mxu0 0.0
  %2789 = vmatprep.subr.mxu0 0.0
  %2790 = vmatpush1.msra.mxu0 0.0
  %2791 = vmatprep.subr.mxu0 0.0
  %2792 = vmatpush1.msra.mxu0 0.0
  %2793 = vmatprep.subr.mxu0 0.0
  %2794 = vmatpush1.msra.mxu0 0.0
  %2795 = vmatprep.subr.mxu0 0.0
  %2796 = vmatpush1.msra.mxu0 0.0
  %2797 = vmatprep.subr.mxu0 0.0
  %2798 = vmatpush1.msra.mxu0 0.0
  %2799 = vmatprep.subr.mxu0 0.0
  %2800 = vmatpush1.msra.mxu0 0.0
  %2801 = vmatprep.subr.mxu0 0.0
  %2802 = vmatpush1.msra.mxu0 0.0
  %2803 = vmatprep.subr.mxu0 0.0
  %2804 = vmatpush1.msra.mxu0 0.0
  %2805 = vmatprep.subr.mxu0 0.0
  %2806 = vmatpush1.msra.mxu0 0.0
  %2807 = vmatprep.subr.mxu0 0.0
  %2808 = vmatpush1.msra.mxu0 0.0
  %2809 = vmatprep.subr.mxu0 0.0
  %2810 = vmatpush1.msra.mxu0 0.0
  %2811 = vmatprep.subr.mxu0 0.0
  %2812 = vmatpush1.msra.mxu0 0.0
  %2813 = vmatprep.subr.mxu0 0.0
  %2814 = vmatpush1.msra.mxu0 0.0
  %2815 = vmatprep.subr.mxu0 0.0
  %2816 = vmatpush1.msra.mxu0 0.0
  %2817 = vmatprep.subr.mxu0 0.0
  %2818 = vmatpush1.msra.mxu0 0.0
  %2819 = vmatprep.subr.mxu0 0.0
  %2820 = vmatpush1.msra.mxu0 0.0
  %2821 = vmatprep.subr.mxu0 0.0
  %2822 = vmatpush1.msra.mxu0 0.0
  %2823 = vmatprep.subr.mxu0 0.0
  %2824 = vmatpush1.msra.mxu0 0.0
  %2825 = vmatprep.subr.mxu0 0.0
  %2826 = vmatpush1.msra.mxu0 0.0
  %2827 = vmatprep.subr.mxu0 0.0
  %2828 = vmatpush1.msra.mxu0 0.0
  %2829 = vmatprep.subr.mxu0 0.0
  %2830 = vmatpush1.msra.mxu0 0.0
  %2831 = vmatprep.subr.mxu0 0.0
  %2832 = vmatpush1.msra.mxu0 0.0
  %2833 = vmatprep.subr.mxu0 0.0
  %2834 = vmatpush1.msra.mxu0 0.0
  %2835 = vmatprep.subr.mxu0 0.0
  %2836 = vmatpush1.msra.mxu0 0.0
  %2837 = vmatprep.subr.mxu0 0.0
  %2838 = vmatpush1.msra.mxu0 0.0
  %2839 = vmatprep.subr.mxu0 0.0
  %2840 = vmatpush1.msra.mxu0 0.0
  %2841 = vmatprep.subr.mxu0 0.0
  %2842 = vmatpush1.msra.mxu0 0.0
  %2843 = vmatprep.subr.mxu0 0.0
  %2844 = vmatpush1.msra.mxu0 0.0
  %2845 = vmatprep.mubr.f32.mxu0 0.0
  %2846 = vmatmul.mubr.f32.gmra.mrb[0].mxu0 %v2776
  %v2847 = vpop.f32.mrb[0].mxu0
  %v2848 = vadd.f32 0.0, %v2847
  %v2849 = vpop.f32.mrb[0].mxu0
  %2850 = vmatprep.mubr.f32.mxu0 0.0
  %2851 = vmatmul.mubr.f32.gmra.mrb[0].mxu0 %v2779
  %v2852 = vpop.f32.mrb[0].mxu0
  %v2853 = vadd.f32 0.0, %v2852
  %v2854 = vpop.f32.mrb[0].mxu0
  %2855 = vdwg.mxu0
  %v2857 = vsel %vm200, %v1411, 0
  %v2860 = vsel %vm200, %v1416, 0
  %2862 = vmatprep.subr.mxu0 0.0
  %2863 = vmatpush1.msra.mxu0 %v1793
  %2864 = vmatprep.subr.mxu0 0.0
  %2865 = vmatpush1.msra.mxu0 %v1794
  %2866 = vmatprep.subr.mxu0 0.0
  %2867 = vmatpush1.msra.mxu0 0.0
  %2868 = vmatprep.subr.mxu0 0.0
  %2869 = vmatpush1.msra.mxu0 0.0
  %2870 = vmatprep.subr.mxu0 0.0
  %2871 = vmatpush1.msra.mxu0 0.0
  %2872 = vmatprep.subr.mxu0 0.0
  %2873 = vmatpush1.msra.mxu0 0.0
  %2874 = vmatprep.subr.mxu0 0.0
  %2875 = vmatpush1.msra.mxu0 0.0
  %2876 = vmatprep.subr.mxu0 0.0
  %2877 = vmatpush1.msra.mxu0 0.0
  %2878 = vmatprep.subr.mxu0 0.0
  %2879 = vmatpush1.msra.mxu0 0.0
  %2880 = vmatprep.subr.mxu0 0.0
  %2881 = vmatpush1.msra.mxu0 0.0
  %2882 = vmatprep.subr.mxu0 0.0
  %2883 = vmatpush1.msra.mxu0 0.0
  %2884 = vmatprep.subr.mxu0 0.0
  %2885 = vmatpush1.msra.mxu0 0.0
  %2886 = vmatprep.subr.mxu0 0.0
  %2887 = vmatpush1.msra.mxu0 0.0
  %2888 = vmatprep.subr.mxu0 0.0
  %2889 = vmatpush1.msra.mxu0 0.0
  %2890 = vmatprep.subr.mxu0 0.0
  %2891 = vmatpush1.msra.mxu0 0.0
  %2892 = vmatprep.subr.mxu0 0.0
  %2893 = vmatpush1.msra.mxu0 0.0
  %2894 = vmatprep.subr.mxu0 0.0
  %2895 = vmatpush1.msra.mxu0 0.0
  %2896 = vmatprep.subr.mxu0 0.0
  %2897 = vmatpush1.msra.mxu0 0.0
  %2898 = vmatprep.subr.mxu0 0.0
  %2899 = vmatpush1.msra.mxu0 0.0
  %2900 = vmatprep.subr.mxu0 0.0
  %2901 = vmatpush1.msra.mxu0 0.0
  %2902 = vmatprep.subr.mxu0 0.0
  %2903 = vmatpush1.msra.mxu0 0.0
  %2904 = vmatprep.subr.mxu0 0.0
  %2905 = vmatpush1.msra.mxu0 0.0
  %2906 = vmatprep.subr.mxu0 0.0
  %2907 = vmatpush1.msra.mxu0 0.0
  %2908 = vmatprep.subr.mxu0 0.0
  %2909 = vmatpush1.msra.mxu0 0.0
  %2910 = vmatprep.subr.mxu0 0.0
  %2911 = vmatpush1.msra.mxu0 0.0
  %2912 = vmatprep.subr.mxu0 0.0
  %2913 = vmatpush1.msra.mxu0 0.0
  %2914 = vmatprep.subr.mxu0 0.0
  %2915 = vmatpush1.msra.mxu0 0.0
  %2916 = vmatprep.subr.mxu0 0.0
  %2917 = vmatpush1.msra.mxu0 0.0
  %2918 = vmatprep.subr.mxu0 0.0
  %2919 = vmatpush1.msra.mxu0 0.0
  %2920 = vmatprep.subr.mxu0 0.0
  %2921 = vmatpush1.msra.mxu0 0.0
  %2922 = vmatprep.subr.mxu0 0.0
  %2923 = vmatpush1.msra.mxu0 0.0
  %2924 = vmatprep.subr.mxu0 0.0
  %2925 = vmatpush1.msra.mxu0 0.0
  %2926 = vmatprep.mubr.f32.mxu0 0.0
  %2927 = vmatmul.mubr.f32.gmra.mrb[0].mxu0 %v2857
  %v2928 = vpop.f32.mrb[0].mxu0
  %v2929 = vadd.f32 0.0, %v2928
  %v2930 = vpop.f32.mrb[0].mxu0
  %2931 = vmatprep.mubr.f32.mxu0 0.0
  %2932 = vmatmul.mubr.f32.gmra.mrb[0].mxu0 %v2860
  %v2933 = vpop.f32.mrb[0].mxu0
  %v2934 = vadd.f32 0.0, %v2933
  %v2935 = vpop.f32.mrb[0].mxu0
  %2936 = vdwg.mxu0
  %v2938 = vsel %vm200, %v1498, 0
  %v2941 = vsel %vm200, %v1503, 0
  %2943 = vmatprep.subr.mxu0 0.0
  %2944 = vmatpush1.msra.mxu0 %v1795
  %2945 = vmatprep.subr.mxu0 0.0
  %2946 = vmatpush1.msra.mxu0 %v1796
  %2947 = vmatprep.subr.mxu0 0.0
  %2948 = vmatpush1.msra.mxu0 0.0
  %2949 = vmatprep.subr.mxu0 0.0
  %2950 = vmatpush1.msra.mxu0 0.0
  %2951 = vmatprep.subr.mxu0 0.0
  %2952 = vmatpush1.msra.mxu0 0.0
  %2953 = vmatprep.subr.mxu0 0.0
  %2954 = vmatpush1.msra.mxu0 0.0
  %2955 = vmatprep.subr.mxu0 0.0
  %2956 = vmatpush1.msra.mxu0 0.0
  %2957 = vmatprep.subr.mxu0 0.0
  %2958 = vmatpush1.msra.mxu0 0.0
  %2959 = vmatprep.subr.mxu0 0.0
  %2960 = vmatpush1.msra.mxu0 0.0
  %2961 = vmatprep.subr.mxu0 0.0
  %2962 = vmatpush1.msra.mxu0 0.0
  %2963 = vmatprep.subr.mxu0 0.0
  %2964 = vmatpush1.msra.mxu0 0.0
  %2965 = vmatprep.subr.mxu0 0.0
  %2966 = vmatpush1.msra.mxu0 0.0
  %2967 = vmatprep.subr.mxu0 0.0
  %2968 = vmatpush1.msra.mxu0 0.0
  %2969 = vmatprep.subr.mxu0 0.0
  %2970 = vmatpush1.msra.mxu0 0.0
  %2971 = vmatprep.subr.mxu0 0.0
  %2972 = vmatpush1.msra.mxu0 0.0
  %2973 = vmatprep.subr.mxu0 0.0
  %2974 = vmatpush1.msra.mxu0 0.0
  %2975 = vmatprep.subr.mxu0 0.0
  %2976 = vmatpush1.msra.mxu0 0.0
  %2977 = vmatprep.subr.mxu0 0.0
  %2978 = vmatpush1.msra.mxu0 0.0
  %2979 = vmatprep.subr.mxu0 0.0
  %2980 = vmatpush1.msra.mxu0 0.0
  %2981 = vmatprep.subr.mxu0 0.0
  %2982 = vmatpush1.msra.mxu0 0.0
  %2983 = vmatprep.subr.mxu0 0.0
  %2984 = vmatpush1.msra.mxu0 0.0
  %2985 = vmatprep.subr.mxu0 0.0
  %2986 = vmatpush1.msra.mxu0 0.0
  %2987 = vmatprep.subr.mxu0 0.0
  %2988 = vmatpush1.msra.mxu0 0.0
  %2989 = vmatprep.subr.mxu0 0.0
  %2990 = vmatpush1.msra.mxu0 0.0
  %2991 = vmatprep.subr.mxu0 0.0
  %2992 = vmatpush1.msra.mxu0 0.0
  %2993 = vmatprep.subr.mxu0 0.0
  %2994 = vmatpush1.msra.mxu0 0.0
  %2995 = vmatprep.subr.mxu0 0.0
  %2996 = vmatpush1.msra.mxu0 0.0
  %2997 = vmatprep.subr.mxu0 0.0
  %2998 = vmatpush1.msra.mxu0 0.0
  %2999 = vmatprep.subr.mxu0 0.0
  %3000 = vmatpush1.msra.mxu0 0.0
  %3001 = vmatprep.subr.mxu0 0.0
  %3002 = vmatpush1.msra.mxu0 0.0
  %3003 = vmatprep.subr.mxu0 0.0
  %3004 = vmatpush1.msra.mxu0 0.0
  %3005 = vmatprep.subr.mxu0 0.0
  %3006 = vmatpush1.msra.mxu0 0.0
  %3007 = vmatprep.mubr.f32.mxu0 0.0
  %3008 = vmatmul.mubr.f32.gmra.mrb[0].mxu0 %v2938
  %v3009 = vpop.f32.mrb[0].mxu0
  %v3010 = vadd.f32 0.0, %v3009
  %v3011 = vpop.f32.mrb[0].mxu0
  %3012 = vmatprep.mubr.f32.mxu0 0.0
  %3013 = vmatmul.mubr.f32.gmra.mrb[0].mxu0 %v2941
  %v3014 = vpop.f32.mrb[0].mxu0
  %v3015 = vadd.f32 0.0, %v3014
  %v3016 = vpop.f32.mrb[0].mxu0
  %3017 = vdwg.mxu0
  %v3019 = vsel %vm200, %v1585, 0
  %v3022 = vsel %vm200, %v1590, 0
  %3024 = vmatprep.subr.mxu0 0.0
  %3025 = vmatpush1.msra.mxu0 %v1797
  %3026 = vmatprep.subr.mxu0 0.0
  %3027 = vmatpush1.msra.mxu0 %v1798
  %3028 = vmatprep.subr.mxu0 0.0
  %3029 = vmatpush1.msra.mxu0 0.0
  %3030 = vmatprep.subr.mxu0 0.0
  %3031 = vmatpush1.msra.mxu0 0.0
  %3032 = vmatprep.subr.mxu0 0.0
  %3033 = vmatpush1.msra.mxu0 0.0
  %3034 = vmatprep.subr.mxu0 0.0
  %3035 = vmatpush1.msra.mxu0 0.0
  %3036 = vmatprep.subr.mxu0 0.0
  %3037 = vmatpush1.msra.mxu0 0.0
  %3038 = vmatprep.subr.mxu0 0.0
  %3039 = vmatpush1.msra.mxu0 0.0
  %3040 = vmatprep.subr.mxu0 0.0
  %3041 = vmatpush1.msra.mxu0 0.0
  %3042 = vmatprep.subr.mxu0 0.0
  %3043 = vmatpush1.msra.mxu0 0.0
  %3044 = vmatprep.subr.mxu0 0.0
  %3045 = vmatpush1.msra.mxu0 0.0
  %3046 = vmatprep.subr.mxu0 0.0
  %3047 = vmatpush1.msra.mxu0 0.0
  %3048 = vmatprep.subr.mxu0 0.0
  %3049 = vmatpush1.msra.mxu0 0.0
  %3050 = vmatprep.subr.mxu0 0.0
  %3051 = vmatpush1.msra.mxu0 0.0
  %3052 = vmatprep.subr.mxu0 0.0
  %3053 = vmatpush1.msra.mxu0 0.0
  %3054 = vmatprep.subr.mxu0 0.0
  %3055 = vmatpush1.msra.mxu0 0.0
  %3056 = vmatprep.subr.mxu0 0.0
  %3057 = vmatpush1.msra.mxu0 0.0
  %3058 = vmatprep.subr.mxu0 0.0
  %3059 = vmatpush1.msra.mxu0 0.0
  %3060 = vmatprep.subr.mxu0 0.0
  %3061 = vmatpush1.msra.mxu0 0.0
  %3062 = vmatprep.subr.mxu0 0.0
  %3063 = vmatpush1.msra.mxu0 0.0
  %3064 = vmatprep.subr.mxu0 0.0
  %3065 = vmatpush1.msra.mxu0 0.0
  %3066 = vmatprep.subr.mxu0 0.0
  %3067 = vmatpush1.msra.mxu0 0.0
  %3068 = vmatprep.subr.mxu0 0.0
  %3069 = vmatpush1.msra.mxu0 0.0
  %3070 = vmatprep.subr.mxu0 0.0
  %3071 = vmatpush1.msra.mxu0 0.0
  %3072 = vmatprep.subr.mxu0 0.0
  %3073 = vmatpush1.msra.mxu0 0.0
  %3074 = vmatprep.subr.mxu0 0.0
  %3075 = vmatpush1.msra.mxu0 0.0
  %3076 = vmatprep.subr.mxu0 0.0
  %3077 = vmatpush1.msra.mxu0 0.0
  %3078 = vmatprep.subr.mxu0 0.0
  %3079 = vmatpush1.msra.mxu0 0.0
  %3080 = vmatprep.subr.mxu0 0.0
  %3081 = vmatpush1.msra.mxu0 0.0
  %3082 = vmatprep.subr.mxu0 0.0
  %3083 = vmatpush1.msra.mxu0 0.0
  %3084 = vmatprep.subr.mxu0 0.0
  %3085 = vmatpush1.msra.mxu0 0.0
  %3086 = vmatprep.subr.mxu0 0.0
  %3087 = vmatpush1.msra.mxu0 0.0
  %3088 = vmatprep.mubr.f32.mxu0 0.0
  %3089 = vmatmul.mubr.f32.gmra.mrb[0].mxu0 %v3019
  %v3090 = vpop.f32.mrb[0].mxu0
  %v3091 = vadd.f32 0.0, %v3090
  %v3092 = vpop.f32.mrb[0].mxu0
  %3093 = vmatprep.mubr.f32.mxu0 0.0
  %3094 = vmatmul.mubr.f32.gmra.mrb[0].mxu0 %v3022
  %v3095 = vpop.f32.mrb[0].mxu0
  %v3096 = vadd.f32 0.0, %v3095
  %v3097 = vpop.f32.mrb[0].mxu0
  %3098 = vdwg.mxu0
  %v3100 = vsel %vm200, %v1672, 0
  %v3103 = vsel %vm200, %v1677, 0
  %3105 = vmatprep.subr.mxu0 0.0
  %3106 = vmatpush1.msra.mxu0 %v1799
  %3107 = vmatprep.subr.mxu0 0.0
  %3108 = vmatpush1.msra.mxu0 %v1800
  %3109 = vmatprep.subr.mxu0 0.0
  %3110 = vmatpush1.msra.mxu0 0.0
  %3111 = vmatprep.subr.mxu0 0.0
  %3112 = vmatpush1.msra.mxu0 0.0
  %3113 = vmatprep.subr.mxu0 0.0
  %3114 = vmatpush1.msra.mxu0 0.0
  %3115 = vmatprep.subr.mxu0 0.0
  %3116 = vmatpush1.msra.mxu0 0.0
  %3117 = vmatprep.subr.mxu0 0.0
  %3118 = vmatpush1.msra.mxu0 0.0
  %3119 = vmatprep.subr.mxu0 0.0
  %3120 = vmatpush1.msra.mxu0 0.0
  %3121 = vmatprep.subr.mxu0 0.0
  %3122 = vmatpush1.msra.mxu0 0.0
  %3123 = vmatprep.subr.mxu0 0.0
  %3124 = vmatpush1.msra.mxu0 0.0
  %3125 = vmatprep.subr.mxu0 0.0
  %3126 = vmatpush1.msra.mxu0 0.0
  %3127 = vmatprep.subr.mxu0 0.0
  %3128 = vmatpush1.msra.mxu0 0.0
  %3129 = vmatprep.subr.mxu0 0.0
  %3130 = vmatpush1.msra.mxu0 0.0
  %3131 = vmatprep.subr.mxu0 0.0
  %3132 = vmatpush1.msra.mxu0 0.0
  %3133 = vmatprep.subr.mxu0 0.0
  %3134 = vmatpush1.msra.mxu0 0.0
  %3135 = vmatprep.subr.mxu0 0.0
  %3136 = vmatpush1.msra.mxu0 0.0
  %3137 = vmatprep.subr.mxu0 0.0
  %3138 = vmatpush1.msra.mxu0 0.0
  %3139 = vmatprep.subr.mxu0 0.0
  %3140 = vmatpush1.msra.mxu0 0.0
  %3141 = vmatprep.subr.mxu0 0.0
  %3142 = vmatpush1.msra.mxu0 0.0
  %3143 = vmatprep.subr.mxu0 0.0
  %3144 = vmatpush1.msra.mxu0 0.0
  %3145 = vmatprep.subr.mxu0 0.0
  %3146 = vmatpush1.msra.mxu0 0.0
  %3147 = vmatprep.subr.mxu0 0.0
  %3148 = vmatpush1.msra.mxu0 0.0
  %3149 = vmatprep.subr.mxu0 0.0
  %3150 = vmatpush1.msra.mxu0 0.0
  %3151 = vmatprep.subr.mxu0 0.0
  %3152 = vmatpush1.msra.mxu0 0.0
  %3153 = vmatprep.subr.mxu0 0.0
  %3154 = vmatpush1.msra.mxu0 0.0
  %3155 = vmatprep.subr.mxu0 0.0
  %3156 = vmatpush1.msra.mxu0 0.0
  %3157 = vmatprep.subr.mxu0 0.0
  %3158 = vmatpush1.msra.mxu0 0.0
  %3159 = vmatprep.subr.mxu0 0.0
  %3160 = vmatpush1.msra.mxu0 0.0
  %3161 = vmatprep.subr.mxu0 0.0
  %3162 = vmatpush1.msra.mxu0 0.0
  %3163 = vmatprep.subr.mxu0 0.0
  %3164 = vmatpush1.msra.mxu0 0.0
  %3165 = vmatprep.subr.mxu0 0.0
  %3166 = vmatpush1.msra.mxu0 0.0
  %3167 = vmatprep.subr.mxu0 0.0
  %3168 = vmatpush1.msra.mxu0 0.0
  %3169 = vmatprep.mubr.f32.mxu0 0.0
  %3170 = vmatmul.mubr.f32.gmra.mrb[0].mxu0 %v3100
  %v3171 = vpop.f32.mrb[0].mxu0
  %v3172 = vadd.f32 0.0, %v3171
  %v3173 = vpop.f32.mrb[0].mxu0
  %3174 = vmatprep.mubr.f32.mxu0 0.0
  %3175 = vmatmul.mubr.f32.gmra.mrb[0].mxu0 %v3103
  %v3176 = vpop.f32.mrb[0].mxu0
  %v3177 = vadd.f32 0.0, %v3176
  %v3178 = vpop.f32.mrb[0].mxu0
  %3179 = vdwg.mxu0
  %v3181 = vsel %vm200, %v1759, 0
  %v3184 = vsel %vm200, %v1764, 0
  %3186 = vmatprep.subr.mxu0 0.0
  %3187 = vmatpush1.msra.mxu0 %v1801
  %3188 = vmatprep.subr.mxu0 0.0
  %3189 = vmatpush1.msra.mxu0 %v1802
  %3190 = vmatprep.subr.mxu0 0.0
  %3191 = vmatpush1.msra.mxu0 0.0
  %3192 = vmatprep.subr.mxu0 0.0
  %3193 = vmatpush1.msra.mxu0 0.0
  %3194 = vmatprep.subr.mxu0 0.0
  %3195 = vmatpush1.msra.mxu0 0.0
  %3196 = vmatprep.subr.mxu0 0.0
  %3197 = vmatpush1.msra.mxu0 0.0
  %3198 = vmatprep.subr.mxu0 0.0
  %3199 = vmatpush1.msra.mxu0 0.0
  %3200 = vmatprep.subr.mxu0 0.0
  %3201 = vmatpush1.msra.mxu0 0.0
  %3202 = vmatprep.subr.mxu0 0.0
  %3203 = vmatpush1.msra.mxu0 0.0
  %3204 = vmatprep.subr.mxu0 0.0
  %3205 = vmatpush1.msra.mxu0 0.0
  %3206 = vmatprep.subr.mxu0 0.0
  %3207 = vmatpush1.msra.mxu0 0.0
  %3208 = vmatprep.subr.mxu0 0.0
  %3209 = vmatpush1.msra.mxu0 0.0
  %3210 = vmatprep.subr.mxu0 0.0
  %3211 = vmatpush1.msra.mxu0 0.0
  %3212 = vmatprep.subr.mxu0 0.0
  %3213 = vmatpush1.msra.mxu0 0.0
  %3214 = vmatprep.subr.mxu0 0.0
  %3215 = vmatpush1.msra.mxu0 0.0
  %3216 = vmatprep.subr.mxu0 0.0
  %3217 = vmatpush1.msra.mxu0 0.0
  %3218 = vmatprep.subr.mxu0 0.0
  %3219 = vmatpush1.msra.mxu0 0.0
  %3220 = vmatprep.subr.mxu0 0.0
  %3221 = vmatpush1.msra.mxu0 0.0
  %3222 = vmatprep.subr.mxu0 0.0
  %3223 = vmatpush1.msra.mxu0 0.0
  %3224 = vmatprep.subr.mxu0 0.0
  %3225 = vmatpush1.msra.mxu0 0.0
  %3226 = vmatprep.subr.mxu0 0.0
  %3227 = vmatpush1.msra.mxu0 0.0
  %3228 = vmatprep.subr.mxu0 0.0
  %3229 = vmatpush1.msra.mxu0 0.0
  %3230 = vmatprep.subr.mxu0 0.0
  %3231 = vmatpush1.msra.mxu0 0.0
  %3232 = vmatprep.subr.mxu0 0.0
  %3233 = vmatpush1.msra.mxu0 0.0
  %3234 = vmatprep.subr.mxu0 0.0
  %3235 = vmatpush1.msra.mxu0 0.0
  %3236 = vmatprep.subr.mxu0 0.0
  %3237 = vmatpush1.msra.mxu0 0.0
  %3238 = vmatprep.subr.mxu0 0.0
  %3239 = vmatpush1.msra.mxu0 0.0
  %3240 = vmatprep.subr.mxu0 0.0
  %3241 = vmatpush1.msra.mxu0 0.0
  %3242 = vmatprep.subr.mxu0 0.0
  %3243 = vmatpush1.msra.mxu0 0.0
  %3244 = vmatprep.subr.mxu0 0.0
  %3245 = vmatpush1.msra.mxu0 0.0
  %3246 = vmatprep.subr.mxu0 0.0
  %3247 = vmatpush1.msra.mxu0 0.0
  %3248 = vmatprep.subr.mxu0 0.0
  %3249 = vmatpush1.msra.mxu0 0.0
  %3250 = vmatprep.mubr.f32.mxu0 0.0
  %3251 = vmatmul.mubr.f32.gmra.mrb[0].mxu0 %v3181
  %v3252 = vpop.f32.mrb[0].mxu0
  %v3253 = vadd.f32 0.0, %v3252
  %v3254 = vpop.f32.mrb[0].mxu0
  %3255 = vmatprep.mubr.f32.mxu0 0.0
  %3256 = vmatmul.mubr.f32.gmra.mrb[0].mxu0 %v3184
  %v3257 = vpop.f32.mrb[0].mxu0
  %v3258 = vadd.f32 0.0, %v3257
  %v3259 = vpop.f32.mrb[0].mxu0
  %3260 = vdwg.mxu0
  %3261 = vst.msk [vmem:[%s4] sm:$0xff] %vm200, %v1876
  %3262 = vst.msk [vmem:[%s4 + $0x8] sm:$0xff] %vm200, %v1881
  %3263 = vst.msk [vmem:[%s4 + $0x10] sm:$0xff] %vm200, %v1957
  %3264 = vst.msk [vmem:[%s4 + $0x18] sm:$0xff] %vm200, %v1962
  %3265 = vst.msk [vmem:[%s4 + $0x20] sm:$0xff] %vm200, %v2038
  %3266 = vst.msk [vmem:[%s4 + $0x28] sm:$0xff] %vm200, %v2043
  %3267 = vst.msk [vmem:[%s4 + $0x30] sm:$0xff] %vm200, %v2119
  %3268 = vst.msk [vmem:[%s4 + $0x38] sm:$0xff] %vm200, %v2124
  %3269 = vst.msk [vmem:[%s4 + $0x40] sm:$0xff] %vm200, %v2200
  %3270 = vst.msk [vmem:[%s4 + $0x48] sm:$0xff] %vm200, %v2205
  %3271 = vst.msk [vmem:[%s4 + $0x50] sm:$0xff] %vm200, %v2281
  %3272 = vst.msk [vmem:[%s4 + $0x58] sm:$0xff] %vm200, %v2286
  %3273 = vst.msk [vmem:[%s4 + $0x60] sm:$0xff] %vm200, %v2362
  %3274 = vst.msk [vmem:[%s4 + $0x68] sm:$0xff] %vm200, %v2367
  %3275 = vst.msk [vmem:[%s4 + $0x70] sm:$0xff] %vm200, %v2443
  %3276 = vst.msk [vmem:[%s4 + $0x78] sm:$0xff] %vm200, %v2448
  %3277 = vst.msk [vmem:[%s4 + $0x80] sm:$0xff] %vm200, %v2524
  %3278 = vst.msk [vmem:[%s4 + $0x88] sm:$0xff] %vm200, %v2529
  %3279 = vst.msk [vmem:[%s4 + $0x90] sm:$0xff] %vm200, %v2605
  %3280 = vst.msk [vmem:[%s4 + $0x98] sm:$0xff] %vm200, %v2610
  %3281 = vst.msk [vmem:[%s4 + $0xa0] sm:$0xff] %vm200, %v2686
  %3282 = vst.msk [vmem:[%s4 + $0xa8] sm:$0xff] %vm200, %v2691
  %3283 = vst.msk [vmem:[%s4 + $0xb0] sm:$0xff] %vm200, %v2767
  %3284 = vst.msk [vmem:[%s4 + $0xb8] sm:$0xff] %vm200, %v2772
  %3285 = vst.msk [vmem:[%s4 + $0xc0] sm:$0xff] %vm200, %v2848
  %3286 = vst.msk [vmem:[%s4 + $0xc8] sm:$0xff] %vm200, %v2853
  %3287 = vst.msk [vmem:[%s4 + $0xd0] sm:$0xff] %vm200, %v2929
  %3288 = vst.msk [vmem:[%s4 + $0xd8] sm:$0xff] %vm200, %v2934
  %3289 = vst.msk [vmem:[%s4 + $0xe0] sm:$0xff] %vm200, %v3010
  %3290 = vst.msk [vmem:[%s4 + $0xe8] sm:$0xff] %vm200, %v3015
  %3291 = vst.msk [vmem:[%s4 + $0xf0] sm:$0xff] %vm200, %v3091
  %3292 = vst.msk [vmem:[%s4 + $0xf8] sm:$0xff] %vm200, %v3096
  %3293 = vst.msk [vmem:[%s4 + $0x100] sm:$0xff] %vm200, %v3172
  %3294 = vst.msk [vmem:[%s4 + $0x108] sm:$0xff] %vm200, %v3177
  %3295 = vst.msk [vmem:[%s4 + $0x110] sm:$0xff] %vm200, %v3253
  %3296 = vst.msk [vmem:[%s4 + $0x118] sm:$0xff] %vm200, %v3258
  // Predicated region
  $region18: #{lp_attention_forward.10} parent=0 // pred_check
    _
  $region19: #{lp_attention_forward.10} parent=0 // pred_check_branch
    %3298 = sbr.rel (0) target = $region21
  $region20: #{lp_attention_forward.10} parent=0 // pred_region
    _
  $region21: #{lp_attention_forward.10} parent=0 // pred_fallthru
    _
  // Predicated region
  $region22: #{lp_attention_forward.10} parent=0 // pred_check
    _
  $region23: #{lp_attention_forward.10} parent=0 // pred_check_branch
    %3300 = sbr.rel (0) target = $region25
  $region24: #{lp_attention_forward.10} parent=0 // pred_region
    _
  $region25: #{lp_attention_forward.10} parent=0 // pred_fallthru
    _

// kernel: lp_attention_forward.11
$region0: #{lp_attention_forward.11}
  #allocation0 [shape = 'u32[]', space=smem, size = 0x4, offset = 0x4, fixed_abs, tag = 'smem constant byte address 0x4 - core index']
  #allocation1 [shape = 'u32[144,128]{1,0:T(1,128)}', space=vmem, size = 0x12000, scoped, tag = 'internal scratch']
  #allocation2 [shape = 'f32[1,1]{1,0:T(1,128)S(6)}', space=smem, size = 0x200, scoped, tag = 'scoped memory for lp_attention_forward.11']
  %s0 = inlined_call_operand.vmem [shape: f32[3,81], index: 0, kind: input, shape index: {}]
  %s1 = inlined_call_operand.vmem [shape: f32[81,512], index: 1, kind: input, shape index: {}]
  %s2 = inlined_call_operand.vmem [shape: f32[3,1], index: 2, kind: input, shape index: {}]
  %s3 = inlined_call_operand.<no memory space> [shape: f32[1,1], index: 3, kind: input, shape index: {}]
  %s4 = inlined_call_operand.vmem [shape: f32[3,512], index: 4, kind: output, shape index: {}]
  %s5 = sld [smem:[#allocation0]]
  $region26: #{lp_attention_forward.11} parent=0
    _
  %s7 = ssub.s32 1, %s5
  %s8 = scalar_select 0, %s7, %s5
  %9 = sst [smem:[#allocation2]] %s3
  // Predicated region
  $region2: #{lp_attention_forward.11} parent=0 // pred_check
    _
  $region3: #{lp_attention_forward.11} parent=0 // pred_check_branch
    %11 = sbr.rel (0) target = $region5
  $region4: #{lp_attention_forward.11} parent=0 // pred_region
    _
  $region5: #{lp_attention_forward.11} parent=0 // pred_fallthru
    _
  // Predicated region
  $region6: #{lp_attention_forward.11} parent=0 // pred_check
    _
  $region7: #{lp_attention_forward.11} parent=0 // pred_check_branch
    %13 = sbr.rel (0) target = $region9
  $region8: #{lp_attention_forward.11} parent=0 // pred_region
    _
  $region9: #{lp_attention_forward.11} parent=0 // pred_fallthru
    _
  // Predicated region
  $region10: #{lp_attention_forward.11} parent=0 // pred_check
    _
  $region11: #{lp_attention_forward.11} parent=0 // pred_check_branch
    %15 = sbr.rel (0) target = $region13
  $region12: #{lp_attention_forward.11} parent=0 // pred_region
    _
  $region13: #{lp_attention_forward.11} parent=0 // pred_fallthru
    _
  // Predicated region
  $region14: #{lp_attention_forward.11} parent=0 // pred_check
    _
  $region15: #{lp_attention_forward.11} parent=0 // pred_check_branch
    %17 = sbr.rel (0) target = $region17
  $region16: #{lp_attention_forward.11} parent=0 // pred_region
    _
  $region17: #{lp_attention_forward.11} parent=0 // pred_fallthru
    _
  %v18 = vld [vmem:[%s0] sm:$0x7]
  %v19 = vld [vmem:[%s1] sm:$0xff]
  %v20 = vld [vmem:[%s1 + $0x8] sm:$0xff]
  %v21 = vld [vmem:[%s1 + $0x10] sm:$0xff]
  %v22 = vld [vmem:[%s1 + $0x18] sm:$0xff]
  %v23 = vld [vmem:[%s1 + $0x20] sm:$0xff]
  %v24 = vld [vmem:[%s1 + $0x28] sm:$0xff]
  %v25 = vld [vmem:[%s1 + $0x30] sm:$0xff]
  %v26 = vld [vmem:[%s1 + $0x38] sm:$0xff]
  %v27 = vld [vmem:[%s1 + $0x40] sm:$0xff]
  %v28 = vld [vmem:[%s1 + $0x48] sm:$0xff]
  %v29 = vld [vmem:[%s1 + $0x50] sm:$0xff]
  %v30 = vld [vmem:[%s1 + $0x58] sm:$0xff]
  %v31 = vld [vmem:[%s1 + $0x60] sm:$0xff]
  %v32 = vld [vmem:[%s1 + $0x68] sm:$0xff]
  %v33 = vld [vmem:[%s1 + $0x70] sm:$0xff]
  %v34 = vld [vmem:[%s1 + $0x78] sm:$0xff]
  %v35 = vld [vmem:[%s1 + $0x80] sm:$0xff]
  %v36 = vld [vmem:[%s1 + $0x88] sm:$0xff]
  %v37 = vld [vmem:[%s1 + $0x90] sm:$0xff]
  %v38 = vld [vmem:[%s1 + $0x98] sm:$0xff]
  %v39 = vld [vmem:[%s1 + $0xa0] sm:$0xff]
  %v40 = vld [vmem:[%s1 + $0xa8] sm:$0xff]
  %v41 = vld [vmem:[%s1 + $0xb0] sm:$0xff]
  %v42 = vld [vmem:[%s1 + $0xb8] sm:$0xff]
  %v43 = vld [vmem:[%s1 + $0xc0] sm:$0xff]
  %v44 = vld [vmem:[%s1 + $0xc8] sm:$0xff]
  %v45 = vld [vmem:[%s1 + $0xd0] sm:$0xff]
  %v46 = vld [vmem:[%s1 + $0xd8] sm:$0xff]
  %v47 = vld [vmem:[%s1 + $0xe0] sm:$0xff]
  %v48 = vld [vmem:[%s1 + $0xe8] sm:$0xff]
  %v49 = vld [vmem:[%s1 + $0xf0] sm:$0xff]
  %v50 = vld [vmem:[%s1 + $0xf8] sm:$0xff]
  %v51 = vld [vmem:[%s1 + $0x100] sm:$0xff]
  %v52 = vld [vmem:[%s1 + $0x108] sm:$0xff]
  %v53 = vld [vmem:[%s1 + $0x110] sm:$0xff]
  %v54 = vld [vmem:[%s1 + $0x118] sm:$0xff]
  %v55 = vld [vmem:[%s1 + $0x120] sm:$0xff]
  %v56 = vld [vmem:[%s1 + $0x128] sm:$0xff]
  %v57 = vld [vmem:[%s1 + $0x130] sm:$0xff]
  %v58 = vld [vmem:[%s1 + $0x138] sm:$0xff]
  %v59 = vld [vmem:[%s1 + $0x140] sm:$0x1]
  %v60 = vld [vmem:[%s1 + $0x148] sm:$0x1]
  %v61 = vld [vmem:[%s1 + $0x150] sm:$0x1]
  %v62 = vld [vmem:[%s1 + $0x158] sm:$0x1]
  %v63 = vld [vmem:[%s2] sm:$0x7]
  %65 = vset.pattern.permute.xlu0 0
  %66 = vperm.xlu0 %65, %v63
  %v67 = vpop.permute.xlu0 %66
  %vm69 = vcmask 662528
  %v71 = vsel %vm69, %v18, 0
  %vm73 = vcmask 1040384
  %v75 = vsel %vm73, %v59, 0
  %v78 = vsel %vm73, %v60, 0
  %v81 = vsel %vm73, %v61, 0
  %v84 = vsel %vm73, %v62, 0
  %86 = vmatprep.subr.mxu0 %v20
  %87 = vmatpush1.msra.mxu0 %v19
  %88 = vmatprep.subr.mxu0 %v24
  %89 = vmatpush1.msra.mxu0 %v23
  %90 = vmatprep.subr.mxu0 %v28
  %91 = vmatpush1.msra.mxu0 %v27
  %92 = vmatprep.subr.mxu0 %v32
  %93 = vmatpush1.msra.mxu0 %v31
  %94 = vmatprep.subr.mxu0 %v36
  %95 = vmatpush1.msra.mxu0 %v35
  %96 = vmatprep.subr.mxu0 %v40
  %97 = vmatpush1.msra.mxu0 %v39
  %98 = vmatprep.subr.mxu0 %v44
  %99 = vmatpush1.msra.mxu0 %v43
  %100 = vmatprep.subr.mxu0 %v48
  %101 = vmatpush1.msra.mxu0 %v47
  %102 = vmatprep.subr.mxu0 %v52
  %103 = vmatpush1.msra.mxu0 %v51
  %104 = vmatprep.subr.mxu0 %v56
  %105 = vmatpush1.msra.mxu0 %v55
  %106 = vmatprep.subr.mxu0 %v78
  %107 = vmatpush1.msra.mxu0 %v75
  %108 = vmatprep.subr.mxu0 0.0
  %109 = vmatpush1.msra.mxu0 0.0
  %110 = vmatprep.subr.mxu0 0.0
  %111 = vmatpush1.msra.mxu0 0.0
  %112 = vmatprep.subr.mxu0 0.0
  %113 = vmatpush1.msra.mxu0 0.0
  %114 = vmatprep.subr.mxu0 0.0
  %115 = vmatpush1.msra.mxu0 0.0
  %116 = vmatprep.subr.mxu0 0.0
  %117 = vmatpush1.msra.mxu0 0.0
  %118 = vmatprep.subr.mxu0 0.0
  %119 = vmatpush1.msra.mxu0 0.0
  %120 = vmatprep.subr.mxu0 0.0
  %121 = vmatpush1.msra.mxu0 0.0
  %122 = vmatprep.subr.mxu0 0.0
  %123 = vmatpush1.msra.mxu0 0.0
  %124 = vmatprep.subr.mxu0 0.0
  %125 = vmatpush1.msra.mxu0 0.0
  %126 = vmatprep.subr.mxu0 0.0
  %127 = vmatpush1.msra.mxu0 0.0
  %128 = vmatprep.subr.mxu0 0.0
  %129 = vmatpush1.msra.mxu0 0.0
  %130 = vmatprep.subr.mxu0 0.0
  %131 = vmatpush1.msra.mxu0 0.0
  %132 = vmatprep.subr.mxu0 0.0
  %133 = vmatpush1.msra.mxu0 0.0
  %134 = vmatprep.subr.mxu0 0.0
  %135 = vmatpush1.msra.mxu0 0.0
  %136 = vmatprep.subr.mxu0 0.0
  %137 = vmatpush1.msra.mxu0 0.0
  %138 = vmatprep.subr.mxu0 0.0
  %139 = vmatpush1.msra.mxu0 0.0
  %140 = vmatprep.subr.mxu0 0.0
  %141 = vmatpush1.msra.mxu0 0.0
  %142 = vmatprep.subr.mxu0 0.0
  %143 = vmatpush1.msra.mxu0 0.0
  %144 = vmatprep.subr.mxu0 0.0
  %145 = vmatpush1.msra.mxu0 0.0
  %146 = vmatprep.subr.mxu0 0.0
  %147 = vmatpush1.msra.mxu0 0.0
  %148 = vmatprep.subr.mxu0 0.0
  %149 = vmatpush1.msra.mxu0 0.0
  %150 = vmatprep.mubr.f32.mxu0 0.0
  %151 = vmatmul.mubr.f32.gmra.mrb[0].mxu0 %v71
  %v152 = vpop.f32.mrb[0].mxu0
  %v153 = vadd.f32 %v67, %v152
  %v154 = vpop.f32.mrb[0].mxu0
  %v155 = vadd.f32 %v67, %v154
  %156 = vdwg.mxu0
  %157 = vmatprep.subr.mxu0 %v22
  %158 = vmatpush1.msra.mxu0 %v21
  %159 = vmatprep.subr.mxu0 %v26
  %160 = vmatpush1.msra.mxu0 %v25
  %161 = vmatprep.subr.mxu0 %v30
  %162 = vmatpush1.msra.mxu0 %v29
  %163 = vmatprep.subr.mxu0 %v34
  %164 = vmatpush1.msra.mxu0 %v33
  %165 = vmatprep.subr.mxu0 %v38
  %166 = vmatpush1.msra.mxu0 %v37
  %167 = vmatprep.subr.mxu0 %v42
  %168 = vmatpush1.msra.mxu0 %v41
  %169 = vmatprep.subr.mxu0 %v46
  %170 = vmatpush1.msra.mxu0 %v45
  %171 = vmatprep.subr.mxu0 %v50
  %172 = vmatpush1.msra.mxu0 %v49
  %173 = vmatprep.subr.mxu0 %v54
  %174 = vmatpush1.msra.mxu0 %v53
  %175 = vmatprep.subr.mxu0 %v58
  %176 = vmatpush1.msra.mxu0 %v57
  %177 = vmatprep.subr.mxu0 %v84
  %178 = vmatpush1.msra.mxu0 %v81
  %179 = vmatprep.subr.mxu0 0.0
  %180 = vmatpush1.msra.mxu0 0.0
  %181 = vmatprep.subr.mxu0 0.0
  %182 = vmatpush1.msra.mxu0 0.0
  %183 = vmatprep.subr.mxu0 0.0
  %184 = vmatpush1.msra.mxu0 0.0
  %185 = vmatprep.subr.mxu0 0.0
  %186 = vmatpush1.msra.mxu0 0.0
  %187 = vmatprep.subr.mxu0 0.0
  %188 = vmatpush1.msra.mxu0 0.0
  %189 = vmatprep.subr.mxu0 0.0
  %190 = vmatpush1.msra.mxu0 0.0
  %191 = vmatprep.subr.mxu0 0.0
  %192 = vmatpush1.msra.mxu0 0.0
  %193 = vmatprep.subr.mxu0 0.0
  %194 = vmatpush1.msra.mxu0 0.0
  %195 = vmatprep.subr.mxu0 0.0
  %196 = vmatpush1.msra.mxu0 0.0
  %197 = vmatprep.subr.mxu0 0.0
  %198 = vmatpush1.msra.mxu0 0.0
  %199 = vmatprep.subr.mxu0 0.0
  %200 = vmatpush1.msra.mxu0 0.0
  %201 = vmatprep.subr.mxu0 0.0
  %202 = vmatpush1.msra.mxu0 0.0
  %203 = vmatprep.subr.mxu0 0.0
  %204 = vmatpush1.msra.mxu0 0.0
  %205 = vmatprep.subr.mxu0 0.0
  %206 = vmatpush1.msra.mxu0 0.0
  %207 = vmatprep.subr.mxu0 0.0
  %208 = vmatpush1.msra.mxu0 0.0
  %209 = vmatprep.subr.mxu0 0.0
  %210 = vmatpush1.msra.mxu0 0.0
  %211 = vmatprep.subr.mxu0 0.0
  %212 = vmatpush1.msra.mxu0 0.0
  %213 = vmatprep.subr.mxu0 0.0
  %214 = vmatpush1.msra.mxu0 0.0
  %215 = vmatprep.subr.mxu0 0.0
  %216 = vmatpush1.msra.mxu0 0.0
  %217 = vmatprep.subr.mxu0 0.0
  %218 = vmatpush1.msra.mxu0 0.0
  %219 = vmatprep.subr.mxu0 0.0
  %220 = vmatpush1.msra.mxu0 0.0
  %221 = vmatprep.mubr.f32.mxu0 0.0
  %222 = vmatmul.mubr.f32.gmra.mrb[0].mxu0 %v71
  %v223 = vpop.f32.mrb[0].mxu0
  %v224 = vadd.f32 %v67, %v223
  %v225 = vpop.f32.mrb[0].mxu0
  %v226 = vadd.f32 %v67, %v225
  %227 = vdwg.mxu0
  %s228 = sld [smem:[#allocation2]]
  %vm229 = vcmp.ge.f32.partialorder %v153, 0.0
  %vm230 = vcmp.ge.f32.partialorder %v155, 0.0
  %vm231 = vcmp.ge.f32.partialorder %v224, 0.0
  %vm232 = vcmp.ge.f32.partialorder %v226, 0.0
  %v233 = vstv %s228
  %v234 = vmul.f32 %v233, %v153
  %v235 = vmul.f32 %v233, %v155
  %v236 = vmul.f32 %v233, %v224
  %v237 = vmul.f32 %v233, %v226
  %v238 = vsel %vm229, %v153, %v234
  %v239 = vsel %vm230, %v155, %v235
  %v240 = vsel %vm231, %v224, %v236
  %v241 = vsel %vm232, %v226, %v237
  %v246 = vcombine.low %v238, %v239
  %v247 = vcombine.low %v240, %v241
  %250 = vst [vmem:[%s4] sm:$0x77] %v246
  %251 = vst [vmem:[%s4 + $0x8] sm:$0x77] %v247
  // Predicated region
  $region18: #{lp_attention_forward.11} parent=0 // pred_check
    _
  $region19: #{lp_attention_forward.11} parent=0 // pred_check_branch
    %253 = sbr.rel (0) target = $region21
  $region20: #{lp_attention_forward.11} parent=0 // pred_region
    _
  $region21: #{lp_attention_forward.11} parent=0 // pred_fallthru
    _
  // Predicated region
  $region22: #{lp_attention_forward.11} parent=0 // pred_check
    _
  $region23: #{lp_attention_forward.11} parent=0 // pred_check_branch
    %255 = sbr.rel (0) target = $region25
  $region24: #{lp_attention_forward.11} parent=0 // pred_region
    _
  $region25: #{lp_attention_forward.11} parent=0 // pred_fallthru
    _

</llo_original>
